<compile_context>
chip_gen: v7x
topology: tpu7x:2x2x1
jax: 0.10.0
libtpu: 0.0.40
codegen_flags: <defaults>
</compile_context>

<pallas_src>
import functools

import jax
import jax.numpy as jnp
from jax.experimental import pallas as pl
from jax.experimental.pallas import tpu as pltpu

# ---------------- small synthetic config (Phi3-like, tiny) ----------------
HIDDEN = 128
NUM_HEADS = 4
NUM_KV_HEADS = 2
HEAD_DIM = HIDDEN // NUM_HEADS          # 32
Q_WIDTH = NUM_HEADS * HEAD_DIM          # 128
KV_WIDTH = NUM_KV_HEADS * HEAD_DIM      # 64
QKV_OUT = Q_WIDTH + 2 * KV_WIDTH        # 256
INTERMEDIATE = 256
RMS_EPS = 1e-5
ROPE_THETA = 10000.0
SEQ_LEN = 32
NUM_SLOTS = 64                          # flat kv-cache slots (= slots, kvh*d)
DTYPE = jnp.float32                     # activations / cache dtype
WEIGHT_DTYPE = jnp.bfloat16             # weights live in HBM as bf16
MXU_DTYPE = jnp.bfloat16                # MXU operand dtype (f32 accumulate)
SOFTMAX_SCALE = HEAD_DIM ** -0.5

T_TILE = 16                             # token tile for kernel A
TQ_TILE = 16                            # query-token tile for kernel B
TK_TILE = 16                            # kv-token tile for kernel B


# ===================== kernel A: add+RMSNorm + QKV + RoPE + cache write =====================
def _qkv_rope_cache_kernel(slots_ref,
                           hs_ref, res_ref, ln1_ref, wqkv_ref, cos_ref, sin_ref,
                           kc_in_ref, vc_in_ref,
                           q_ref, kv_ref, resid_ref, kc_ref, vc_ref,
                           k_scr, v_scr, dma_sem,
                           *, eps, num_heads, num_kv_heads, head_dim):
  del kc_in_ref, vc_in_ref          # aliased to kc_ref / vc_ref; written via DMA
  f32 = jnp.float32
  t_tile = hs_ref.shape[0]
  q_sz = num_heads * head_dim
  kv_sz = num_kv_heads * head_dim
  half = head_dim // 2

  # ---- input_layernorm: fused residual add + RMSNorm (all f32) ----
  x = hs_ref[...].astype(f32) + res_ref[...].astype(f32)              # (T_t, H)
  inv = jax.lax.rsqrt(jnp.mean(x * x, axis=-1, keepdims=True) + eps)
  normed = x * inv * ln1_ref[...].astype(f32)
  resid_ref[...] = x.astype(resid_ref.dtype)

  # ---- fused qkv projection: bf16 MXU operands, f32 accumulate ----
  qkv = jnp.dot(normed.astype(wqkv_ref.dtype), wqkv_ref[...],
                preferred_element_type=f32)                           # (T_t, 256)
  q = qkv[:, :q_sz]                                                   # (T_t, H*D)
  k = qkv[:, q_sz:q_sz + kv_sz]                                       # (T_t, KV*D)
  v = qkv[:, q_sz + kv_sz:]                                           # (T_t, KV*D)

  # ---- neox rotary; cos/sin arrive as (T_t, head_dim/2), broadcast here ----
  cos_d = jnp.concatenate([cos_ref[...], cos_ref[...]], axis=-1).astype(f32)
  sin_d = jnp.concatenate([sin_ref[...], sin_ref[...]], axis=-1).astype(f32)

  def rope(xp, n_heads):
    # NOTE: rolls run across the full packed (T_t, n_heads*head_dim) lane axis;
    # lanes that wrap across a head boundary always land in the branch that
    # jnp.where discards, so the per-head neox rotation is exact.  This relies
    # on the packed [h0 d0..dD-1 | h1 d0.. | ...] lane layout.
    hd = xp.shape[-1]
    cos = jnp.concatenate([cos_d] * n_heads, axis=-1)
    sin = jnp.concatenate([sin_d] * n_heads, axis=-1)
    lane = jax.lax.broadcasted_iota(jnp.int32, xp.shape, 1)
    first = (lane % head_dim) < half
    x_fwd = pltpu.roll(xp, shift=half, axis=1)        # x[i - half]
    x_bwd = pltpu.roll(xp, shift=hd - half, axis=1)   # x[i + half]
    rotated = jnp.where(first, -x_bwd, x_fwd)         # per-head [-x2, x1]
    return xp * cos + rotated * sin

  q = rope(q, num_heads)
  k = rope(k, num_kv_heads)

  q_ref[...] = q.astype(q_ref.dtype)
  kv_ref[...] = jnp.concatenate([k, v], axis=-1).astype(kv_ref.dtype)  # lane-dense

  # ---- reshape_and_cache: DMA new K/V rows into the flat caches at `slots` ----
  # Duplicate slot ids are assumed not to occur (standard reshape_and_cache).
  k_scr[...] = k.astype(k_scr.dtype)
  v_scr[...] = v.astype(v_scr.dtype)
  base = pl.program_id(0) * t_tile

  def scatter_row(i, carry):
    row = slots_ref[base + i]
    ck = pltpu.make_async_copy(k_scr.at[i], kc_ref.at[row], dma_sem.at[0])
    cv = pltpu.make_async_copy(v_scr.at[i], vc_ref.at[row], dma_sem.at[1])
    ck.start()
    cv.start()
    ck.wait()
    cv.wait()
    return carry

  jax.lax.fori_loop(0, t_tile, scatter_row, 0)


# ===================== kernel B: flash GQA attention + o_proj + RMSNorm + MLP =====================
def _attn_mlp_kernel(q_ref, k_ref, v_ref, resid_ref, ln2_ref,
                     wo_ref, wgu_ref, wdown_ref,
                     mlp_ref, attn_res_ref,
                     m_scr, l_scr, acc_scr,
                     *, eps, scale, groups, intermediate):
  f32 = jnp.float32
  qi = pl.program_id(0)
  ki = pl.program_id(1)
  tq = q_ref.shape[1]
  tk = k_ref.shape[1]

  @pl.when(ki == 0)
  def _():
    m_scr[...] = jnp.full_like(m_scr, -1e30)
    l_scr[...] = jnp.zeros_like(l_scr)
    acc_scr[...] = jnp.zeros_like(acc_scr)

  # Skip KV blocks entirely above the causal diagonal (finalize still runs at last ki).
  @pl.when(ki * tk <= qi * tq + (tq - 1))
  def _():
    q = q_ref[...].astype(MXU_DTYPE)                              # (H, Tq, D)
    k = jnp.repeat(k_ref[...], groups, axis=0).astype(MXU_DTYPE)  # (H, Tk, D) GQA
    v = jnp.repeat(v_ref[...], groups, axis=0).astype(MXU_DTYPE)
    # head-batched QK^T: one dot_general, batch dim = heads
    s = jax.lax.dot_general(q, k, (((2,), (2,)), ((0,), (0,))),
                            preferred_element_type=f32) * scale   # (H, Tq, Tk)
    qg = qi * tq + jax.lax.broadcasted_iota(jnp.int32, (tq, tk), 0)
    kg = ki * tk + jax.lax.broadcasted_iota(jnp.int32, (tq, tk), 1)
    s = jnp.where((kg <= qg)[None, :, :], s, -1e30)
    m_prev = m_scr[...]
    m_new = jnp.maximum(m_prev, jnp.max(s, axis=-1, keepdims=True))
    alpha = jnp.exp(m_prev - m_new)
    p = jnp.exp(s - m_new)                                        # f32 softmax math
    l_scr[...] = alpha * l_scr[...] + jnp.sum(p, axis=-1, keepdims=True)
    pv = jax.lax.dot_general(p.astype(MXU_DTYPE), v,
                             (((2,), (1,)), ((0,), (0,))),
                             preferred_element_type=f32)          # (H, Tq, D)
    acc_scr[...] = alpha * acc_scr[...] + pv
    m_scr[...] = m_new

  @pl.when(ki == pl.num_programs(1) - 1)
  def _():
    o = acc_scr[...] / l_scr[...]                                 # exact reciprocal
    # o_proj: per-head batched matmul with w_o stored as (H, D, HIDDEN),
    # then a cheap sum over the leading head axis (no head transpose needed).
    tmp = jax.lax.dot_general(o.astype(wo_ref.dtype), wo_ref[...],
                              (((2,), (1,)), ((0,), (0,))),
                              preferred_element_type=f32)         # (H, Tq, HIDDEN)
    attn_out = jnp.sum(tmp, axis=0)                               # (Tq, HIDDEN)

    # post_attention_layernorm: fused residual add + RMSNorm (f32)
    x2 = attn_out + resid_ref[...].astype(f32)
    attn_res_ref[...] = x2.astype(attn_res_ref.dtype)
    inv2 = jax.lax.rsqrt(jnp.mean(x2 * x2, axis=-1, keepdims=True) + eps)
    normed2 = x2 * inv2 * ln2_ref[...].astype(f32)

    # MLP: gate_up matmul with fused SwiGLU epilogue, then down_proj
    gu = jnp.dot(normed2.astype(wgu_ref.dtype), wgu_ref[...],
                 preferred_element_type=f32)                      # (Tq, 2I)
    gate = gu[:, :intermediate]
    up = gu[:, intermediate:]
    act = gate * jax.nn.sigmoid(gate) * up                        # silu(gate)*up, f32
    mlp_ref[...] = jnp.dot(act.astype(wdown_ref.dtype), wdown_ref[...],
                           preferred_element_type=f32).astype(mlp_ref.dtype)


# ===================== FlashPhi3Layer forward =====================
def flash_phi3_layer(params, hidden_states, residual, cos, sin,
                     cu_seqlen_prefill, kv_cache, block_tables, slots,
                     input_lengths, max_s, adapter_data):
  # TODO(synk): paged decode (block_tables/input_lengths) and LoRA adapter_data
  # are not implemented; single contiguous prefill sequence assumed.
  del cu_seqlen_prefill, block_tables, input_lengths, max_s, adapter_data

  t, hidden = hidden_states.shape
  if residual is None:
    residual = jnp.zeros_like(hidden_states)
  k_cache, v_cache = kv_cache

  # ---------------- kernel A ----------------
  kernel_a = functools.partial(
      _qkv_rope_cache_kernel, eps=RMS_EPS,
      num_heads=NUM_HEADS, num_kv_heads=NUM_KV_HEADS, head_dim=HEAD_DIM)

  grid_a = pltpu.PrefetchScalarGridSpec(
      num_scalar_prefetch=1,
      grid=(t // T_TILE,),
      in_specs=[
          pl.BlockSpec((T_TILE, hidden), lambda i, s_ref: (i, 0)),      # hidden
          pl.BlockSpec((T_TILE, hidden), lambda i, s_ref: (i, 0)),      # residual
          pl.BlockSpec((1, hidden), lambda i, s_ref: (0, 0)),           # ln1 w
          pl.BlockSpec((hidden, QKV_OUT), lambda i, s_ref: (0, 0)),     # wqkv bf16
          pl.BlockSpec((T_TILE, HEAD_DIM // 2), lambda i, s_ref: (i, 0)),  # cos
          pl.BlockSpec((T_TILE, HEAD_DIM // 2), lambda i, s_ref: (i, 0)),  # sin
          pl.BlockSpec(memory_space=pl.ANY),                            # k cache
          pl.BlockSpec(memory_space=pl.ANY),                            # v cache
      ],
      out_specs=[
          pl.BlockSpec((T_TILE, Q_WIDTH), lambda i, s_ref: (i, 0)),     # q
          pl.BlockSpec((T_TILE, 2 * KV_WIDTH), lambda i, s_ref: (i, 0)),  # kv packed
          pl.BlockSpec((T_TILE, hidden), lambda i, s_ref: (i, 0)),      # residual out
          pl.BlockSpec(memory_space=pl.ANY),                            # k cache (aliased)
          pl.BlockSpec(memory_space=pl.ANY),                            # v cache (aliased)
      ],
      scratch_shapes=[
          pltpu.VMEM((T_TILE, KV_WIDTH), k_cache.dtype),
          pltpu.VMEM((T_TILE, KV_WIDTH), v_cache.dtype),
          pltpu.SemaphoreType.DMA((2,)),
      ],
  )
  q, kv_packed, resid, k_cache, v_cache = pl.pallas_call(
      kernel_a,
      grid_spec=grid_a,
      out_shape=[
          jax.ShapeDtypeStruct((t, Q_WIDTH), hidden_states.dtype),
          jax.ShapeDtypeStruct((t, 2 * KV_WIDTH), hidden_states.dtype),
          jax.ShapeDtypeStruct((t, hidden), hidden_states.dtype),
          jax.ShapeDtypeStruct(k_cache.shape, k_cache.dtype),
          jax.ShapeDtypeStruct(v_cache.shape, v_cache.dtype),
      ],
      # call args = (slots, hs, res, ln1, wqkv, cos, sin, k_cache, v_cache)
      input_output_aliases={7: 3, 8: 4},
      compiler_params=pltpu.CompilerParams(
          # kept "arbitrary" so duplicate-slot DMA writes stay deterministic;
          # token tiles are independent otherwise.
          dimension_semantics=("arbitrary",),
          vmem_limit_bytes=64 * 1024 * 1024),
  )(slots, hidden_states, residual, params["input_ln_w"], params["qkv_wT"],
    cos, sin, k_cache, v_cache)

  # Layout plumbing for head-batched attention (cheap XLA transposes on
  # activations only).  TODO(synk): emit these layouts from kernel A out_specs.
  q3 = q.reshape(t, NUM_HEADS, HEAD_DIM).transpose(1, 0, 2)
  k3 = kv_packed[:, :KV_WIDTH].reshape(t, NUM_KV_HEADS, HEAD_DIM).transpose(1, 0, 2)
  v3 = kv_packed[:, KV_WIDTH:].reshape(t, NUM_KV_HEADS, HEAD_DIM).transpose(1, 0, 2)

  # ---------------- kernel B ----------------
  kernel_b = functools.partial(
      _attn_mlp_kernel, eps=RMS_EPS, scale=SOFTMAX_SCALE,
      groups=NUM_HEADS // NUM_KV_HEADS, intermediate=INTERMEDIATE)

  mlp_out, attn_res = pl.pallas_call(
      kernel_b,
      grid=(t // TQ_TILE, t // TK_TILE),     # kv-tile axis innermost
      in_specs=[
          pl.BlockSpec((NUM_HEADS, TQ_TILE, HEAD_DIM), lambda qi, ki: (0, qi, 0)),
          pl.BlockSpec((NUM_KV_HEADS, TK_TILE, HEAD_DIM), lambda qi, ki: (0, ki, 0)),
          pl.BlockSpec((NUM_KV_HEADS, TK_TILE, HEAD_DIM), lambda qi, ki: (0, ki, 0)),
          pl.BlockSpec((TQ_TILE, hidden), lambda qi, ki: (qi, 0)),        # residual
          pl.BlockSpec((1, hidden), lambda qi, ki: (0, 0)),               # ln2 w
          pl.BlockSpec((NUM_HEADS, HEAD_DIM, hidden), lambda qi, ki: (0, 0, 0)),  # wo
          pl.BlockSpec((hidden, 2 * INTERMEDIATE), lambda qi, ki: (0, 0)),        # wgu
          pl.BlockSpec((INTERMEDIATE, hidden), lambda qi, ki: (0, 0)),            # wdown
      ],
      out_specs=[
          pl.BlockSpec((TQ_TILE, hidden), lambda qi, ki: (qi, 0)),
          pl.BlockSpec((TQ_TILE, hidden), lambda qi, ki: (qi, 0)),
      ],
      out_shape=[
          jax.ShapeDtypeStruct((t, hidden), hidden_states.dtype),
          jax.ShapeDtypeStruct((t, hidden), hidden_states.dtype),
      ],
      scratch_shapes=[
          pltpu.VMEM((NUM_HEADS, TQ_TILE, 1), jnp.float32),   # m
          pltpu.VMEM((NUM_HEADS, TQ_TILE, 1), jnp.float32),   # l
          pltpu.VMEM((NUM_HEADS, TQ_TILE, HEAD_DIM), jnp.float32),  # acc
      ],
      compiler_params=pltpu.CompilerParams(
          dimension_semantics=("parallel", "arbitrary"),
          vmem_limit_bytes=64 * 1024 * 1024),
  )(q3, k3, v3, resid, params["post_ln_w"], params["o_w3"],
    params["gate_up_wT"], params["down_wT"])

  return mlp_out, attn_res, (k_cache, v_cache)


# ===================== pure-JAX reference (for correctness check) =====================
def reference_layer(params, hidden_states, residual, cos, sin, slots, kv_cache):
  if residual is None:
    residual = jnp.zeros_like(hidden_states)
  f32 = jnp.float32
  t = hidden_states.shape[0]
  x = hidden_states.astype(f32) + residual.astype(f32)

  def rmsnorm(v, w):
    var = jnp.mean(v * v, axis=-1, keepdims=True)
    return v * jax.lax.rsqrt(var + RMS_EPS) * w.astype(f32).reshape(1, -1)

  qkv_w = params["qkv_wT"].astype(f32)
  o_w = params["o_w3"].astype(f32).reshape(Q_WIDTH, HIDDEN)
  gu_w = params["gate_up_wT"].astype(f32)
  dn_w = params["down_wT"].astype(f32)

  normed = rmsnorm(x, params["input_ln_w"])
  qkv = normed @ qkv_w
  q = qkv[:, :Q_WIDTH].reshape(t, NUM_HEADS, HEAD_DIM)
  k = qkv[:, Q_WIDTH:Q_WIDTH + KV_WIDTH].reshape(t, NUM_KV_HEADS, HEAD_DIM)
  v = qkv[:, Q_WIDTH + KV_WIDTH:].reshape(t, NUM_KV_HEADS, HEAD_DIM)

  def rope(a):  # neox style
    half = HEAD_DIM // 2
    x1, x2 = a[..., :half], a[..., half:]
    c, s = cos[:, None, :].astype(f32), sin[:, None, :].astype(f32)
    return jnp.concatenate([x1 * c - x2 * s, x2 * c + x1 * s], axis=-1)

  q, k = rope(q), rope(k)
  k_cache = kv_cache[0].at[slots].set(k.reshape(t, KV_WIDTH).astype(kv_cache[0].dtype))
  v_cache = kv_cache[1].at[slots].set(v.reshape(t, KV_WIDTH).astype(kv_cache[1].dtype))

  groups = NUM_HEADS // NUM_KV_HEADS
  k_exp = jnp.repeat(k, groups, axis=1)
  v_exp = jnp.repeat(v, groups, axis=1)
  s = jnp.einsum('qhd,khd->hqk', q, k_exp) * SOFTMAX_SCALE
  mask = jnp.tril(jnp.ones((t, t), bool))
  s = jnp.where(mask[None], s, -1e30)
  p = jax.nn.softmax(s, axis=-1)
  attn = jnp.einsum('hqk,khd->qhd', p, v_exp).reshape(t, Q_WIDTH)
  attn_out = attn @ o_w

  x2 = attn_out + x
  normed2 = rmsnorm(x2, params["post_ln_w"])
  gu = normed2 @ gu_w
  gate, up = gu[:, :INTERMEDIATE], gu[:, INTERMEDIATE:]
  mlp = (jax.nn.silu(gate) * up) @ dn_w
  return (mlp.astype(hidden_states.dtype), x2.astype(hidden_states.dtype),
          (k_cache, v_cache))


# ===================== deterministic parameter init =====================
def init_params(key):
  ks = jax.random.split(key, 6)
  scale = 0.02
  # torch nn.Linear layout is (out, in); transpose/reshape ONCE at load time and
  # store bf16 so the kernels pay neither per-call transposes nor f32 weight DMA.
  qkv_w = scale * jax.random.normal(ks[2], (QKV_OUT, HIDDEN), jnp.float32)
  o_w = scale * jax.random.normal(ks[3], (HIDDEN, Q_WIDTH), jnp.float32)
  gate_up_w = scale * jax.random.normal(ks[4], (2 * INTERMEDIATE, HIDDEN), jnp.float32)
  down_w = scale * jax.random.normal(ks[5], (HIDDEN, INTERMEDIATE), jnp.float32)
  return {
      "input_ln_w": (jnp.ones((HIDDEN,), DTYPE)
                     + 0.01 * jax.random.normal(ks[0], (HIDDEN,), DTYPE)
                     ).reshape(1, HIDDEN),
      "post_ln_w": (jnp.ones((HIDDEN,), DTYPE)
                    + 0.01 * jax.random.normal(ks[1], (HIDDEN,), DTYPE)
                    ).reshape(1, HIDDEN),
      "qkv_wT": qkv_w.T.astype(WEIGHT_DTYPE),                          # (H, qkv_out)
      "o_w3": o_w.T.reshape(NUM_HEADS, HEAD_DIM, HIDDEN).astype(WEIGHT_DTYPE),
      "gate_up_wT": gate_up_w.T.astype(WEIGHT_DTYPE),                  # (H, 2I)
      "down_wT": down_w.T.astype(WEIGHT_DTYPE),                        # (I, H)
  }


def make_rope(seq_len, dim, theta):
  inv_freq = 1.0 / (theta ** (jnp.arange(0, dim, 2, dtype=jnp.float32) / dim))
  pos = jnp.arange(seq_len, dtype=jnp.float32)
  freqs = pos[:, None] * inv_freq[None, :]                     # (T, D/2)
  return jnp.cos(freqs).astype(DTYPE), jnp.sin(freqs).astype(DTYPE)


if __name__ == "__main__":
  key = jax.random.PRNGKey(0)
  pkey, xkey = jax.random.split(key)
  params = init_params(pkey)

  hidden_states = jax.random.normal(xkey, (SEQ_LEN, HIDDEN), DTYPE)
  residual = None                                              # first layer
  cos, sin = make_rope(SEQ_LEN, HEAD_DIM, ROPE_THETA)
  cu_seqlen_prefill = jnp.array([0, SEQ_LEN], jnp.int32)
  # flat kv cache: (slots, kv_heads*head_dim), lane-dense
  kv_cache = (jnp.zeros((NUM_SLOTS, KV_WIDTH), DTYPE),
              jnp.zeros((NUM_SLOTS, KV_WIDTH), DTYPE))
  block_tables = jnp.zeros((1, 1), jnp.int32)
  slots = jnp.arange(SEQ_LEN, dtype=jnp.int32)
  input_lengths = jnp.array([SEQ_LEN], jnp.int32)
  max_s = SEQ_LEN
  adapter_data = None

  # reference is computed first (the kernel call donates the kv cache buffers)
  ref_mlp, ref_res, (ref_kc, ref_vc) = reference_layer(
      params, hidden_states, residual, cos, sin, slots, kv_cache)

  layer = jax.jit(flash_phi3_layer, donate_argnums=(6,))
  mlp_out, attn_res, (k_cache, v_cache) = layer(
      params, hidden_states, residual, cos, sin, cu_seqlen_prefill,
      kv_cache, block_tables, slots, input_lengths, max_s, adapter_data)

  jax.block_until_ready((mlp_out, attn_res, k_cache, v_cache))
  assert mlp_out.shape == (SEQ_LEN, HIDDEN)
  assert attn_res.shape == (SEQ_LEN, HIDDEN)
  for got, want in ((mlp_out, ref_mlp), (attn_res, ref_res),
                    (k_cache, ref_kc), (v_cache, ref_vc)):
    assert bool(jnp.all(jnp.isfinite(got)))
    assert bool(jnp.allclose(got, want, rtol=2e-2, atol=2e-2)), \
        float(jnp.max(jnp.abs(got - want)))
  print("KERNEL_OK")
</pallas_src>

<mosaic_0001>
module attributes {stable_mosaic.version = 11 : i64} {
  func.func @_qkv_rope_cache_kernel(%arg0: i32, %arg1: memref<32xi32, #tpu.memory_space<smem>>, %arg2: memref<16x128xf32, #tpu.memory_space<vmem>>, %arg3: memref<16x128xf32, #tpu.memory_space<vmem>>, %arg4: memref<1x128xf32, #tpu.memory_space<vmem>>, %arg5: memref<128x256xbf16, #tpu.memory_space<vmem>>, %arg6: memref<16x16xf32, #tpu.memory_space<vmem>>, %arg7: memref<16x16xf32, #tpu.memory_space<vmem>>, %arg8: memref<64x64xf32, #tpu.memory_space<any>>, %arg9: memref<64x64xf32, #tpu.memory_space<any>>, %arg10: memref<16x128xf32, #tpu.memory_space<vmem>>, %arg11: memref<16x128xf32, #tpu.memory_space<vmem>>, %arg12: memref<16x128xf32, #tpu.memory_space<vmem>>, %arg13: memref<64x64xf32, #tpu.memory_space<any>>, %arg14: memref<64x64xf32, #tpu.memory_space<any>>, %arg15: memref<16x64xf32, #tpu.memory_space<vmem>>, %arg16: memref<16x64xf32, #tpu.memory_space<vmem>>, %arg17: memref<2x!tpu.dma_semaphore, #tpu.memory_space<semaphore_mem>>) attributes {dimension_semantics = [#tpu.dimension_semantics<arbitrary>], iteration_bounds = array<i64: 2>, scalar_prefetch = 1 : i64, scratch_operands = 3 : i64, tpu.core_type = #tpu.core_type<tc>, window_params = [{transform_indices = @transform_0, window_bounds = array<i64: 16, 128>}, {transform_indices = @transform_1, window_bounds = array<i64: 16, 128>}, {pipeline_mode = #tpu.pipeline_mode<synchronous>, transform_indices = @transform_2, window_bounds = array<i64: 1, 128>}, {pipeline_mode = #tpu.pipeline_mode<synchronous>, transform_indices = @transform_3, window_bounds = array<i64: 128, 256>}, {transform_indices = @transform_4, window_bounds = array<i64: 16, 16>}, {transform_indices = @transform_5, window_bounds = array<i64: 16, 16>}, {}, {}, {transform_indices = @transform_8, window_bounds = array<i64: 16, 128>}, {transform_indices = @transform_9, window_bounds = array<i64: 16, 128>}, {transform_indices = @transform_10, window_bounds = array<i64: 16, 128>}, {}, {}]} {
    %c0 = arith.constant 0 : index
    %c0_0 = arith.constant 0 : index
    %0 = vector.load %arg2[%c0, %c0_0] : memref<16x128xf32, #tpu.memory_space<vmem>>, vector<16x128xf32>
    %c0_1 = arith.constant 0 : index
    %c0_2 = arith.constant 0 : index
    %1 = vector.load %arg3[%c0_1, %c0_2] : memref<16x128xf32, #tpu.memory_space<vmem>>, vector<16x128xf32>
    %2 = arith.addf %0, %1 : vector<16x128xf32>
    %3 = arith.mulf %2, %2 : vector<16x128xf32>
    %cst = arith.constant dense<0.000000e+00> : vector<16xf32>
    %4 = vector.multi_reduction <add>, %3, %cst [1] : vector<16x128xf32> to vector<16xf32>
    %5 = vector.shape_cast %4 : vector<16xf32> to vector<16x1xf32>
    %cst_3 = arith.constant 1.280000e+02 : f32
    %6 = vector.broadcast %cst_3 : f32 to vector<16x1xf32>
    %7 = arith.divf %5, %6 : vector<16x1xf32>
    %cst_4 = arith.constant 9.99999974E-6 : f32
    %8 = vector.broadcast %cst_4 : f32 to vector<16x1xf32>
    %9 = arith.addf %7, %8 : vector<16x1xf32>
    %10 = math.rsqrt %9 : vector<16x1xf32>
    %11 = vector.broadcast %10 : vector<16x1xf32> to vector<16x128xf32>
    %12 = arith.mulf %2, %11 : vector<16x128xf32>
    %c0_5 = arith.constant 0 : index
    %c0_6 = arith.constant 0 : index
    %13 = vector.load %arg4[%c0_5, %c0_6] : memref<1x128xf32, #tpu.memory_space<vmem>>, vector<1x128xf32>
    %14 = vector.broadcast %13 : vector<1x128xf32> to vector<16x128xf32>
    %15 = arith.mulf %12, %14 : vector<16x128xf32>
    %c0_7 = arith.constant 0 : index
    %c0_8 = arith.constant 0 : index
    %16 = vector.load %arg12[%c0_7, %c0_8] : memref<16x128xf32, #tpu.memory_space<vmem>>, vector<16x128xf32>
    tpu.vector_store %arg12[%c0_7, %c0_8], %2 {strides = array<i32>} : memref<16x128xf32, #tpu.memory_space<vmem>>, vector<16x128xf32>,
    %17 = arith.truncf %15 : vector<16x128xf32> to vector<16x128xbf16>
    %c0_9 = arith.constant 0 : index
    %c0_10 = arith.constant 0 : index
    %18 = vector.load %arg5[%c0_9, %c0_10] : memref<128x256xbf16, #tpu.memory_space<vmem>>, vector<128x256xbf16>
    %cst_11 = arith.constant dense<0.000000e+00> : vector<16x256xf32>
    %19 = tpu.matmul %17, %18, %cst_11 {dimension_numbers = #tpu.dot_dimension_numbers<[1], [0], [0], [1], [0, 0, 1, 1], [], []>} : vector<16x128xbf16>, vector<128x256xbf16>, vector<16x256xf32> -> vector<16x256xf32>
    %20 = vector.extract_strided_slice %19 {offsets = [0, 0], sizes = [16, 128], strides = [1, 1]} : vector<16x256xf32> to vector<16x128xf32>
    %21 = vector.extract_strided_slice %19 {offsets = [0, 128], sizes = [16, 64], strides = [1, 1]} : vector<16x256xf32> to vector<16x64xf32>
    %22 = vector.extract_strided_slice %19 {offsets = [0, 192], sizes = [16, 64], strides = [1, 1]} : vector<16x256xf32> to vector<16x64xf32>
    %c0_12 = arith.constant 0 : index
    %c0_13 = arith.constant 0 : index
    %23 = vector.load %arg6[%c0_12, %c0_13] : memref<16x16xf32, #tpu.memory_space<vmem>>, vector<16x16xf32>
    %c0_14 = arith.constant 0 : index
    %c0_15 = arith.constant 0 : index
    %24 = vector.load %arg6[%c0_14, %c0_15] : memref<16x16xf32, #tpu.memory_space<vmem>>, vector<16x16xf32>
    %25 = tpu.concatenate %23, %24 in 1 : vector<16x16xf32>, vector<16x16xf32> -> vector<16x32xf32>
    %c0_16 = arith.constant 0 : index
    %c0_17 = arith.constant 0 : index
    %26 = vector.load %arg7[%c0_16, %c0_17] : memref<16x16xf32, #tpu.memory_space<vmem>>, vector<16x16xf32>
    %c0_18 = arith.constant 0 : index
    %c0_19 = arith.constant 0 : index
    %27 = vector.load %arg7[%c0_18, %c0_19] : memref<16x16xf32, #tpu.memory_space<vmem>>, vector<16x16xf32>
    %28 = tpu.concatenate %26, %27 in 1 : vector<16x16xf32>, vector<16x16xf32> -> vector<16x32xf32>
    %29 = tpu.concatenate %25, %25, %25, %25 in 1 : vector<16x32xf32>, vector<16x32xf32>, vector<16x32xf32>, vector<16x32xf32> -> vector<16x128xf32>
    %30 = tpu.concatenate %28, %28, %28, %28 in 1 : vector<16x32xf32>, vector<16x32xf32>, vector<16x32xf32>, vector<16x32xf32> -> vector<16x128xf32>
    %31 = tpu.iota {dimensions = array<i32: 1>} : vector<16x128xi32>
    %c32_i32 = arith.constant 32 : i32
    %c0_i32 = arith.constant 0 : i32
    %32 = arith.cmpi eq, %c32_i32, %c0_i32 : i32
    %c1_i32 = arith.constant 1 : i32
    %33 = arith.select %32, %c1_i32, %c32_i32 : i32
    %34 = vector.broadcast %33 : i32 to vector<16x128xi32>
    %35 = arith.remsi %31, %34 : vector<16x128xi32>
    %c0_i32_20 = arith.constant 0 : i32
    %36 = vector.broadcast %c0_i32_20 : i32 to vector<16x128xi32>
    %37 = arith.cmpi ne, %35, %36 : vector<16x128xi32>
    %c0_i32_21 = arith.constant 0 : i32
    %38 = vector.broadcast %c0_i32_21 : i32 to vector<16x128xi32>
    %39 = arith.cmpi slt, %35, %38 : vector<16x128xi32>
    %c0_i32_22 = arith.constant 0 : i32
    %40 = arith.cmpi slt, %33, %c0_i32_22 : i32
    %41 = vector.broadcast %40 : i1 to vector<16x128xi1>
    %42 = vector.broadcast %41 : vector<16x128xi1> to vector<16x128xi1>
    %43 = arith.xori %39, %42 : vector<16x128xi1>
    %44 = arith.andi %43, %37 : vector<16x128xi1>
    %45 = vector.broadcast %33 : i32 to vector<16x128xi32>
    %46 = arith.addi %35, %45 : vector<16x128xi32>
    %47 = arith.select %44, %46, %35 : vector<16x128xi1>, vector<16x128xi32>
    %c16_i32 = arith.constant 16 : i32
    %48 = vector.broadcast %c16_i32 : i32 to vector<16x128xi32>
    %49 = arith.cmpi slt, %47, %48 : vector<16x128xi32>
    %c16_i32_23 = arith.constant 16 : i32
    %50 = tpu.dynamic_rotate %20 by %c16_i32_23 dim 1 : vector<16x128xf32>, i32 -> vector<16x128xf32>
    %c112_i32 = arith.constant 112 : i32
    %51 = tpu.dynamic_rotate %20 by %c112_i32 dim 1 : vector<16x128xf32>, i32 -> vector<16x128xf32>
    %cst_24 = arith.constant 0.000000e+00 : f32
    %52 = vector.broadcast %cst_24 : f32 to vector<16x128xf32>
    %53 = arith.subf %52, %51 : vector<16x128xf32>
    %54 = arith.select %49, %53, %50 : vector<16x128xi1>, vector<16x128xf32>
    %55 = arith.mulf %20, %29 : vector<16x128xf32>
    %56 = arith.mulf %54, %30 : vector<16x128xf32>
    %57 = arith.addf %55, %56 : vector<16x128xf32>
    %58 = tpu.concatenate %25, %25 in 1 : vector<16x32xf32>, vector<16x32xf32> -> vector<16x64xf32>
    %59 = tpu.concatenate %28, %28 in 1 : vector<16x32xf32>, vector<16x32xf32> -> vector<16x64xf32>
    %60 = tpu.iota {dimensions = array<i32: 1>} : vector<16x64xi32>
    %c32_i32_25 = arith.constant 32 : i32
    %c0_i32_26 = arith.constant 0 : i32
    %61 = arith.cmpi eq, %c32_i32_25, %c0_i32_26 : i32
    %c1_i32_27 = arith.constant 1 : i32
    %62 = arith.select %61, %c1_i32_27, %c32_i32_25 : i32
    %63 = vector.broadcast %62 : i32 to vector<16x64xi32>
    %64 = arith.remsi %60, %63 : vector<16x64xi32>
    %c0_i32_28 = arith.constant 0 : i32
    %65 = vector.broadcast %c0_i32_28 : i32 to vector<16x64xi32>
    %66 = arith.cmpi ne, %64, %65 : vector<16x64xi32>
    %c0_i32_29 = arith.constant 0 : i32
    %67 = vector.broadcast %c0_i32_29 : i32 to vector<16x64xi32>
    %68 = arith.cmpi slt, %64, %67 : vector<16x64xi32>
    %c0_i32_30 = arith.constant 0 : i32
    %69 = arith.cmpi slt, %62, %c0_i32_30 : i32
    %70 = vector.broadcast %69 : i1 to vector<16x64xi1>
    %71 = vector.broadcast %70 : vector<16x64xi1> to vector<16x64xi1>
    %72 = arith.xori %68, %71 : vector<16x64xi1>
    %73 = arith.andi %72, %66 : vector<16x64xi1>
    %74 = vector.broadcast %62 : i32 to vector<16x64xi32>
    %75 = arith.addi %64, %74 : vector<16x64xi32>
    %76 = arith.select %73, %75, %64 : vector<16x64xi1>, vector<16x64xi32>
    %c16_i32_31 = arith.constant 16 : i32
    %77 = vector.broadcast %c16_i32_31 : i32 to vector<16x64xi32>
    %78 = arith.cmpi slt, %76, %77 : vector<16x64xi32>
    %c16_i32_32 = arith.constant 16 : i32
    %79 = tpu.dynamic_rotate %21 by %c16_i32_32 dim 1 : vector<16x64xf32>, i32 -> vector<16x64xf32>
    %c48_i32 = arith.constant 48 : i32
    %80 = tpu.dynamic_rotate %21 by %c48_i32 dim 1 : vector<16x64xf32>, i32 -> vector<16x64xf32>
    %cst_33 = arith.constant 0.000000e+00 : f32
    %81 = vector.broadcast %cst_33 : f32 to vector<16x64xf32>
    %82 = arith.subf %81, %80 : vector<16x64xf32>
    %83 = arith.select %78, %82, %79 : vector<16x64xi1>, vector<16x64xf32>
    %84 = arith.mulf %21, %58 : vector<16x64xf32>
    %85 = arith.mulf %83, %59 : vector<16x64xf32>
    %86 = arith.addf %84, %85 : vector<16x64xf32>
    %c0_34 = arith.constant 0 : index
    %c0_35 = arith.constant 0 : index
    %87 = vector.load %arg10[%c0_34, %c0_35] : memref<16x128xf32, #tpu.memory_space<vmem>>, vector<16x128xf32>
    tpu.vector_store %arg10[%c0_34, %c0_35], %57 {strides = array<i32>} : memref<16x128xf32, #tpu.memory_space<vmem>>, vector<16x128xf32>,
    %88 = tpu.concatenate %86, %22 in 1 : vector<16x64xf32>, vector<16x64xf32> -> vector<16x128xf32>
    %c0_36 = arith.constant 0 : index
    %c0_37 = arith.constant 0 : index
    %89 = vector.load %arg11[%c0_36, %c0_37] : memref<16x128xf32, #tpu.memory_space<vmem>>, vector<16x128xf32>
    tpu.vector_store %arg11[%c0_36, %c0_37], %88 {strides = array<i32>} : memref<16x128xf32, #tpu.memory_space<vmem>>, vector<16x128xf32>,
    %c0_38 = arith.constant 0 : index
    %c0_39 = arith.constant 0 : index
    %90 = vector.load %arg15[%c0_38, %c0_39] : memref<16x64xf32, #tpu.memory_space<vmem>>, vector<16x64xf32>
    tpu.vector_store %arg15[%c0_38, %c0_39], %86 {strides = array<i32>} : memref<16x64xf32, #tpu.memory_space<vmem>>, vector<16x64xf32>,
    %c0_40 = arith.constant 0 : index
    %c0_41 = arith.constant 0 : index
    %91 = vector.load %arg16[%c0_40, %c0_41] : memref<16x64xf32, #tpu.memory_space<vmem>>, vector<16x64xf32>
    tpu.vector_store %arg16[%c0_40, %c0_41], %22 {strides = array<i32>} : memref<16x64xf32, #tpu.memory_space<vmem>>, vector<16x64xf32>,
    %c16_i32_42 = arith.constant 16 : i32
    %92 = arith.muli %arg0, %c16_i32_42 : i32
    %c0_i32_43 = arith.constant 0 : i32
    %c16_i32_44 = arith.constant 16 : i32
    %93 = arith.addi %c0_i32_43, %c16_i32_44 : i32
    %c1_i32_45 = arith.constant 1 : i32
    scf.for %arg18 = %c0_i32_43 to %93 step %c1_i32_45  : i32 {
      %94 = arith.addi %92, %arg18 : i32
      %95 = arith.index_cast %94 : i32 to index
      %96 = memref.load %arg1[%95] : memref<32xi32, #tpu.memory_space<smem>>
      %c0_i32_47 = arith.constant 0 : i32
      %c0_i32_48 = arith.constant 0 : i32
      %97 = tpu.memref_slice %arg15[%arg18, %c0_i32_48] : memref<16x64xf32, #tpu.memory_space<vmem>> -> memref<1x64xf32, #tpu.memory_space<vmem>>
      %98 = tpu.memref_squeeze %97 : memref<1x64xf32, #tpu.memory_space<vmem>> -> memref<64xf32, #tpu.memory_space<vmem>>
      %c0_i32_49 = arith.constant 0 : i32
      %99 = tpu.memref_slice %arg13[%96, %c0_i32_49] : memref<64x64xf32, #tpu.memory_space<any>> -> memref<1x64xf32, #tpu.memory_space<any>>
      %100 = tpu.memref_squeeze %99 : memref<1x64xf32, #tpu.memory_space<any>> -> memref<64xf32, #tpu.memory_space<any>>
      %101 = tpu.memref_slice %arg17[%c0_i32_47] : memref<2x!tpu.dma_semaphore, #tpu.memory_space<semaphore_mem>> -> memref<1x!tpu.dma_semaphore, #tpu.memory_space<semaphore_mem>>
      %102 = tpu.memref_squeeze %101 : memref<1x!tpu.dma_semaphore, #tpu.memory_space<semaphore_mem>> -> memref<!tpu.dma_semaphore, #tpu.memory_space<semaphore_mem>>
      tpu.enqueue_dma source(%98 : memref<64xf32, #tpu.memory_space<vmem>>) target(%100 : memref<64xf32, #tpu.memory_space<any>>) target_semaphore(%102 : memref<!tpu.dma_semaphore, #tpu.memory_space<semaphore_mem>>)
      %c1_i32_50 = arith.constant 1 : i32
      %c0_i32_51 = arith.constant 0 : i32
      %103 = tpu.memref_slice %arg16[%arg18, %c0_i32_51] : memref<16x64xf32, #tpu.memory_space<vmem>> -> memref<1x64xf32, #tpu.memory_space<vmem>>
      %104 = tpu.memref_squeeze %103 : memref<1x64xf32, #tpu.memory_space<vmem>> -> memref<64xf32, #tpu.memory_space<vmem>>
      %c0_i32_52 = arith.constant 0 : i32
      %105 = tpu.memref_slice %arg14[%96, %c0_i32_52] : memref<64x64xf32, #tpu.memory_space<any>> -> memref<1x64xf32, #tpu.memory_space<any>>
      %106 = tpu.memref_squeeze %105 : memref<1x64xf32, #tpu.memory_space<any>> -> memref<64xf32, #tpu.memory_space<any>>
      %107 = tpu.memref_slice %arg17[%c1_i32_50] : memref<2x!tpu.dma_semaphore, #tpu.memory_space<semaphore_mem>> -> memref<1x!tpu.dma_semaphore, #tpu.memory_space<semaphore_mem>>
      %108 = tpu.memref_squeeze %107 : memref<1x!tpu.dma_semaphore, #tpu.memory_space<semaphore_mem>> -> memref<!tpu.dma_semaphore, #tpu.memory_space<semaphore_mem>>
      tpu.enqueue_dma source(%104 : memref<64xf32, #tpu.memory_space<vmem>>) target(%106 : memref<64xf32, #tpu.memory_space<any>>) target_semaphore(%108 : memref<!tpu.dma_semaphore, #tpu.memory_space<semaphore_mem>>)
      %c0_i32_53 = arith.constant 0 : i32
      %c0_i32_54 = arith.constant 0 : i32
      %109 = tpu.memref_slice %arg15[%arg18, %c0_i32_54] : memref<16x64xf32, #tpu.memory_space<vmem>> -> memref<1x64xf32, #tpu.memory_space<vmem>>
      %110 = tpu.memref_squeeze %109 : memref<1x64xf32, #tpu.memory_space<vmem>> -> memref<64xf32, #tpu.memory_space<vmem>>
      %c0_i32_55 = arith.constant 0 : i32
      %111 = tpu.memref_slice %arg13[%96, %c0_i32_55] : memref<64x64xf32, #tpu.memory_space<any>> -> memref<1x64xf32, #tpu.memory_space<any>>
      %112 = tpu.memref_squeeze %111 : memref<1x64xf32, #tpu.memory_space<any>> -> memref<64xf32, #tpu.memory_space<any>>
      %113 = tpu.memref_slice %arg17[%c0_i32_53] : memref<2x!tpu.dma_semaphore, #tpu.memory_space<semaphore_mem>> -> memref<1x!tpu.dma_semaphore, #tpu.memory_space<semaphore_mem>>
      %114 = tpu.memref_squeeze %113 : memref<1x!tpu.dma_semaphore, #tpu.memory_space<semaphore_mem>> -> memref<!tpu.dma_semaphore, #tpu.memory_space<semaphore_mem>>
      tpu.wait_dma2 semaphore(%114 : memref<!tpu.dma_semaphore, #tpu.memory_space<semaphore_mem>>) src(%110 : memref<64xf32, #tpu.memory_space<vmem>>) dst(%112 : memref<64xf32, #tpu.memory_space<any>>)
      %c1_i32_56 = arith.constant 1 : i32
      %c0_i32_57 = arith.constant 0 : i32
      %115 = tpu.memref_slice %arg16[%arg18, %c0_i32_57] : memref<16x64xf32, #tpu.memory_space<vmem>> -> memref<1x64xf32, #tpu.memory_space<vmem>>
      %116 = tpu.memref_squeeze %115 : memref<1x64xf32, #tpu.memory_space<vmem>> -> memref<64xf32, #tpu.memory_space<vmem>>
      %c0_i32_58 = arith.constant 0 : i32
      %117 = tpu.memref_slice %arg14[%96, %c0_i32_58] : memref<64x64xf32, #tpu.memory_space<any>> -> memref<1x64xf32, #tpu.memory_space<any>>
      %118 = tpu.memref_squeeze %117 : memref<1x64xf32, #tpu.memory_space<any>> -> memref<64xf32, #tpu.memory_space<any>>
      %119 = tpu.memref_slice %arg17[%c1_i32_56] : memref<2x!tpu.dma_semaphore, #tpu.memory_space<semaphore_mem>> -> memref<1x!tpu.dma_semaphore, #tpu.memory_space<semaphore_mem>>
      %120 = tpu.memref_squeeze %119 : memref<1x!tpu.dma_semaphore, #tpu.memory_space<semaphore_mem>> -> memref<!tpu.dma_semaphore, #tpu.memory_space<semaphore_mem>>
      tpu.wait_dma2 semaphore(%120 : memref<!tpu.dma_semaphore, #tpu.memory_space<semaphore_mem>>) src(%116 : memref<64xf32, #tpu.memory_space<vmem>>) dst(%118 : memref<64xf32, #tpu.memory_space<any>>)
    }
    %c16_i32_46 = arith.constant 16 : i32
    return
  }
  func.func @transform_0(%arg0: i32, %arg1: memref<32xi32, #tpu.memory_space<smem>>) -> (i32, i32) {
    %c0_i32 = arith.constant 0 : i32
    %c0_i32_0 = arith.constant 0 : i32
    return %arg0, %c0_i32 : i32, i32
  }
  func.func @transform_1(%arg0: i32, %arg1: memref<32xi32, #tpu.memory_space<smem>>) -> (i32, i32) {
    %c0_i32 = arith.constant 0 : i32
    %c0_i32_0 = arith.constant 0 : i32
    return %arg0, %c0_i32 : i32, i32
  }
  func.func @transform_2(%arg0: i32, %arg1: memref<32xi32, #tpu.memory_space<smem>>) -> (i32, i32) {
    %c0_i32 = arith.constant 0 : i32
    %c0_i32_0 = arith.constant 0 : i32
    %c0_i32_1 = arith.constant 0 : i32
    return %c0_i32, %c0_i32_0 : i32, i32
  }
  func.func @transform_3(%arg0: i32, %arg1: memref<32xi32, #tpu.memory_space<smem>>) -> (i32, i32) {
    %c0_i32 = arith.constant 0 : i32
    %c0_i32_0 = arith.constant 0 : i32
    %c0_i32_1 = arith.constant 0 : i32
    return %c0_i32, %c0_i32_0 : i32, i32
  }
  func.func @transform_4(%arg0: i32, %arg1: memref<32xi32, #tpu.memory_space<smem>>) -> (i32, i32) {
    %c0_i32 = arith.constant 0 : i32
    %c0_i32_0 = arith.constant 0 : i32
    return %arg0, %c0_i32 : i32, i32
  }
  func.func @transform_5(%arg0: i32, %arg1: memref<32xi32, #tpu.memory_space<smem>>) -> (i32, i32) {
    %c0_i32 = arith.constant 0 : i32
    %c0_i32_0 = arith.constant 0 : i32
    return %arg0, %c0_i32 : i32, i32
  }
  func.func @transform_8(%arg0: i32, %arg1: memref<32xi32, #tpu.memory_space<smem>>) -> (i32, i32) {
    %c0_i32 = arith.constant 0 : i32
    %c0_i32_0 = arith.constant 0 : i32
    return %arg0, %c0_i32 : i32, i32
  }
  func.func @transform_9(%arg0: i32, %arg1: memref<32xi32, #tpu.memory_space<smem>>) -> (i32, i32) {
    %c0_i32 = arith.constant 0 : i32
    %c0_i32_0 = arith.constant 0 : i32
    return %arg0, %c0_i32 : i32, i32
  }
  func.func @transform_10(%arg0: i32, %arg1: memref<32xi32, #tpu.memory_space<smem>>) -> (i32, i32) {
    %c0_i32 = arith.constant 0 : i32
    %c0_i32_0 = arith.constant 0 : i32
    return %arg0, %c0_i32 : i32, i32
  }
}

module attributes {stable_mosaic.version = 11 : i64} {
  func.func @_attn_mlp_kernel(%arg0: i32, %arg1: i32, %arg2: memref<4x16x32xf32, #tpu.memory_space<vmem>>, %arg3: memref<2x16x32xf32, #tpu.memory_space<vmem>>, %arg4: memref<2x16x32xf32, #tpu.memory_space<vmem>>, %arg5: memref<16x128xf32, #tpu.memory_space<vmem>>, %arg6: memref<1x128xf32, #tpu.memory_space<vmem>>, %arg7: memref<4x32x128xbf16, #tpu.memory_space<vmem>>, %arg8: memref<128x512xbf16, #tpu.memory_space<vmem>>, %arg9: memref<256x128xbf16, #tpu.memory_space<vmem>>, %arg10: memref<16x128xf32, #tpu.memory_space<vmem>>, %arg11: memref<16x128xf32, #tpu.memory_space<vmem>>, %arg12: memref<4x16x1xf32, #tpu.memory_space<vmem>>, %arg13: memref<4x16x1xf32, #tpu.memory_space<vmem>>, %arg14: memref<4x16x32xf32, #tpu.memory_space<vmem>>) attributes {dimension_semantics = [#tpu.dimension_semantics<parallel>, #tpu.dimension_semantics<arbitrary>], iteration_bounds = array<i64: 2, 2>, scalar_prefetch = 0 : i64, scratch_operands = 3 : i64, tpu.core_type = #tpu.core_type<tc>, window_params = [{transform_indices = @transform_0, window_bounds = array<i64: 4, 16, 32>}, {transform_indices = @transform_1, window_bounds = array<i64: 2, 16, 32>}, {transform_indices = @transform_2, window_bounds = array<i64: 2, 16, 32>}, {transform_indices = @transform_3, window_bounds = array<i64: 16, 128>}, {pipeline_mode = #tpu.pipeline_mode<synchronous>, transform_indices = @transform_4, window_bounds = array<i64: 1, 128>}, {pipeline_mode = #tpu.pipeline_mode<synchronous>, transform_indices = @transform_5, window_bounds = array<i64: 4, 32, 128>}, {pipeline_mode = #tpu.pipeline_mode<synchronous>, transform_indices = @transform_6, window_bounds = array<i64: 128, 512>}, {pipeline_mode = #tpu.pipeline_mode<synchronous>, transform_indices = @transform_7, window_bounds = array<i64: 256, 128>}, {transform_indices = @transform_8, window_bounds = array<i64: 16, 128>}, {transform_indices = @transform_9, window_bounds = array<i64: 16, 128>}]} {
    %c0_i32 = arith.constant 0 : i32
    %0 = arith.cmpi eq, %arg1, %c0_i32 : i32
    %1 = arith.extui %0 : i1 to i32
    %c0_i32_0 = arith.constant 0 : i32
    %2 = arith.cmpi ne, %1, %c0_i32_0 : i32
    scf.if %2 {
      %cst = arith.constant -1.000000e+30 : f32
      %12 = vector.broadcast %cst : f32 to vector<4x16x1xf32>
      %c0 = arith.constant 0 : index
      %c0_4 = arith.constant 0 : index
      %c0_5 = arith.constant 0 : index
      %13 = vector.load %arg12[%c0, %c0_4, %c0_5] : memref<4x16x1xf32, #tpu.memory_space<vmem>>, vector<4x16x1xf32>
      tpu.vector_store %arg12[%c0, %c0_4, %c0_5], %12 {strides = array<i32>} : memref<4x16x1xf32, #tpu.memory_space<vmem>>, vector<4x16x1xf32>,
      %cst_6 = arith.constant 0.000000e+00 : f32
      %14 = vector.broadcast %cst_6 : f32 to vector<4x16x1xf32>
      %c0_7 = arith.constant 0 : index
      %c0_8 = arith.constant 0 : index
      %c0_9 = arith.constant 0 : index
      %15 = vector.load %arg13[%c0_7, %c0_8, %c0_9] : memref<4x16x1xf32, #tpu.memory_space<vmem>>, vector<4x16x1xf32>
      tpu.vector_store %arg13[%c0_7, %c0_8, %c0_9], %14 {strides = array<i32>} : memref<4x16x1xf32, #tpu.memory_space<vmem>>, vector<4x16x1xf32>,
      %cst_10 = arith.constant 0.000000e+00 : f32
      %16 = vector.broadcast %cst_10 : f32 to vector<4x16x32xf32>
      %c0_11 = arith.constant 0 : index
      %c0_12 = arith.constant 0 : index
      %c0_13 = arith.constant 0 : index
      %17 = vector.load %arg14[%c0_11, %c0_12, %c0_13] : memref<4x16x32xf32, #tpu.memory_space<vmem>>, vector<4x16x32xf32>
      tpu.vector_store %arg14[%c0_11, %c0_12, %c0_13], %16 {strides = array<i32>} : memref<4x16x32xf32, #tpu.memory_space<vmem>>, vector<4x16x32xf32>,
    } else {
    }
    %c16_i32 = arith.constant 16 : i32
    %3 = arith.muli %arg1, %c16_i32 : i32
    %c16_i32_1 = arith.constant 16 : i32
    %4 = arith.muli %arg0, %c16_i32_1 : i32
    %c15_i32 = arith.constant 15 : i32
    %5 = arith.addi %4, %c15_i32 : i32
    %6 = arith.cmpi sle, %3, %5 : i32
    %7 = arith.extui %6 : i1 to i32
    %c0_i32_2 = arith.constant 0 : i32
    %8 = arith.cmpi ne, %7, %c0_i32_2 : i32
    scf.if %8 {
      %c0 = arith.constant 0 : index
      %c0_4 = arith.constant 0 : index
      %c0_5 = arith.constant 0 : index
      %12 = vector.load %arg2[%c0, %c0_4, %c0_5] : memref<4x16x32xf32, #tpu.memory_space<vmem>>, vector<4x16x32xf32>
      %13 = arith.truncf %12 : vector<4x16x32xf32> to vector<4x16x32xbf16>
      %c0_6 = arith.constant 0 : index
      %c0_7 = arith.constant 0 : index
      %c0_8 = arith.constant 0 : index
      %14 = vector.load %arg3[%c0_6, %c0_7, %c0_8] : memref<2x16x32xf32, #tpu.memory_space<vmem>>, vector<2x16x32xf32>
      %15 = vector.shape_cast %14 : vector<2x16x32xf32> to vector<2x1x16x32xf32>
      %16 = vector.broadcast %15 : vector<2x1x16x32xf32> to vector<2x2x16x32xf32>
      %17 = vector.shape_cast %16 : vector<2x2x16x32xf32> to vector<4x16x32xf32>
      %18 = arith.truncf %17 : vector<4x16x32xf32> to vector<4x16x32xbf16>
      %c0_9 = arith.constant 0 : index
      %c0_10 = arith.constant 0 : index
      %c0_11 = arith.constant 0 : index
      %19 = vector.load %arg4[%c0_9, %c0_10, %c0_11] : memref<2x16x32xf32, #tpu.memory_space<vmem>>, vector<2x16x32xf32>
      %20 = vector.shape_cast %19 : vector<2x16x32xf32> to vector<2x1x16x32xf32>
      %21 = vector.broadcast %20 : vector<2x1x16x32xf32> to vector<2x2x16x32xf32>
      %22 = vector.shape_cast %21 : vector<2x2x16x32xf32> to vector<4x16x32xf32>
      %23 = arith.truncf %22 : vector<4x16x32xf32> to vector<4x16x32xbf16>
      %cst = arith.constant dense<0.000000e+00> : vector<4x16x16xf32>
      %24 = tpu.matmul %13, %18, %cst {dimension_numbers = #tpu.dot_dimension_numbers<[2], [2], [1], [1], [0, 0, 0, 1, 1, 1], [0], [0]>} : vector<4x16x32xbf16>, vector<4x16x32xbf16>, vector<4x16x16xf32> -> vector<4x16x16xf32>
      %cst_12 = arith.constant 0.176776692 : f32
      %25 = vector.broadcast %cst_12 : f32 to vector<4x16x16xf32>
      %26 = arith.mulf %24, %25 : vector<4x16x16xf32>
      %c16_i32_13 = arith.constant 16 : i32
      %27 = arith.muli %arg0, %c16_i32_13 : i32
      %28 = tpu.iota {dimensions = array<i32: 0>} : vector<16x16xi32>
      %29 = vector.broadcast %27 : i32 to vector<16x16xi32>
      %30 = arith.addi %29, %28 : vector<16x16xi32>
      %c16_i32_14 = arith.constant 16 : i32
      %31 = arith.muli %arg1, %c16_i32_14 : i32
      %32 = tpu.iota {dimensions = array<i32: 1>} : vector<16x16xi32>
      %33 = vector.broadcast %31 : i32 to vector<16x16xi32>
      %34 = arith.addi %33, %32 : vector<16x16xi32>
      %35 = arith.cmpi sle, %34, %30 : vector<16x16xi32>
      %36 = vector.shape_cast %35 : vector<16x16xi1> to vector<1x16x16xi1>
      %cst_15 = arith.constant -1.000000e+30 : f32
      %37 = vector.shape_cast %36 : vector<1x16x16xi1> to vector<1x16x16xi1>
      %38 = vector.broadcast %37 : vector<1x16x16xi1> to vector<4x16x16xi1>
      %39 = vector.broadcast %cst_15 : f32 to vector<4x16x16xf32>
      %40 = arith.select %38, %26, %39 : vector<4x16x16xi1>, vector<4x16x16xf32>
      %c0_16 = arith.constant 0 : index
      %c0_17 = arith.constant 0 : index
      %c0_18 = arith.constant 0 : index
      %41 = vector.load %arg12[%c0_16, %c0_17, %c0_18] : memref<4x16x1xf32, #tpu.memory_space<vmem>>, vector<4x16x1xf32>
      %cst_19 = arith.constant dense<0xFF800000> : vector<4x16xf32>
      %42 = vector.multi_reduction <maximumf>, %40, %cst_19 [2] : vector<4x16x16xf32> to vector<4x16xf32>
      %43 = vector.shape_cast %42 : vector<4x16xf32> to vector<4x16x1xf32>
      %44 = arith.maximumf %41, %43 : vector<4x16x1xf32>
      %45 = arith.subf %41, %44 : vector<4x16x1xf32>
      %46 = math.exp %45 : vector<4x16x1xf32>
      %47 = vector.broadcast %44 : vector<4x16x1xf32> to vector<4x16x16xf32>
      %48 = arith.subf %40, %47 : vector<4x16x16xf32>
      %49 = math.exp %48 : vector<4x16x16xf32>
      %c0_20 = arith.constant 0 : index
      %c0_21 = arith.constant 0 : index
      %c0_22 = arith.constant 0 : index
      %50 = vector.load %arg13[%c0_20, %c0_21, %c0_22] : memref<4x16x1xf32, #tpu.memory_space<vmem>>, vector<4x16x1xf32>
      %51 = arith.mulf %46, %50 : vector<4x16x1xf32>
      %cst_23 = arith.constant dense<0.000000e+00> : vector<4x16xf32>
      %52 = vector.multi_reduction <add>, %49, %cst_23 [2] : vector<4x16x16xf32> to vector<4x16xf32>
      %53 = vector.shape_cast %52 : vector<4x16xf32> to vector<4x16x1xf32>
      %54 = arith.addf %51, %53 : vector<4x16x1xf32>
      %c0_24 = arith.constant 0 : index
      %c0_25 = arith.constant 0 : index
      %c0_26 = arith.constant 0 : index
      %55 = vector.load %arg13[%c0_24, %c0_25, %c0_26] : memref<4x16x1xf32, #tpu.memory_space<vmem>>, vector<4x16x1xf32>
      tpu.vector_store %arg13[%c0_24, %c0_25, %c0_26], %54 {strides = array<i32>} : memref<4x16x1xf32, #tpu.memory_space<vmem>>, vector<4x16x1xf32>,
      %56 = arith.truncf %49 : vector<4x16x16xf32> to vector<4x16x16xbf16>
      %cst_27 = arith.constant dense<0.000000e+00> : vector<4x16x32xf32>
      %57 = tpu.matmul %56, %23, %cst_27 {dimension_numbers = #tpu.dot_dimension_numbers<[2], [1], [1], [2], [0, 0, 0, 1, 1, 2], [0], [0]>} : vector<4x16x16xbf16>, vector<4x16x32xbf16>, vector<4x16x32xf32> -> vector<4x16x32xf32>
      %c0_28 = arith.constant 0 : index
      %c0_29 = arith.constant 0 : index
      %c0_30 = arith.constant 0 : index
      %58 = vector.load %arg14[%c0_28, %c0_29, %c0_30] : memref<4x16x32xf32, #tpu.memory_space<vmem>>, vector<4x16x32xf32>
      %59 = vector.broadcast %46 : vector<4x16x1xf32> to vector<4x16x32xf32>
      %60 = arith.mulf %59, %58 : vector<4x16x32xf32>
      %61 = arith.addf %60, %57 : vector<4x16x32xf32>
      %c0_31 = arith.constant 0 : index
      %c0_32 = arith.constant 0 : index
      %c0_33 = arith.constant 0 : index
      %62 = vector.load %arg14[%c0_31, %c0_32, %c0_33] : memref<4x16x32xf32, #tpu.memory_space<vmem>>, vector<4x16x32xf32>
      tpu.vector_store %arg14[%c0_31, %c0_32, %c0_33], %61 {strides = array<i32>} : memref<4x16x32xf32, #tpu.memory_space<vmem>>, vector<4x16x32xf32>,
      %c0_34 = arith.constant 0 : index
      %c0_35 = arith.constant 0 : index
      %c0_36 = arith.constant 0 : index
      %63 = vector.load %arg12[%c0_34, %c0_35, %c0_36] : memref<4x16x1xf32, #tpu.memory_space<vmem>>, vector<4x16x1xf32>
      tpu.vector_store %arg12[%c0_34, %c0_35, %c0_36], %44 {strides = array<i32>} : memref<4x16x1xf32, #tpu.memory_space<vmem>>, vector<4x16x1xf32>,
    } else {
    }
    %c1_i32 = arith.constant 1 : i32
    %9 = arith.cmpi eq, %arg1, %c1_i32 : i32
    %10 = arith.extui %9 : i1 to i32
    %c0_i32_3 = arith.constant 0 : i32
    %11 = arith.cmpi ne, %10, %c0_i32_3 : i32
    scf.if %11 {
      %c0 = arith.constant 0 : index
      %c0_4 = arith.constant 0 : index
      %c0_5 = arith.constant 0 : index
      %12 = vector.load %arg14[%c0, %c0_4, %c0_5] : memref<4x16x32xf32, #tpu.memory_space<vmem>>, vector<4x16x32xf32>
      %c0_6 = arith.constant 0 : index
      %c0_7 = arith.constant 0 : index
      %c0_8 = arith.constant 0 : index
      %13 = vector.load %arg13[%c0_6, %c0_7, %c0_8] : memref<4x16x1xf32, #tpu.memory_space<vmem>>, vector<4x16x1xf32>
      %14 = vector.broadcast %13 : vector<4x16x1xf32> to vector<4x16x32xf32>
      %15 = arith.divf %12, %14 : vector<4x16x32xf32>
      %16 = arith.truncf %15 : vector<4x16x32xf32> to vector<4x16x32xbf16>
      %c0_9 = arith.constant 0 : index
      %c0_10 = arith.constant 0 : index
      %c0_11 = arith.constant 0 : index
      %17 = vector.load %arg7[%c0_9, %c0_10, %c0_11] : memref<4x32x128xbf16, #tpu.memory_space<vmem>>, vector<4x32x128xbf16>
      %cst = arith.constant dense<0.000000e+00> : vector<4x16x128xf32>
      %18 = tpu.matmul %16, %17, %cst {dimension_numbers = #tpu.dot_dimension_numbers<[2], [1], [1], [2], [0, 0, 0, 1, 1, 2], [0], [0]>} : vector<4x16x32xbf16>, vector<4x32x128xbf16>, vector<4x16x128xf32> -> vector<4x16x128xf32>
      %cst_12 = arith.constant dense<0.000000e+00> : vector<16x128xf32>
      %19 = vector.multi_reduction <add>, %18, %cst_12 [0] : vector<4x16x128xf32> to vector<16x128xf32>
      %c0_13 = arith.constant 0 : index
      %c0_14 = arith.constant 0 : index
      %20 = vector.load %arg5[%c0_13, %c0_14] : memref<16x128xf32, #tpu.memory_space<vmem>>, vector<16x128xf32>
      %21 = arith.addf %19, %20 : vector<16x128xf32>
      %c0_15 = arith.constant 0 : index
      %c0_16 = arith.constant 0 : index
      %22 = vector.load %arg11[%c0_15, %c0_16] : memref<16x128xf32, #tpu.memory_space<vmem>>, vector<16x128xf32>
      tpu.vector_store %arg11[%c0_15, %c0_16], %21 {strides = array<i32>} : memref<16x128xf32, #tpu.memory_space<vmem>>, vector<16x128xf32>,
      %23 = arith.mulf %21, %21 : vector<16x128xf32>
      %cst_17 = arith.constant dense<0.000000e+00> : vector<16xf32>
      %24 = vector.multi_reduction <add>, %23, %cst_17 [1] : vector<16x128xf32> to vector<16xf32>
      %25 = vector.shape_cast %24 : vector<16xf32> to vector<16x1xf32>
      %cst_18 = arith.constant 1.280000e+02 : f32
      %26 = vector.broadcast %cst_18 : f32 to vector<16x1xf32>
      %27 = arith.divf %25, %26 : vector<16x1xf32>
      %cst_19 = arith.constant 9.99999974E-6 : f32
      %28 = vector.broadcast %cst_19 : f32 to vector<16x1xf32>
      %29 = arith.addf %27, %28 : vector<16x1xf32>
      %30 = math.rsqrt %29 : vector<16x1xf32>
      %31 = vector.broadcast %30 : vector<16x1xf32> to vector<16x128xf32>
      %32 = arith.mulf %21, %31 : vector<16x128xf32>
      %c0_20 = arith.constant 0 : index
      %c0_21 = arith.constant 0 : index
      %33 = vector.load %arg6[%c0_20, %c0_21] : memref<1x128xf32, #tpu.memory_space<vmem>>, vector<1x128xf32>
      %34 = vector.broadcast %33 : vector<1x128xf32> to vector<16x128xf32>
      %35 = arith.mulf %32, %34 : vector<16x128xf32>
      %36 = arith.truncf %35 : vector<16x128xf32> to vector<16x128xbf16>
      %c0_22 = arith.constant 0 : index
      %c0_23 = arith.constant 0 : index
      %37 = vector.load %arg8[%c0_22, %c0_23] : memref<128x512xbf16, #tpu.memory_space<vmem>>, vector<128x512xbf16>
      %cst_24 = arith.constant dense<0.000000e+00> : vector<16x512xf32>
      %38 = tpu.matmul %36, %37, %cst_24 {dimension_numbers = #tpu.dot_dimension_numbers<[1], [0], [0], [1], [0, 0, 1, 1], [], []>} : vector<16x128xbf16>, vector<128x512xbf16>, vector<16x512xf32> -> vector<16x512xf32>
      %39 = vector.extract_strided_slice %38 {offsets = [0, 0], sizes = [16, 256], strides = [1, 1]} : vector<16x512xf32> to vector<16x256xf32>
      %40 = vector.extract_strided_slice %38 {offsets = [0, 256], sizes = [16, 256], strides = [1, 1]} : vector<16x512xf32> to vector<16x256xf32>
      %41 = arith.negf %39 : vector<16x256xf32>
      %42 = math.exp %41 : vector<16x256xf32>
      %cst_25 = arith.constant 1.000000e+00 : f32
      %43 = vector.broadcast %cst_25 : f32 to vector<16x256xf32>
      %44 = arith.addf %43, %42 : vector<16x256xf32>
      %45 = arith.divf %43, %44 : vector<16x256xf32>
      %46 = arith.mulf %39, %45 : vector<16x256xf32>
      %47 = arith.mulf %46, %40 : vector<16x256xf32>
      %48 = arith.truncf %47 : vector<16x256xf32> to vector<16x256xbf16>
      %c0_26 = arith.constant 0 : index
      %c0_27 = arith.constant 0 : index
      %49 = vector.load %arg9[%c0_26, %c0_27] : memref<256x128xbf16, #tpu.memory_space<vmem>>, vector<256x128xbf16>
      %cst_28 = arith.constant dense<0.000000e+00> : vector<16x128xf32>
      %50 = tpu.matmul %48, %49, %cst_28 {dimension_numbers = #tpu.dot_dimension_numbers<[1], [0], [0], [1], [0, 0, 1, 1], [], []>} : vector<16x256xbf16>, vector<256x128xbf16>, vector<16x128xf32> -> vector<16x128xf32>
      %c0_29 = arith.constant 0 : index
      %c0_30 = arith.constant 0 : index
      %51 = vector.load %arg10[%c0_29, %c0_30] : memref<16x128xf32, #tpu.memory_space<vmem>>, vector<16x128xf32>
      tpu.vector_store %arg10[%c0_29, %c0_30], %50 {strides = array<i32>} : memref<16x128xf32, #tpu.memory_space<vmem>>, vector<16x128xf32>,
    } else {
    }
    return
  }
  func.func @transform_0(%arg0: i32, %arg1: i32) -> (i32, i32, i32) {
    %c0_i32 = arith.constant 0 : i32
    %c0_i32_0 = arith.constant 0 : i32
    %c0_i32_1 = arith.constant 0 : i32
    return %c0_i32, %arg0, %c0_i32_0 : i32, i32, i32
  }
  func.func @transform_1(%arg0: i32, %arg1: i32) -> (i32, i32, i32) {
    %c0_i32 = arith.constant 0 : i32
    %c0_i32_0 = arith.constant 0 : i32
    %c0_i32_1 = arith.constant 0 : i32
    return %c0_i32, %arg1, %c0_i32_0 : i32, i32, i32
  }
  func.func @transform_2(%arg0: i32, %arg1: i32) -> (i32, i32, i32) {
    %c0_i32 = arith.constant 0 : i32
    %c0_i32_0 = arith.constant 0 : i32
    %c0_i32_1 = arith.constant 0 : i32
    return %c0_i32, %arg1, %c0_i32_0 : i32, i32, i32
  }
  func.func @transform_3(%arg0: i32, %arg1: i32) -> (i32, i32) {
    %c0_i32 = arith.constant 0 : i32
    %c0_i32_0 = arith.constant 0 : i32
    return %arg0, %c0_i32 : i32, i32
  }
  func.func @transform_4(%arg0: i32, %arg1: i32) -> (i32, i32) {
    %c0_i32 = arith.constant 0 : i32
    %c0_i32_0 = arith.constant 0 : i32
    %c0_i32_1 = arith.constant 0 : i32
    return %c0_i32, %c0_i32_0 : i32, i32
  }
  func.func @transform_5(%arg0: i32, %arg1: i32) -> (i32, i32, i32) {
    %c0_i32 = arith.constant 0 : i32
    %c0_i32_0 = arith.constant 0 : i32
    %c0_i32_1 = arith.constant 0 : i32
    %c0_i32_2 = arith.constant 0 : i32
    return %c0_i32, %c0_i32_0, %c0_i32_1 : i32, i32, i32
  }
  func.func @transform_6(%arg0: i32, %arg1: i32) -> (i32, i32) {
    %c0_i32 = arith.constant 0 : i32
    %c0_i32_0 = arith.constant 0 : i32
    %c0_i32_1 = arith.constant 0 : i32
    return %c0_i32, %c0_i32_0 : i32, i32
  }
  func.func @transform_7(%arg0: i32, %arg1: i32) -> (i32, i32) {
    %c0_i32 = arith.constant 0 : i32
    %c0_i32_0 = arith.constant 0 : i32
    %c0_i32_1 = arith.constant 0 : i32
    return %c0_i32, %c0_i32_0 : i32, i32
  }
  func.func @transform_8(%arg0: i32, %arg1: i32) -> (i32, i32) {
    %c0_i32 = arith.constant 0 : i32
    %c0_i32_0 = arith.constant 0 : i32
    return %arg0, %c0_i32 : i32, i32
  }
  func.func @transform_9(%arg0: i32, %arg1: i32) -> (i32, i32) {
    %c0_i32 = arith.constant 0 : i32
    %c0_i32_0 = arith.constant 0 : i32
    return %arg0, %c0_i32 : i32, i32
  }
}

</mosaic_0001>

<llo_original>
// kernel: flash_phi3_layer.2
$region0: #{flash_phi3_layer.2}
  #allocation0 [shape = 'u32[]', space=smem, size = 0x4, offset = 0x4, fixed_abs, tag = 'smem constant byte address 0x4 - core index']
  #allocation1 [shape = 'u32[144,128]{1,0:T(1,128)}', space=vmem, size = 0x12000, scoped, tag = 'internal scratch']
  #allocation2 [shape = 'f32[16,64]{1,0:T(8,128)}', space=vmem, size = 0x2000, scoped, tag = 'scratch operand']
  #allocation3 [shape = 'f32[16,64]{1,0:T(8,128)}', space=vmem, size = 0x2000, scoped, tag = 'scratch operand']
  #allocation4 [shape = 's32[2]{0}', space=sflag, size = 0x8, scoped, tag = 'scratch operand']
  #allocation5 [shape = 's32[1]{0}', space=sflag, size = 0x4, scoped, tag = 'scoped memory for flash_phi3_layer.2']
  #allocation6 [shape = 'u8[512]{0}', space=smem, size = 0x200, scoped, tag = 'prefetched SMEM operand 0']
  #allocation21 [shape = 's32[]', space=sflag, size = 0x4, offset = 0, fixed_abs, tag = 'sflag constant byte address 0x0 - dummy sync flag']
  #allocation22 [shape = 's32[]', space=sflag, size = 0x4, offset = 0, fixed_abs, tag = 'sflag constant byte address 0x0 - dummy sync flag']
  #allocation23 [shape = 'u32[]', space=smem, size = 0x4, offset = 0x44, fixed_abs, tag = 'smem constant byte address 0x44 - assertion arg 0']
  #allocation24 [shape = 'u32[]', space=smem, size = 0x4, offset = 0x48, fixed_abs, tag = 'smem constant byte address 0x48 - assertion arg 1']
  #allocation25 [shape = 's32[]', space=sflag, size = 0x4, offset = 0, fixed_abs, tag = 'sflag constant byte address 0x0 - dummy sync flag']
  #allocation26 [shape = 's32[]', space=sflag, size = 0x4, offset = 0, fixed_abs, tag = 'sflag constant byte address 0x0 - dummy sync flag']
  %s0 = inlined_call_operand.hbm [shape: s32[32], index: 0, kind: input, shape index: {}]
  %s1 = inlined_call_operand.hbm [shape: f32[32,128], index: 1, kind: input, shape index: {}]
  %s2 = inlined_call_operand.hbm [shape: f32[32,128], index: 2, kind: input, shape index: {}]
  %s3 = inlined_call_operand.hbm [shape: f32[1,128], index: 3, kind: input, shape index: {}]
  %s4 = inlined_call_operand.hbm [shape: bf16[128,256], index: 4, kind: input, shape index: {}]
  %s5 = inlined_call_operand.hbm [shape: f32[32,16], index: 5, kind: input, shape index: {}]
  %s6 = inlined_call_operand.hbm [shape: f32[32,16], index: 6, kind: input, shape index: {}]
  %s7 = inlined_call_operand.hbm [shape: f32[64,64], index: 7, kind: input, shape index: {}, may-alias: {7,12}]
  %s8 = inlined_call_operand.hbm [shape: f32[64,64], index: 8, kind: input, shape index: {}, may-alias: {8,13}]
  %s9 = inlined_call_operand.hbm [shape: f32[32,128], index: 9, kind: output, shape index: {0}]
  %s10 = inlined_call_operand.hbm [shape: f32[32,128], index: 10, kind: output, shape index: {1}]
  %s11 = inlined_call_operand.hbm [shape: f32[32,128], index: 11, kind: output, shape index: {2}]
  %s12 = inlined_call_operand.hbm [shape: f32[64,64], index: 12, kind: output, shape index: {3}, may-alias: {7,12}]
  %s13 = inlined_call_operand.hbm [shape: f32[64,64], index: 13, kind: output, shape index: {4}, may-alias: {8,13}]
  %14 = xla_tuple %s9, %s10, %s11, %s12, %s13
  %s15 = sld [smem:[#allocation0]]
  $region112: #{flash_phi3_layer.2} parent=0
    _
  %s17 = ssub.s32 1, %s15
  %s18 = scalar_select 0, %s17, %s15
  %20 = dma.hbm_to_smem %s0, 16, [#allocation6], [#allocation5]
  %21 = dma.done [#allocation5], 16
  %22 = sfence
  $region1: #{flash_phi3_layer.2} parent=0
    #allocation7 [shape = 'u8[16384]{0}', space=vmem, size = 0x4000, scoped, tag = 'input window, operand 1']
    #allocation8 [shape = 's32[2]{0}', space=sflag, size = 0x8, scoped, tag = 'scoped memory for flash_phi3_layer.2']
    #allocation9 [shape = 's32[2]{0}', space=sflag, size = 0x8, scoped, tag = 'scoped memory for flash_phi3_layer.2']
    #allocation10 [shape = 'u8[16384]{0}', space=vmem, size = 0x4000, scoped, tag = 'input window, operand 2']
    #allocation11 [shape = 's32[2]{0}', space=sflag, size = 0x8, scoped, tag = 'scoped memory for flash_phi3_layer.2']
    #allocation12 [shape = 'u8[512]{0}', space=vmem, size = 0x400, scoped, tag = 'input window, operand 3, single buffered']
    #allocation13 [shape = 'u8[65536]{0}', space=vmem, size = 0x10000, scoped, tag = 'input window, operand 4, single buffered']
    #allocation14 [shape = 's32[1]{0}', space=sflag, size = 0x4, scoped, tag = 'scoped memory for flash_phi3_layer.2']
    #allocation15 [shape = 'u8[16384]{0}', space=vmem, size = 0x4000, scoped, tag = 'input window, operand 5']
    #allocation16 [shape = 'u8[16384]{0}', space=vmem, size = 0x4000, scoped, tag = 'input window, operand 6']
    #allocation17 [shape = 'u8[16384]{0}', space=vmem, size = 0x4000, scoped, tag = 'output window, operand 0']
    #allocation18 [shape = 'u8[16384]{0}', space=vmem, size = 0x4000, scoped, tag = 'output window, operand 1']
    #allocation19 [shape = 's32[2]{0}', space=sflag, size = 0x8, scoped, tag = 'scoped memory for flash_phi3_layer.2']
    #allocation20 [shape = 'u8[16384]{0}', space=vmem, size = 0x4000, scoped, tag = 'output window, operand 2']
    %23 = vsyncpa [#allocation8], 0
    %s24 = scalar_lea.sflag [#allocation8], 1
    %25 = vsyncpa %s24, 0
    %26 = vsyncpa [#allocation11], 0
    %s27 = scalar_lea.sflag [#allocation11], 1
    %28 = vsyncpa %s27, 0
    %29 = vsyncpa [#allocation14], 0
    %30 = vsyncpa [#allocation9], 0
    %s31 = scalar_lea.sflag [#allocation9], 1
    %32 = vsyncpa %s31, 0
    %33 = vsyncpa [#allocation19], 0
    %s34 = scalar_lea.sflag [#allocation19], 1
    %35 = vsyncpa %s34, 0
    loop: start=0, step=1, limit=4
    $region2: #{flash_phi3_layer.2} parent=1 // loop_pre_header
      _
    $region3: #{flash_phi3_layer.2} parent=1 // loop_header
      %s37 = sphi 0, %s41
      %p38 = scmp.ge.s32.totalorder %s37, 4
      %s47 = sphi 0, %s49
      %s50 = sphi 0, %s47
      %s51 = sphi 0, %s50
      %s67 = sphi 0, %s51
      %s73 = sphi 0, %s75
      %s76 = sphi 0, %s73
      %s77 = sphi 0, %s76
      %s93 = sphi 0, %s77
      %s97 = sphi 0, %s97
      %s99 = sphi 0, %s97
      %s100 = sphi 0, %s99
      %s114 = sphi 0, %s100
      %s118 = sphi 0, %s118
      %s120 = sphi 0, %s118
      %s121 = sphi 0, %s120
      %s135 = sphi 0, %s121
      %s141 = sphi 0, %s143
      %s144 = sphi 0, %s141
      %s145 = sphi 0, %s144
      %s161 = sphi 0, %s145
      %s167 = sphi 0, %s169
      %s170 = sphi 0, %s167
      %s171 = sphi 0, %s170
      %s187 = sphi 0, %s171
      %s193 = sphi 0, %s195
      %s196 = sphi 0, %s193
      %s197 = sphi 0, %s196
      %s213 = sphi 0, %s197
      %s219 = sphi 0, %s221
      %s222 = sphi 0, %s219
      %s223 = sphi 0, %s222
      %s239 = sphi 0, %s223
      %s245 = sphi 0, %s247
      %s248 = sphi 0, %s245
      %s249 = sphi 0, %s248
      %s265 = sphi 0, %s249
    $region4: #{flash_phi3_layer.2} parent=1 // loop_header_branch
      %40 = sbr.rel (%p38) target = $region8
    $region5: #{flash_phi3_layer.2} parent=1 // loop_body
      %s42 = ssub.s32 %s37, 1
      %s43 = ssub.s32 %s37, 2
      %s44 = sadd.s32 %s37, 1
      %s45 = ssub.s32 %s37, %s44
      %p46 = scmp.eq.s32.totalorder %s45, 0
      %s48 = sadd.s32 %s47, 1
      %s49 = scalar_select %p46, %s47, %s48
      %p52 = pneg %p46
      %p53 = scmp.eq.s32.totalorder %s37, 1
      %p54 = por %p52, %p53
      %p55 = scmp.ne.s32.totalorder %s47, %s50
      %p56 = scmp.eq.s32.totalorder %s37, 0
      %p57 = por %p55, %p56
      %p58 = scmp.ne.s32.totalorder %s47, %s50
      %p59 = scmp.eq.s32.totalorder %s42, 1
      %p60 = por %p58, %p59
      %p61 = scmp.ne.s32.totalorder %s50, %s51
      %p62 = scmp.eq.s32.totalorder %s42, 0
      %p63 = por %p61, %p62
      %p64 = scmp.ne.s32.totalorder %s50, %s51
      %p65 = scmp.eq.s32.totalorder %s43, 1
      %p66 = por %p64, %p65
      %p68 = scmp.ne.s32.totalorder %s51, %s67
      %p69 = scmp.eq.s32.totalorder %s43, 0
      %p70 = por %p68, %p69
      %s71 = ssub.s32 %s37, %s44
      %p72 = scmp.eq.s32.totalorder %s71, 0
      %s74 = sadd.s32 %s73, 1
      %s75 = scalar_select %p72, %s73, %s74
      %p78 = pneg %p72
      %p79 = scmp.eq.s32.totalorder %s37, 1
      %p80 = por %p78, %p79
      %p81 = scmp.ne.s32.totalorder %s73, %s76
      %p82 = scmp.eq.s32.totalorder %s37, 0
      %p83 = por %p81, %p82
      %p84 = scmp.ne.s32.totalorder %s73, %s76
      %p85 = scmp.eq.s32.totalorder %s42, 1
      %p86 = por %p84, %p85
      %p87 = scmp.ne.s32.totalorder %s76, %s77
      %p88 = scmp.eq.s32.totalorder %s42, 0
      %p89 = por %p87, %p88
      %p90 = scmp.ne.s32.totalorder %s76, %s77
      %p91 = scmp.eq.s32.totalorder %s43, 1
      %p92 = por %p90, %p91
      %p94 = scmp.ne.s32.totalorder %s77, %s93
      %p95 = scmp.eq.s32.totalorder %s43, 0
      %p96 = por %p94, %p95
      %s98 = sadd.s32 %s97, 1
      %p101 = scmp.eq.s32.totalorder %s37, 1
      %p102 = scmp.ne.s32.totalorder %s97, %s99
      %p103 = scmp.eq.s32.totalorder %s37, 0
      %p104 = por %p102, %p103
      %p105 = scmp.ne.s32.totalorder %s97, %s99
      %p106 = scmp.eq.s32.totalorder %s42, 1
      %p107 = por %p105, %p106
      %p108 = scmp.ne.s32.totalorder %s99, %s100
      %p109 = scmp.eq.s32.totalorder %s42, 0
      %p110 = por %p108, %p109
      %p111 = scmp.ne.s32.totalorder %s99, %s100
      %p112 = scmp.eq.s32.totalorder %s43, 1
      %p113 = por %p111, %p112
      %p115 = scmp.ne.s32.totalorder %s100, %s114
      %p116 = scmp.eq.s32.totalorder %s43, 0
      %p117 = por %p115, %p116
      %s119 = sadd.s32 %s118, 1
      %p122 = scmp.eq.s32.totalorder %s37, 1
      %p123 = scmp.ne.s32.totalorder %s118, %s120
      %p124 = scmp.eq.s32.totalorder %s37, 0
      %p125 = por %p123, %p124
      %p126 = scmp.ne.s32.totalorder %s118, %s120
      %p127 = scmp.eq.s32.totalorder %s42, 1
      %p128 = por %p126, %p127
      %p129 = scmp.ne.s32.totalorder %s120, %s121
      %p130 = scmp.eq.s32.totalorder %s42, 0
      %p131 = por %p129, %p130
      %p132 = scmp.ne.s32.totalorder %s120, %s121
      %p133 = scmp.eq.s32.totalorder %s43, 1
      %p134 = por %p132, %p133
      %p136 = scmp.ne.s32.totalorder %s121, %s135
      %p137 = scmp.eq.s32.totalorder %s43, 0
      %p138 = por %p136, %p137
      %s139 = ssub.s32 %s37, %s44
      %p140 = scmp.eq.s32.totalorder %s139, 0
      %s142 = sadd.s32 %s141, 1
      %s143 = scalar_select %p140, %s141, %s142
      %p146 = pneg %p140
      %p147 = scmp.eq.s32.totalorder %s37, 1
      %p148 = por %p146, %p147
      %p149 = scmp.ne.s32.totalorder %s141, %s144
      %p150 = scmp.eq.s32.totalorder %s37, 0
      %p151 = por %p149, %p150
      %p152 = scmp.ne.s32.totalorder %s141, %s144
      %p153 = scmp.eq.s32.totalorder %s42, 1
      %p154 = por %p152, %p153
      %p155 = scmp.ne.s32.totalorder %s144, %s145
      %p156 = scmp.eq.s32.totalorder %s42, 0
      %p157 = por %p155, %p156
      %p158 = scmp.ne.s32.totalorder %s144, %s145
      %p159 = scmp.eq.s32.totalorder %s43, 1
      %p160 = por %p158, %p159
      %p162 = scmp.ne.s32.totalorder %s145, %s161
      %p163 = scmp.eq.s32.totalorder %s43, 0
      %p164 = por %p162, %p163
      %s165 = ssub.s32 %s37, %s44
      %p166 = scmp.eq.s32.totalorder %s165, 0
      %s168 = sadd.s32 %s167, 1
      %s169 = scalar_select %p166, %s167, %s168
      %p172 = pneg %p166
      %p173 = scmp.eq.s32.totalorder %s37, 1
      %p174 = por %p172, %p173
      %p175 = scmp.ne.s32.totalorder %s167, %s170
      %p176 = scmp.eq.s32.totalorder %s37, 0
      %p177 = por %p175, %p176
      %p178 = scmp.ne.s32.totalorder %s167, %s170
      %p179 = scmp.eq.s32.totalorder %s42, 1
      %p180 = por %p178, %p179
      %p181 = scmp.ne.s32.totalorder %s170, %s171
      %p182 = scmp.eq.s32.totalorder %s42, 0
      %p183 = por %p181, %p182
      %p184 = scmp.ne.s32.totalorder %s170, %s171
      %p185 = scmp.eq.s32.totalorder %s43, 1
      %p186 = por %p184, %p185
      %p188 = scmp.ne.s32.totalorder %s171, %s187
      %p189 = scmp.eq.s32.totalorder %s43, 0
      %p190 = por %p188, %p189
      %s191 = ssub.s32 %s37, %s44
      %p192 = scmp.eq.s32.totalorder %s191, 0
      %s194 = sadd.s32 %s193, 1
      %s195 = scalar_select %p192, %s193, %s194
      %p198 = pneg %p192
      %p199 = scmp.eq.s32.totalorder %s37, 1
      %p200 = por %p198, %p199
      %p201 = scmp.ne.s32.totalorder %s193, %s196
      %p202 = scmp.eq.s32.totalorder %s37, 0
      %p203 = por %p201, %p202
      %p204 = scmp.ne.s32.totalorder %s193, %s196
      %p205 = scmp.eq.s32.totalorder %s42, 1
      %p206 = por %p204, %p205
      %p207 = scmp.ne.s32.totalorder %s196, %s197
      %p208 = scmp.eq.s32.totalorder %s42, 0
      %p209 = por %p207, %p208
      %p210 = scmp.ne.s32.totalorder %s196, %s197
      %p211 = scmp.eq.s32.totalorder %s43, 1
      %p212 = por %p210, %p211
      %p214 = scmp.ne.s32.totalorder %s197, %s213
      %p215 = scmp.eq.s32.totalorder %s43, 0
      %p216 = por %p214, %p215
      %s217 = ssub.s32 %s37, %s44
      %p218 = scmp.eq.s32.totalorder %s217, 0
      %s220 = sadd.s32 %s219, 1
      %s221 = scalar_select %p218, %s219, %s220
      %p224 = pneg %p218
      %p225 = scmp.eq.s32.totalorder %s37, 1
      %p226 = por %p224, %p225
      %p227 = scmp.ne.s32.totalorder %s219, %s222
      %p228 = scmp.eq.s32.totalorder %s37, 0
      %p229 = por %p227, %p228
      %p230 = scmp.ne.s32.totalorder %s219, %s222
      %p231 = scmp.eq.s32.totalorder %s42, 1
      %p232 = por %p230, %p231
      %p233 = scmp.ne.s32.totalorder %s222, %s223
      %p234 = scmp.eq.s32.totalorder %s42, 0
      %p235 = por %p233, %p234
      %p236 = scmp.ne.s32.totalorder %s222, %s223
      %p237 = scmp.eq.s32.totalorder %s43, 1
      %p238 = por %p236, %p237
      %p240 = scmp.ne.s32.totalorder %s223, %s239
      %p241 = scmp.eq.s32.totalorder %s43, 0
      %p242 = por %p240, %p241
      %s243 = ssub.s32 %s37, %s44
      %p244 = scmp.eq.s32.totalorder %s243, 0
      %s246 = sadd.s32 %s245, 1
      %s247 = scalar_select %p244, %s245, %s246
      %p250 = pneg %p244
      %p251 = scmp.eq.s32.totalorder %s37, 1
      %p252 = por %p250, %p251
      %p253 = scmp.ne.s32.totalorder %s245, %s248
      %p254 = scmp.eq.s32.totalorder %s37, 0
      %p255 = por %p253, %p254
      %p256 = scmp.ne.s32.totalorder %s245, %s248
      %p257 = scmp.eq.s32.totalorder %s42, 1
      %p258 = por %p256, %p257
      %p259 = scmp.ne.s32.totalorder %s248, %s249
      %p260 = scmp.eq.s32.totalorder %s42, 0
      %p261 = por %p259, %p260
      %p262 = scmp.ne.s32.totalorder %s248, %s249
      %p263 = scmp.eq.s32.totalorder %s43, 1
      %p264 = por %p262, %p263
      %p266 = scmp.ne.s32.totalorder %s249, %s265
      %p267 = scmp.eq.s32.totalorder %s43, 0
      %p268 = por %p266, %p267
      %p269 = scmp.le.s32.totalorder 1, %s37
      %p270 = scmp.lt.s32.totalorder %s37, 3
      %p271 = pnand %p269, %p270
      %p272 = pneg %p271
      // Predicated region
      $region9: #{flash_phi3_layer.2} parent=5 // pred_check
        _
      $region10: #{flash_phi3_layer.2} parent=5 // pred_check_branch
        %274 = sbr.rel (%p271) target = $region12
      $region11: #{flash_phi3_layer.2} parent=5 // pred_region
        %s275 = ssub.s32 %s37, 1
        // Predicated region
        $region13: #{flash_phi3_layer.2} parent=11 // pred_check
          %p276 = pneg %p110
        $region14: #{flash_phi3_layer.2} parent=11 // pred_check_branch
          %278 = sbr.rel (%p276) target = $region16
        $region15: #{flash_phi3_layer.2} parent=11 // pred_region
          %s280 = ssub.s32 16, 16
          %281 = vsyncadd [#allocation11], %s280
          %s283 = sshll.u32 [#allocation12], 4
          %s284 = int_to_ptr.vmem [resolvable:$true] %s283
          %286 = dma.hbm_to_vmem [thread:$0]  %s3, 16, %s284, [#allocation11]
        $region16: #{flash_phi3_layer.2} parent=11 // pred_fallthru
          _
        // Predicated region
        $region17: #{flash_phi3_layer.2} parent=11 // pred_check
          %p287 = pneg %p131
        $region18: #{flash_phi3_layer.2} parent=11 // pred_check_branch
          %289 = sbr.rel (%p287) target = $region20
        $region19: #{flash_phi3_layer.2} parent=11 // pred_region
          %s291 = ssub.s32 2048, 2048
          %292 = vsyncadd [#allocation14], %s291
          %s293 = sshll.u32 [#allocation13], 4
          %s294 = int_to_ptr.vmem [resolvable:$true] %s293
          %299 = dma.hbm_to_vmem [thread:$0]  %s4, 2048, %s294, [#allocation14], 128, 128, 8
        $region20: #{flash_phi3_layer.2} parent=11 // pred_fallthru
          _
      $region12: #{flash_phi3_layer.2} parent=5 // pred_fallthru
        _
      %p300 = scmp.lt.s32.totalorder %s37, 2
      // Predicated region
      $region21: #{flash_phi3_layer.2} parent=5 // pred_check
        %p301 = pneg %p300
      $region22: #{flash_phi3_layer.2} parent=5 // pred_check_branch
        %303 = sbr.rel (%p301) target = $region24
      $region23: #{flash_phi3_layer.2} parent=5 // pred_region
        // Predicated region
        $region25: #{flash_phi3_layer.2} parent=23 // pred_check
          %p304 = pneg %p57
        $region26: #{flash_phi3_layer.2} parent=23 // pred_check_branch
          %306 = sbr.rel (%p304) target = $region28
        $region27: #{flash_phi3_layer.2} parent=23 // pred_region
          %s307 = sand.u32 %s37, 1
          %s308 = scalar_lea.sflag [#allocation8], %s307
          %s309 = sand.u32 %s47, 1
          %s310 = smul.addr %s309, 16
          %s311 = scalar_lea.vmem [#allocation7], %s310
          %s312 = smul.u32 2, %s37
          %s314 = ssub.s32 256, 256
          %315 = vsyncadd %s308, %s314
          %s316 = smul.addr %s312, 128
          %s317 = scalar_lea.hbm %s1, %s316
          %s318 = sshll.u32 %s311, 4
          %s319 = int_to_ptr.vmem [resolvable:$true] %s318
          %324 = dma.hbm_to_vmem [thread:$0]  %s317, 256, %s319, %s308, 128, 128, 8
        $region28: #{flash_phi3_layer.2} parent=23 // pred_fallthru
          _
        // Predicated region
        $region29: #{flash_phi3_layer.2} parent=23 // pred_check
          %p325 = pneg %p83
        $region30: #{flash_phi3_layer.2} parent=23 // pred_check_branch
          %327 = sbr.rel (%p325) target = $region32
        $region31: #{flash_phi3_layer.2} parent=23 // pred_region
          %s328 = sand.u32 %s37, 1
          %s329 = scalar_lea.sflag [#allocation11], %s328
          %s330 = sand.u32 %s73, 1
          %s331 = smul.addr %s330, 16
          %s332 = scalar_lea.vmem [#allocation10], %s331
          %s333 = smul.u32 2, %s37
          %s335 = ssub.s32 256, 256
          %336 = vsyncadd %s329, %s335
          %s337 = smul.addr %s333, 128
          %s338 = scalar_lea.hbm %s2, %s337
          %s339 = sshll.u32 %s332, 4
          %s340 = int_to_ptr.vmem [resolvable:$true] %s339
          %345 = dma.hbm_to_vmem [thread:$0]  %s338, 256, %s340, %s329, 128, 128, 8
        $region32: #{flash_phi3_layer.2} parent=23 // pred_fallthru
          _
        // Predicated region
        $region33: #{flash_phi3_layer.2} parent=23 // pred_check
          %p346 = pneg %p151
        $region34: #{flash_phi3_layer.2} parent=23 // pred_check_branch
          %348 = sbr.rel (%p346) target = $region36
        $region35: #{flash_phi3_layer.2} parent=23 // pred_region
          %s349 = sand.u32 %s37, 1
          %s350 = scalar_lea.sflag [#allocation8], %s349
          %s351 = sand.u32 %s141, 1
          %s352 = smul.addr %s351, 16
          %s353 = scalar_lea.vmem [#allocation15], %s352
          %s354 = smul.u32 2, %s37
          %s356 = ssub.s32 256, 256
          %357 = vsyncadd %s350, %s356
          %s358 = smul.addr %s354, 128
          %s359 = scalar_lea.hbm %s5, %s358
          %s360 = sshll.u32 %s353, 4
          %s361 = int_to_ptr.vmem [resolvable:$true] %s360
          %366 = dma.hbm_to_vmem [thread:$0]  %s359, 256, %s361, %s350, 128, 128, 8
        $region36: #{flash_phi3_layer.2} parent=23 // pred_fallthru
          _
        // Predicated region
        $region37: #{flash_phi3_layer.2} parent=23 // pred_check
          %p367 = pneg %p177
        $region38: #{flash_phi3_layer.2} parent=23 // pred_check_branch
          %369 = sbr.rel (%p367) target = $region40
        $region39: #{flash_phi3_layer.2} parent=23 // pred_region
          %s370 = sand.u32 %s37, 1
          %s371 = scalar_lea.sflag [#allocation11], %s370
          %s372 = sand.u32 %s167, 1
          %s373 = smul.addr %s372, 16
          %s374 = scalar_lea.vmem [#allocation16], %s373
          %s375 = smul.u32 2, %s37
          %s377 = ssub.s32 256, 256
          %378 = vsyncadd %s371, %s377
          %s379 = smul.addr %s375, 128
          %s380 = scalar_lea.hbm %s6, %s379
          %s381 = sshll.u32 %s374, 4
          %s382 = int_to_ptr.vmem [resolvable:$true] %s381
          %387 = dma.hbm_to_vmem [thread:$0]  %s380, 256, %s382, %s371, 128, 128, 8
        $region40: #{flash_phi3_layer.2} parent=23 // pred_fallthru
          _
      $region24: #{flash_phi3_layer.2} parent=5 // pred_fallthru
        _
      %p388 = scmp.le.s32.totalorder 1, %s37
      %p389 = scmp.lt.s32.totalorder %s37, 3
      %p390 = pnand %p388, %p389
      %p391 = pneg %p390
      // Predicated region
      $region41: #{flash_phi3_layer.2} parent=5 // pred_check
        _
      $region42: #{flash_phi3_layer.2} parent=5 // pred_check_branch
        %393 = sbr.rel (%p390) target = $region44
      $region43: #{flash_phi3_layer.2} parent=5 // pred_region
        %s394 = ssub.s32 %s37, 1
        %s395 = sand.u32 %s42, 1
        %s396 = scalar_lea.sflag [#allocation8], %s395
        %s397 = sand.u32 %s50, 1
        %s398 = smul.addr %s397, 16
        %s399 = scalar_lea.vmem [#allocation7], %s398
        // Predicated region
        $region45: #{flash_phi3_layer.2} parent=43 // pred_check
          %p400 = pneg %p63
        $region46: #{flash_phi3_layer.2} parent=43 // pred_check_branch
          %402 = sbr.rel (%p400) target = $region48
        $region47: #{flash_phi3_layer.2} parent=43 // pred_region
          %403 = dma.done %s396, 256
        $region48: #{flash_phi3_layer.2} parent=43 // pred_fallthru
          _
        %s404 = sand.u32 %s42, 1
        %s405 = scalar_lea.sflag [#allocation11], %s404
        %s406 = sand.u32 %s76, 1
        %s407 = smul.addr %s406, 16
        %s408 = scalar_lea.vmem [#allocation10], %s407
        // Predicated region
        $region49: #{flash_phi3_layer.2} parent=43 // pred_check
          %p409 = pneg %p89
        $region50: #{flash_phi3_layer.2} parent=43 // pred_check_branch
          %411 = sbr.rel (%p409) target = $region52
        $region51: #{flash_phi3_layer.2} parent=43 // pred_region
          %412 = dma.done %s405, 256
        $region52: #{flash_phi3_layer.2} parent=43 // pred_fallthru
          _
        // Predicated region
        $region53: #{flash_phi3_layer.2} parent=43 // pred_check
          %p413 = pneg %p110
        $region54: #{flash_phi3_layer.2} parent=43 // pred_check_branch
          %415 = sbr.rel (%p413) target = $region56
        $region55: #{flash_phi3_layer.2} parent=43 // pred_region
          %416 = dma.done [#allocation11], 16
        $region56: #{flash_phi3_layer.2} parent=43 // pred_fallthru
          _
        // Predicated region
        $region57: #{flash_phi3_layer.2} parent=43 // pred_check
          %p417 = pneg %p131
        $region58: #{flash_phi3_layer.2} parent=43 // pred_check_branch
          %419 = sbr.rel (%p417) target = $region60
        $region59: #{flash_phi3_layer.2} parent=43 // pred_region
          %420 = dma.done [#allocation14], 2048
        $region60: #{flash_phi3_layer.2} parent=43 // pred_fallthru
          _
        %s421 = sand.u32 %s42, 1
        %s422 = scalar_lea.sflag [#allocation8], %s421
        %s423 = sand.u32 %s144, 1
        %s424 = smul.addr %s423, 16
        %s425 = scalar_lea.vmem [#allocation15], %s424
        // Predicated region
        $region61: #{flash_phi3_layer.2} parent=43 // pred_check
          %p426 = pneg %p157
        $region62: #{flash_phi3_layer.2} parent=43 // pred_check_branch
          %428 = sbr.rel (%p426) target = $region64
        $region63: #{flash_phi3_layer.2} parent=43 // pred_region
          %429 = dma.done %s422, 256
        $region64: #{flash_phi3_layer.2} parent=43 // pred_fallthru
          _
        %s430 = sand.u32 %s42, 1
        %s431 = scalar_lea.sflag [#allocation11], %s430
        %s432 = sand.u32 %s170, 1
        %s433 = smul.addr %s432, 16
        %s434 = scalar_lea.vmem [#allocation16], %s433
        // Predicated region
        $region65: #{flash_phi3_layer.2} parent=43 // pred_check
          %p435 = pneg %p183
        $region66: #{flash_phi3_layer.2} parent=43 // pred_check_branch
          %437 = sbr.rel (%p435) target = $region68
        $region67: #{flash_phi3_layer.2} parent=43 // pred_region
          %438 = dma.done %s431, 256
        $region68: #{flash_phi3_layer.2} parent=43 // pred_fallthru
          _
        %s439 = sand.u32 %s42, 1
        %s440 = scalar_lea.sflag [#allocation8], %s439
        %s441 = sand.u32 %s50, 1
        %s442 = smul.addr %s441, 16
        %s443 = scalar_lea.vmem [#allocation7], %s442
        %p444 = pneg %p63
        %p445 = pneg %p60
        %s446 = sand.u32 %s42, 1
        %s447 = scalar_lea.sflag [#allocation11], %s446
        %s448 = sand.u32 %s76, 1
        %s449 = smul.addr %s448, 16
        %s450 = scalar_lea.vmem [#allocation10], %s449
        %p451 = pneg %p89
        %p452 = pneg %p86
        %p453 = pneg %p110
        %p454 = pneg %p107
        %p455 = pneg %p131
        %p456 = pneg %p128
        %s457 = sand.u32 %s42, 1
        %s458 = scalar_lea.sflag [#allocation8], %s457
        %s459 = sand.u32 %s144, 1
        %s460 = smul.addr %s459, 16
        %s461 = scalar_lea.vmem [#allocation15], %s460
        %p462 = pneg %p157
        %p463 = pneg %p154
        %s464 = sand.u32 %s42, 1
        %s465 = scalar_lea.sflag [#allocation11], %s464
        %s466 = sand.u32 %s170, 1
        %s467 = smul.addr %s466, 16
        %s468 = scalar_lea.vmem [#allocation16], %s467
        %p469 = pneg %p183
        %p470 = pneg %p180
        %p471 = pneg %p209
        %p472 = pneg %p206
        %s473 = sand.u32 %s196, 1
        %s474 = scalar_lea.sflag [#allocation9], %s473
        %s475 = sand.u32 %s196, 1
        %s476 = smul.addr %s475, 16
        %s477 = scalar_lea.vmem [#allocation17], %s476
        %p478 = pneg %p235
        %p479 = pneg %p232
        %s480 = sand.u32 %s42, 1
        %s481 = scalar_lea.sflag [#allocation19], %s480
        %s482 = sand.u32 %s222, 1
        %s483 = smul.addr %s482, 16
        %s484 = scalar_lea.vmem [#allocation18], %s483
        %p485 = pneg %p261
        %p486 = pneg %p258
        %s487 = sand.u32 %s42, 1
        %s488 = scalar_lea.sflag [#allocation19], %s487
        %s489 = sand.u32 %s248, 1
        %s490 = smul.addr %s489, 16
        %s491 = scalar_lea.vmem [#allocation20], %s490
        %s492 = smul.u32 2, %s42
        %s493 = smul.u32 2, %s42
        %s494 = smul.u32 2, %s42
        %s495 = smul.u32 2, %s42
        %s496 = smul.u32 2, %s42
        %s497 = smul.u32 2, %s42
        %s498 = smul.u32 2, %s42
        %v500 = vld [vmem:[%s399] sm:$0xff]
        %v501 = vld [vmem:[%s399 + $0x8] sm:$0xff]
        %v502 = vld [vmem:[%s408] sm:$0xff]
        %v503 = vld [vmem:[%s408 + $0x8] sm:$0xff]
        %v504 = vadd.f32 %v500, %v502
        %v505 = vadd.f32 %v501, %v503
        %v506 = vmul.f32 %v504, %v504
        %v507 = vmul.f32 %v505, %v505
        %508 = vadd.xlane.f32.xlu0 %v506
        %v509 = vpop.xlane.xlu0 %508
        %510 = vadd.xlane.f32.xlu0 %v507
        %v511 = vpop.xlane.xlu0 %510
        %v512 = vrcp.pop 128.0
        %v513 = vmul.f32 %v509, %v512
        %v514 = vmul.f32 %v511, %v512
        %v515 = vadd.f32 %v513, 1e-05
        %v516 = vadd.f32 %v514, 1e-05
        %v517 = vrsqrt.pop %v515
        %v518 = vrsqrt.pop %v516
        %v519 = vmul.f32 %v504, %v517
        %v520 = vmul.f32 %v505, %v518
        %v521 = vld [vmem:[#allocation12] sm:$0x1]
        %v523 = vlaneseq
        %v524 = vshrl.u32 %v523, 7
        %v525 = vsub.s32 0, %v524
        %v526 = vrot.slane %v521, %v525
        %v528 = vmul.f32 %v519, %v526
        %v529 = vmul.f32 %v520, %v526
        %530 = vst [vmem:[%s491] sm:$0xff] %v504
        %531 = vst [vmem:[%s491 + $0x8] sm:$0xff] %v505
        %v532 = vpack.c.bf16 %v529, %v528
        %v533 = vld [vmem:[#allocation13] sm:$0xff]
        %v534 = vld [vmem:[#allocation13 + $0x8] sm:$0xff]
        %v535 = vld [vmem:[#allocation13 + $0x10] sm:$0xff]
        %v536 = vld [vmem:[#allocation13 + $0x18] sm:$0xff]
        %v537 = vld [vmem:[#allocation13 + $0x20] sm:$0xff]
        %v538 = vld [vmem:[#allocation13 + $0x28] sm:$0xff]
        %v539 = vld [vmem:[#allocation13 + $0x30] sm:$0xff]
        %v540 = vld [vmem:[#allocation13 + $0x38] sm:$0xff]
        %v541 = vld [vmem:[#allocation13 + $0x40] sm:$0xff]
        %v542 = vld [vmem:[#allocation13 + $0x48] sm:$0xff]
        %v543 = vld [vmem:[#allocation13 + $0x50] sm:$0xff]
        %v544 = vld [vmem:[#allocation13 + $0x58] sm:$0xff]
        %v545 = vld [vmem:[#allocation13 + $0x60] sm:$0xff]
        %v546 = vld [vmem:[#allocation13 + $0x68] sm:$0xff]
        %v547 = vld [vmem:[#allocation13 + $0x70] sm:$0xff]
        %v548 = vld [vmem:[#allocation13 + $0x78] sm:$0xff]
        %v565 = vunpack.c.l.b16 %v533
        %v566 = vunpack.c.h.b16 %v533
        %v567 = vunpack.c.l.b16 %v534
        %v568 = vunpack.c.h.b16 %v534
        %v569 = vunpack.c.l.b16 %v535
        %v570 = vunpack.c.h.b16 %v535
        %v571 = vunpack.c.l.b16 %v536
        %v572 = vunpack.c.h.b16 %v536
        %v573 = vunpack.c.l.b16 %v537
        %v574 = vunpack.c.h.b16 %v537
        %v575 = vunpack.c.l.b16 %v538
        %v576 = vunpack.c.h.b16 %v538
        %v577 = vunpack.c.l.b16 %v539
        %v578 = vunpack.c.h.b16 %v539
        %v579 = vunpack.c.l.b16 %v540
        %v580 = vunpack.c.h.b16 %v540
        %v581 = vunpack.c.l.b16 %v541
        %v582 = vunpack.c.h.b16 %v541
        %v583 = vunpack.c.l.b16 %v542
        %v584 = vunpack.c.h.b16 %v542
        %v585 = vunpack.c.l.b16 %v543
        %v586 = vunpack.c.h.b16 %v543
        %v587 = vunpack.c.l.b16 %v544
        %v588 = vunpack.c.h.b16 %v544
        %v589 = vunpack.c.l.b16 %v545
        %v590 = vunpack.c.h.b16 %v545
        %v591 = vunpack.c.l.b16 %v546
        %v592 = vunpack.c.h.b16 %v546
        %v593 = vunpack.c.l.b16 %v547
        %v594 = vunpack.c.h.b16 %v547
        %v595 = vunpack.c.l.b16 %v548
        %v596 = vunpack.c.h.b16 %v548
        %v597 = vpack.c.b16 %v567, %v565
        %v598 = vpack.c.b16 %v568, %v566
        %v599 = vpack.c.b16 %v571, %v569
        %v600 = vpack.c.b16 %v572, %v570
        %v601 = vpack.c.b16 %v575, %v573
        %v602 = vpack.c.b16 %v576, %v574
        %v603 = vpack.c.b16 %v579, %v577
        %v604 = vpack.c.b16 %v580, %v578
        %v605 = vpack.c.b16 %v583, %v581
        %v606 = vpack.c.b16 %v584, %v582
        %v607 = vpack.c.b16 %v587, %v585
        %v608 = vpack.c.b16 %v588, %v586
        %v609 = vpack.c.b16 %v591, %v589
        %v610 = vpack.c.b16 %v592, %v590
        %v611 = vpack.c.b16 %v595, %v593
        %v612 = vpack.c.b16 %v596, %v594
        %629 = vmatprep.subr.bf16.mxu0 %v598
        %630 = vmatpush1.bf16.msra.mxu0 %v597
        %631 = vmatprep.subr.bf16.mxu0 %v600
        %632 = vmatpush1.bf16.msra.mxu0 %v599
        %633 = vmatprep.subr.bf16.mxu0 %v602
        %634 = vmatpush1.bf16.msra.mxu0 %v601
        %635 = vmatprep.subr.bf16.mxu0 %v604
        %636 = vmatpush1.bf16.msra.mxu0 %v603
        %637 = vmatprep.subr.bf16.mxu0 %v606
        %638 = vmatpush1.bf16.msra.mxu0 %v605
        %639 = vmatprep.subr.bf16.mxu0 %v608
        %640 = vmatpush1.bf16.msra.mxu0 %v607
        %641 = vmatprep.subr.bf16.mxu0 %v610
        %642 = vmatpush1.bf16.msra.mxu0 %v609
        %643 = vmatprep.subr.bf16.mxu0 %v612
        %644 = vmatpush1.bf16.msra.mxu0 %v611
        %645 = vmatprep.subr.bf16.mxu0 0
        %646 = vmatpush1.bf16.msra.mxu0 0
        %647 = vmatprep.subr.bf16.mxu0 0
        %648 = vmatpush1.bf16.msra.mxu0 0
        %649 = vmatprep.subr.bf16.mxu0 0
        %650 = vmatpush1.bf16.msra.mxu0 0
        %651 = vmatprep.subr.bf16.mxu0 0
        %652 = vmatpush1.bf16.msra.mxu0 0
        %653 = vmatprep.subr.bf16.mxu0 0
        %654 = vmatpush1.bf16.msra.mxu0 0
        %655 = vmatprep.subr.bf16.mxu0 0
        %656 = vmatpush1.bf16.msra.mxu0 0
        %657 = vmatprep.subr.bf16.mxu0 0
        %658 = vmatpush1.bf16.msra.mxu0 0
        %659 = vmatprep.subr.bf16.mxu0 0
        %660 = vmatpush1.bf16.msra.mxu0 0
        %661 = vmatprep.mubr.bf16.mxu0 0
        %662 = vmatmul.mubr.bf16.gmra.mrb[0].mxu0 %v532
        %v663 = vpop.f32.mrb[0].mxu0
        %v664 = vadd.f32 0.0, %v663
        %v665 = vpop.f32.mrb[0].mxu0
        %v666 = vadd.f32 0.0, %v665
        %v667 = vpop.f32.mrb[0].mxu0
        %v668 = vadd.f32 0.0, %v667
        %v669 = vpop.f32.mrb[0].mxu0
        %v670 = vadd.f32 0.0, %v669
        %671 = vdwg.mxu0
        %v672 = vld [vmem:[%s425] sm:$0xff]
        %v673 = vld [vmem:[%s425 + $0x8] sm:$0xff]
        %676 = vrot.lane.b32.xlu0 %v672, 16
        %v677 = vpop.permute.xlu0 %676
        %678 = vrot.lane.b32.xlu0 %v673, 16
        %v679 = vpop.permute.xlu0 %678
        %vm682 = vcmask 130048
        %v683 = vsel %vm682, %v672, %v677
        %v684 = vsel %vm682, %v673, %v679
        %v685 = vld [vmem:[%s434] sm:$0xff]
        %v686 = vld [vmem:[%s434 + $0x8] sm:$0xff]
        %689 = vrot.lane.b32.xlu0 %v685, 16
        %v690 = vpop.permute.xlu0 %689
        %691 = vrot.lane.b32.xlu0 %v686, 16
        %v692 = vpop.permute.xlu0 %691
        %v695 = vsel %vm682, %v685, %v690
        %v696 = vsel %vm682, %v686, %v692
        %699 = vrot.lane.b32.xlu0 %v683, 32
        %v700 = vpop.permute.xlu0 %699
        %701 = vrot.lane.b32.xlu0 %v684, 32
        %v702 = vpop.permute.xlu0 %701
        %705 = vrot.lane.b32.xlu0 %v683, 64
        %v706 = vpop.permute.xlu0 %705
        %707 = vrot.lane.b32.xlu0 %v684, 64
        %v708 = vpop.permute.xlu0 %707
        %711 = vrot.lane.b32.xlu0 %v683, 96
        %v712 = vpop.permute.xlu0 %711
        %713 = vrot.lane.b32.xlu0 %v684, 96
        %v714 = vpop.permute.xlu0 %713
        %vm717 = vcmask 261120
        %v718 = vsel %vm717, %v683, %v700
        %v719 = vsel %vm717, %v684, %v702
        %vm720 = vcmask 523264
        %v721 = vsel %vm720, %v718, %v706
        %v722 = vsel %vm720, %v719, %v708
        %vm723 = vcmask 785408
        %v724 = vsel %vm723, %v721, %v712
        %v725 = vsel %vm723, %v722, %v714
        %728 = vrot.lane.b32.xlu0 %v695, 32
        %v729 = vpop.permute.xlu0 %728
        %730 = vrot.lane.b32.xlu0 %v696, 32
        %v731 = vpop.permute.xlu0 %730
        %734 = vrot.lane.b32.xlu0 %v695, 64
        %v735 = vpop.permute.xlu0 %734
        %736 = vrot.lane.b32.xlu0 %v696, 64
        %v737 = vpop.permute.xlu0 %736
        %740 = vrot.lane.b32.xlu0 %v695, 96
        %v741 = vpop.permute.xlu0 %740
        %742 = vrot.lane.b32.xlu0 %v696, 96
        %v743 = vpop.permute.xlu0 %742
        %v746 = vsel %vm717, %v695, %v729
        %v747 = vsel %vm717, %v696, %v731
        %v748 = vsel %vm720, %v746, %v735
        %v749 = vsel %vm720, %v747, %v737
        %v750 = vsel %vm723, %v748, %v741
        %v751 = vsel %vm723, %v749, %v743
        %v752 = vlaneseq
        %v753 = vand.u32 %v752, 127
        %vm754 = vcmp.lt.s32.totalorder %v753, 0
        %v755 = vsub.s32 0, %v753
        %v756 = vsel %vm754, %v755, %v753
        %v757 = vshrl.u32 %v756, 5
        %v758 = vand.u32 %v756, 31
        %v759 = vsub.s32 0, %v758
        %v760 = vsel %vm754, %v759, %v758
        %vm761 = vcmp.ne.s32.totalorder %v760, 0
        %vm762 = vcmp.lt.s32.totalorder %v760, 0
        %vm763 = vmand %vm762, %vm761
        %v764 = vadd.s32 %v760, 32
        %v765 = vsel %vm763, %v764, %v760
        %vm766 = vcmp.lt.s32.totalorder %v765, 16
        %767 = vrot.lane.b32.xlu0 %v664, 16
        %v768 = vpop.permute.xlu0 %767
        %769 = vrot.lane.b32.xlu0 %v668, 16
        %v770 = vpop.permute.xlu0 %769
        %771 = vrot.lane.b32.xlu0 %v664, 112
        %v772 = vpop.permute.xlu0 %771
        %773 = vrot.lane.b32.xlu0 %v668, 112
        %v774 = vpop.permute.xlu0 %773
        %v775 = vsub.f32 0.0, %v772
        %v776 = vsub.f32 0.0, %v774
        %v777 = vsel %vm766, %v775, %v768
        %v778 = vsel %vm766, %v776, %v770
        %v779 = vmul.f32 %v664, %v724
        %v780 = vmul.f32 %v668, %v725
        %v781 = vmul.f32 %v777, %v750
        %v782 = vmul.f32 %v778, %v751
        %v783 = vadd.f32 %v779, %v781
        %v784 = vadd.f32 %v780, %v782
        %vm785 = vcmask 1048064
        %786 = vrot.lane.b32.xlu0 %v666, 64
        %v787 = vpop.permute.xlu0 %786
        %v788 = vsel %vm785, %v787, %v666
        %789 = vrot.lane.b32.xlu0 %v670, 64
        %v790 = vpop.permute.xlu0 %789
        %v791 = vsel %vm785, %v790, %v670
        %792 = vrot.lane.b32.xlu0 %v788, 64
        %v793 = vpop.permute.xlu0 %792
        %794 = vrot.lane.b32.xlu0 %v791, 64
        %v795 = vpop.permute.xlu0 %794
        %v796 = vsel %vm785, %v793, %v666
        %v797 = vsel %vm785, %v795, %v670
        %v798 = vsub.f32 0.0, %v796
        %v799 = vsub.f32 0.0, %v797
        %802 = vrot.lane.b32.xlu0 %v798, 112
        %v803 = vpop.permute.xlu0 %802
        %804 = vrot.lane.b32.xlu0 %v799, 112
        %v805 = vpop.permute.xlu0 %804
        %810 = vrot.lane.b32.xlu0 %v796, 80
        %v811 = vpop.permute.xlu0 %810
        %812 = vrot.lane.b32.xlu0 %v797, 80
        %v813 = vpop.permute.xlu0 %812
        %v816 = vsel %vm766, %v803, %v811
        %v817 = vsel %vm766, %v805, %v813
        %v818 = vmul.f32 %v666, %v718
        %v819 = vmul.f32 %v670, %v719
        %v820 = vmul.f32 %v816, %v746
        %v821 = vmul.f32 %v817, %v747
        %v822 = vadd.f32 %v818, %v820
        %v823 = vadd.f32 %v819, %v821
        %824 = vst [vmem:[%s477] sm:$0xff] %v783
        %825 = vst [vmem:[%s477 + $0x8] sm:$0xff] %v784
        %v826 = vsel %vm720, %v822, %v666
        %v827 = vsel %vm720, %v823, %v670
        %828 = vst [vmem:[%s484] sm:$0xff] %v826
        %829 = vst [vmem:[%s484 + $0x8] sm:$0xff] %v827
        %830 = vst.msk [vmem:[#allocation2] sm:$0xff] %vm720, %v822
        %831 = vst.msk [vmem:[#allocation2 + $0x8] sm:$0xff] %vm720, %v823
        %834 = vrot.lane.b32.xlu0 %v666, 64
        %v835 = vpop.permute.xlu0 %834
        %836 = vrot.lane.b32.xlu0 %v670, 64
        %v837 = vpop.permute.xlu0 %836
        %840 = vst.msk [vmem:[#allocation3] sm:$0xff] %vm720, %v835
        %841 = vst.msk [vmem:[#allocation3 + $0x8] sm:$0xff] %vm720, %v837
        %s842 = smul.u32 %s42, 16
        loop: start=0, step=1, limit=16
        $region69: #{flash_phi3_layer.2} parent=43 // loop_pre_header
          _
        $region70: #{flash_phi3_layer.2} parent=43 // loop_header
          %s844 = sphi 0, %s848
          %p845 = scmp.ge.s32.totalorder %s844, 16
        $region71: #{flash_phi3_layer.2} parent=43 // loop_header_branch
          %847 = sbr.rel (%p845) target = $region75
        $region72: #{flash_phi3_layer.2} parent=43 // loop_body
          %s849 = sadd.s32 %s842, %s844
          %s850 = sld [smem:[#allocation6 + %s849]]
          %s851 = scalar_lea.vmem [#allocation2], %s844
          %s852 = smul.addr %s850, 16
          %s853 = scalar_lea.hbm %s12, %s852
          // Predicated region
          $region76: #{flash_phi3_layer.2} parent=72 // pred_check
            _
          $region77: #{flash_phi3_layer.2} parent=72 // pred_check_branch
            %855 = sbr.rel target = $region79
          $region78: #{flash_phi3_layer.2} parent=72 // pred_region
            %856 = sst [smem:[#allocation23]] [#allocation22]
            %857 = sst [smem:[#allocation24]] [#allocation21]
          $region79: #{flash_phi3_layer.2} parent=72 // pred_fallthru
            _
          %859 = shalt.err (0)
          %s861 = sshll.u32 %s851, 4
          %s862 = int_to_ptr.vmem [resolvable:$true] %s861
          %864 = dma.vmem_to_hbm [thread:$0]  %s862, 16, %s853, [#allocation4]
          %s865 = scalar_lea.vmem [#allocation3], %s844
          %s866 = smul.addr %s850, 16
          %s867 = scalar_lea.hbm %s13, %s866
          %s868 = scalar_lea.sflag [#allocation4], 1
          // Predicated region
          $region80: #{flash_phi3_layer.2} parent=72 // pred_check
            _
          $region81: #{flash_phi3_layer.2} parent=72 // pred_check_branch
            %870 = sbr.rel target = $region83
          $region82: #{flash_phi3_layer.2} parent=72 // pred_region
            %871 = sst [smem:[#allocation23]] [#allocation26]
            %872 = sst [smem:[#allocation24]] [#allocation25]
          $region83: #{flash_phi3_layer.2} parent=72 // pred_fallthru
            _
          %874 = shalt.err (0)
          %s876 = sshll.u32 %s865, 4
          %s877 = int_to_ptr.vmem [resolvable:$true] %s876
          %879 = dma.vmem_to_hbm [thread:$0]  %s877, 16, %s867, %s868
          %881 = dma.done [#allocation4], 16
          %883 = dma.done %s868, 16
        $region73: #{flash_phi3_layer.2} parent=43 // loop_footer
          %s848 = sadd.s32 1, %s844
        $region74: #{flash_phi3_layer.2} parent=43 // loop_footer_branch
          %843 = sbr.rel target = $region70
        $region75: #{flash_phi3_layer.2} parent=43 // loop_exit
          _
        %s884 = sand.u32 %s196, 1
        %s885 = scalar_lea.sflag [#allocation9], %s884
        %s886 = sand.u32 %s196, 1
        %s887 = smul.addr %s886, 16
        %s888 = scalar_lea.vmem [#allocation17], %s887
        %s889 = sand.u32 %s42, 1
        %s890 = scalar_lea.sflag [#allocation19], %s889
        %s891 = sand.u32 %s222, 1
        %s892 = smul.addr %s891, 16
        %s893 = scalar_lea.vmem [#allocation18], %s892
        %s894 = sand.u32 %s42, 1
        %s895 = scalar_lea.sflag [#allocation19], %s894
        %s896 = sand.u32 %s248, 1
        %s897 = smul.addr %s896, 16
        %s898 = scalar_lea.vmem [#allocation20], %s897
        // Predicated region
        $region84: #{flash_phi3_layer.2} parent=43 // pred_check
          %p899 = pneg %p206
        $region85: #{flash_phi3_layer.2} parent=43 // pred_check_branch
          %901 = sbr.rel (%p899) target = $region87
        $region86: #{flash_phi3_layer.2} parent=43 // pred_region
          %s902 = smul.u32 2, %s42
          %s904 = ssub.s32 256, 256
          %905 = vsyncadd %s885, %s904
          %s906 = smul.addr %s902, 128
          %s907 = scalar_lea.hbm %s9, %s906
          %s908 = sshll.u32 %s888, 4
          %s909 = int_to_ptr.vmem [resolvable:$true] %s908
          %914 = dma.vmem_to_hbm [thread:$0]  %s909, 256, %s907, %s885, 128, 128, 8
        $region87: #{flash_phi3_layer.2} parent=43 // pred_fallthru
          _
        // Predicated region
        $region88: #{flash_phi3_layer.2} parent=43 // pred_check
          %p915 = pneg %p232
        $region89: #{flash_phi3_layer.2} parent=43 // pred_check_branch
          %917 = sbr.rel (%p915) target = $region91
        $region90: #{flash_phi3_layer.2} parent=43 // pred_region
          %s918 = smul.u32 2, %s42
          %s920 = ssub.s32 256, 256
          %921 = vsyncadd %s890, %s920
          %s922 = smul.addr %s918, 128
          %s923 = scalar_lea.hbm %s10, %s922
          %s924 = sshll.u32 %s893, 4
          %s925 = int_to_ptr.vmem [resolvable:$true] %s924
          %930 = dma.vmem_to_hbm [thread:$0]  %s925, 256, %s923, %s890, 128, 128, 8
        $region91: #{flash_phi3_layer.2} parent=43 // pred_fallthru
          _
        // Predicated region
        $region92: #{flash_phi3_layer.2} parent=43 // pred_check
          %p931 = pneg %p258
        $region93: #{flash_phi3_layer.2} parent=43 // pred_check_branch
          %933 = sbr.rel (%p931) target = $region95
        $region94: #{flash_phi3_layer.2} parent=43 // pred_region
          %s934 = smul.u32 2, %s42
          %s936 = ssub.s32 256, 256
          %937 = vsyncadd %s895, %s936
          %s938 = smul.addr %s934, 128
          %s939 = scalar_lea.hbm %s11, %s938
          %s940 = sshll.u32 %s898, 4
          %s941 = int_to_ptr.vmem [resolvable:$true] %s940
          %946 = dma.vmem_to_hbm [thread:$0]  %s941, 256, %s939, %s895, 128, 128, 8
        $region95: #{flash_phi3_layer.2} parent=43 // pred_fallthru
          _
      $region44: #{flash_phi3_layer.2} parent=5 // pred_fallthru
        _
      %p947 = scmp.le.s32.totalorder 2, %s37
      // Predicated region
      $region96: #{flash_phi3_layer.2} parent=5 // pred_check
        %p948 = pneg %p947
      $region97: #{flash_phi3_layer.2} parent=5 // pred_check_branch
        %950 = sbr.rel (%p948) target = $region99
      $region98: #{flash_phi3_layer.2} parent=5 // pred_region
        %s951 = ssub.s32 %s37, 2
        // Predicated region
        $region100: #{flash_phi3_layer.2} parent=98 // pred_check
          %p952 = pneg %p212
        $region101: #{flash_phi3_layer.2} parent=98 // pred_check_branch
          %954 = sbr.rel (%p952) target = $region103
        $region102: #{flash_phi3_layer.2} parent=98 // pred_region
          %s955 = sand.u32 %s197, 1
          %s956 = scalar_lea.sflag [#allocation9], %s955
          %s957 = sand.u32 %s197, 1
          %s958 = smul.addr %s957, 16
          %s959 = scalar_lea.vmem [#allocation17], %s958
          %960 = dma.done %s956, 256
        $region103: #{flash_phi3_layer.2} parent=98 // pred_fallthru
          _
        // Predicated region
        $region104: #{flash_phi3_layer.2} parent=98 // pred_check
          %p961 = pneg %p238
        $region105: #{flash_phi3_layer.2} parent=98 // pred_check_branch
          %963 = sbr.rel (%p961) target = $region107
        $region106: #{flash_phi3_layer.2} parent=98 // pred_region
          %s964 = sand.u32 %s43, 1
          %s965 = scalar_lea.sflag [#allocation19], %s964
          %s966 = sand.u32 %s223, 1
          %s967 = smul.addr %s966, 16
          %s968 = scalar_lea.vmem [#allocation18], %s967
          %969 = dma.done %s965, 256
        $region107: #{flash_phi3_layer.2} parent=98 // pred_fallthru
          _
        // Predicated region
        $region108: #{flash_phi3_layer.2} parent=98 // pred_check
          %p970 = pneg %p264
        $region109: #{flash_phi3_layer.2} parent=98 // pred_check_branch
          %972 = sbr.rel (%p970) target = $region111
        $region110: #{flash_phi3_layer.2} parent=98 // pred_region
          %s973 = sand.u32 %s43, 1
          %s974 = scalar_lea.sflag [#allocation19], %s973
          %s975 = sand.u32 %s249, 1
          %s976 = smul.addr %s975, 16
          %s977 = scalar_lea.vmem [#allocation20], %s976
          %978 = dma.done %s974, 256
        $region111: #{flash_phi3_layer.2} parent=98 // pred_fallthru
          _
      $region99: #{flash_phi3_layer.2} parent=5 // pred_fallthru
        _
    $region6: #{flash_phi3_layer.2} parent=1 // loop_footer
      %s41 = sadd.s32 1, %s37
    $region7: #{flash_phi3_layer.2} parent=1 // loop_footer_branch
      %36 = sbr.rel target = $region3
    $region8: #{flash_phi3_layer.2} parent=1 // loop_exit
      _
    %979 = vsyncpa [#allocation8], 1
    %s980 = scalar_lea.sflag [#allocation8], 1
    %981 = vsyncpa %s980, 1
    %982 = vsyncpa [#allocation11], 1
    %s983 = scalar_lea.sflag [#allocation11], 1
    %984 = vsyncpa %s983, 1
    %985 = vsyncpa [#allocation14], 1
    %986 = vsyncpa [#allocation9], 1
    %s987 = scalar_lea.sflag [#allocation9], 1
    %988 = vsyncpa %s987, 1
    %989 = vsyncpa [#allocation19], 1
    %s990 = scalar_lea.sflag [#allocation19], 1
    %991 = vsyncpa %s990, 1
  %992 = vsyncmov [#allocation4]
  %s993 = vpop.sfrf %992
  %p994 = scmp.eq.s32.totalorder %s993, 0
  %p995 = pneg %p994
  %997 = shalt.err (%p995)
  %s998 = scalar_lea.sflag [#allocation4], 1
  %999 = vsyncmov %s998
  %s1000 = vpop.sfrf %999
  %p1001 = scmp.eq.s32.totalorder %s1000, 0
  %p1002 = pneg %p1001
  %1004 = shalt.err (%p1002)

// kernel: flash_phi3_layer.3
$region0: #{flash_phi3_layer.3}
  #allocation0 [shape = 'u32[]', space=smem, size = 0x4, offset = 0x4, fixed_abs, tag = 'smem constant byte address 0x4 - core index']
  #allocation1 [shape = 'u32[144,128]{1,0:T(1,128)}', space=vmem, size = 0x12000, scoped, tag = 'internal scratch']
  #allocation2 [shape = 'f32[4,16,1]{2,1,0:T(8,128)}', space=vmem, size = 0x8000, scoped, tag = 'scratch operand']
  #allocation3 [shape = 'f32[4,16,1]{2,1,0:T(8,128)}', space=vmem, size = 0x8000, scoped, tag = 'scratch operand']
  #allocation4 [shape = 'f32[4,16,32]{2,1,0:T(8,128)}', space=vmem, size = 0x8000, scoped, tag = 'scratch operand']
  #allocation22 [shape = 's32[]', space=sflag, size = 0x4, offset = 0, fixed_abs, tag = 'sflag constant byte address 0x0 - dummy sync flag']
  #allocation24 [shape = 's32[]', space=sflag, size = 0x4, offset = 0, fixed_abs, tag = 'sflag constant byte address 0x0 - dummy sync flag']
  #allocation26 [shape = 's32[]', space=sflag, size = 0x4, offset = 0, fixed_abs, tag = 'sflag constant byte address 0x0 - dummy sync flag']
  %s0 = inlined_call_operand.hbm [shape: f32[4,32,32], index: 0, kind: input, shape index: {}]
  %s1 = inlined_call_operand.hbm [shape: f32[2,32,32], index: 1, kind: input, shape index: {}]
  %s2 = inlined_call_operand.hbm [shape: f32[2,32,32], index: 2, kind: input, shape index: {}]
  %s3 = inlined_call_operand.hbm [shape: f32[32,128], index: 3, kind: input, shape index: {}]
  %s4 = inlined_call_operand.hbm [shape: f32[1,128], index: 4, kind: input, shape index: {}]
  %s5 = inlined_call_operand.hbm [shape: bf16[4,32,128], index: 5, kind: input, shape index: {}]
  %s6 = inlined_call_operand.hbm [shape: bf16[128,512], index: 6, kind: input, shape index: {}]
  %s7 = inlined_call_operand.hbm [shape: bf16[256,128], index: 7, kind: input, shape index: {}]
  %s8 = inlined_call_operand.hbm [shape: f32[32,128], index: 8, kind: output, shape index: {0}]
  %s9 = inlined_call_operand.hbm [shape: f32[32,128], index: 9, kind: output, shape index: {1}]
  %10 = xla_tuple %s8, %s9
  %s11 = sld [smem:[#allocation0]]
  $region117: #{flash_phi3_layer.3} parent=0
    _
  %s13 = ssub.s32 1, %s11
  %s14 = scalar_select 0, %s13, %s11
  $region1: #{flash_phi3_layer.3} parent=0
    #allocation5 [shape = 'u8[65536]{0}', space=vmem, size = 0x10000, scoped, tag = 'input window, operand 0']
    #allocation6 [shape = 's32[2]{0}', space=sflag, size = 0x8, scoped, tag = 'scoped memory for flash_phi3_layer.3']
    #allocation7 [shape = 's32[2]{0}', space=sflag, size = 0x8, scoped, tag = 'scoped memory for flash_phi3_layer.3']
    #allocation8 [shape = 'u8[32768]{0}', space=vmem, size = 0x8000, scoped, tag = 'input window, operand 1']
    #allocation9 [shape = 's32[2]{0}', space=sflag, size = 0x8, scoped, tag = 'scoped memory for flash_phi3_layer.3']
    #allocation10 [shape = 'u8[32768]{0}', space=vmem, size = 0x8000, scoped, tag = 'input window, operand 2']
    #allocation11 [shape = 'u8[16384]{0}', space=vmem, size = 0x4000, scoped, tag = 'input window, operand 3']
    #allocation12 [shape = 's32[2]{0}', space=sflag, size = 0x8, scoped, tag = 'scoped memory for flash_phi3_layer.3']
    #allocation13 [shape = 'u8[512]{0}', space=vmem, size = 0x400, scoped, tag = 'input window, operand 4, single buffered']
    #allocation14 [shape = 'u8[32768]{0}', space=vmem, size = 0x8000, scoped, tag = 'input window, operand 5, single buffered']
    #allocation15 [shape = 's32[1]{0}', space=sflag, size = 0x4, scoped, tag = 'scoped memory for flash_phi3_layer.3']
    #allocation16 [shape = 'u8[131072]{0}', space=vmem, size = 0x20000, scoped, tag = 'input window, operand 6, single buffered']
    #allocation17 [shape = 'u8[65536]{0}', space=vmem, size = 0x10000, scoped, tag = 'input window, operand 7, single buffered']
    #allocation18 [shape = 's32[1]{0}', space=sflag, size = 0x4, scoped, tag = 'scoped memory for flash_phi3_layer.3']
    #allocation19 [shape = 'u8[16384]{0}', space=vmem, size = 0x4000, scoped, tag = 'output window, operand 0']
    #allocation20 [shape = 'u8[16384]{0}', space=vmem, size = 0x4000, scoped, tag = 'output window, operand 1']
    #allocation21 [shape = 's32[2]{0}', space=sflag, size = 0x8, scoped, tag = 'scoped memory for flash_phi3_layer.3']
    %15 = vsyncpa [#allocation6], 0
    %s16 = scalar_lea.sflag [#allocation6], 1
    %17 = vsyncpa %s16, 0
    %18 = vsyncpa [#allocation9], 0
    %s19 = scalar_lea.sflag [#allocation9], 1
    %20 = vsyncpa %s19, 0
    %21 = vsyncpa [#allocation12], 0
    %s22 = scalar_lea.sflag [#allocation12], 1
    %23 = vsyncpa %s22, 0
    %24 = vsyncpa [#allocation15], 0
    %25 = vsyncpa [#allocation18], 0
    %26 = vsyncpa [#allocation7], 0
    %s27 = scalar_lea.sflag [#allocation7], 1
    %28 = vsyncpa %s27, 0
    %29 = vsyncpa [#allocation21], 0
    %s30 = scalar_lea.sflag [#allocation21], 1
    %31 = vsyncpa %s30, 0
    loop: start=0, step=1, limit=6
    $region2: #{flash_phi3_layer.3} parent=1 // loop_pre_header
      _
    $region3: #{flash_phi3_layer.3} parent=1 // loop_header
      %s33 = sphi 0, %s37
      %p34 = scmp.ge.s32.totalorder %s33, 6
      %s40 = sphi 0, %s52
      %s41 = sphi 0, %s48
      %s42 = sphi 0, %s40
      %s43 = sphi 0, %s41
      %s44 = sphi 0, %s42
      %s45 = sphi 0, %s43
      %s55 = sphi 0, %s57
      %s58 = sphi 0, %s55
      %s59 = sphi 0, %s58
      %s75 = sphi 0, %s59
      %s81 = sphi 0, %s83
      %s84 = sphi 0, %s81
      %s85 = sphi 0, %s84
      %s101 = sphi 0, %s85
      %s107 = sphi 0, %s109
      %s110 = sphi 0, %s107
      %s111 = sphi 0, %s110
      %s127 = sphi 0, %s111
      %s133 = sphi 0, %s135
      %s136 = sphi 0, %s133
      %s137 = sphi 0, %s136
      %s153 = sphi 0, %s137
      %s157 = sphi 0, %s157
      %s159 = sphi 0, %s157
      %s160 = sphi 0, %s159
      %s174 = sphi 0, %s160
      %s178 = sphi 0, %s178
      %s180 = sphi 0, %s178
      %s181 = sphi 0, %s180
      %s195 = sphi 0, %s181
      %s199 = sphi 0, %s199
      %s201 = sphi 0, %s199
      %s202 = sphi 0, %s201
      %s216 = sphi 0, %s202
      %s220 = sphi 0, %s220
      %s222 = sphi 0, %s220
      %s223 = sphi 0, %s222
      %s237 = sphi 0, %s223
      %s243 = sphi 0, %s245
      %s246 = sphi 0, %s243
      %s247 = sphi 0, %s246
      %s263 = sphi 0, %s247
      %s269 = sphi 0, %s271
      %s272 = sphi 0, %s269
      %s273 = sphi 0, %s272
      %s289 = sphi 0, %s273
    $region4: #{flash_phi3_layer.3} parent=1 // loop_header_branch
      %36 = sbr.rel (%p34) target = $region8
    $region5: #{flash_phi3_layer.3} parent=1 // loop_body
      %s38 = ssub.s32 %s33, 1
      %s39 = ssub.s32 %s33, 2
      %s46 = sadd.s32 1, %s41
      %p47 = scmp.ge.s32.totalorder %s46, 2
      %s48 = scalar_select %p47, 0, %s46
      %s49 = sadd.s32 1, %s40
      %s50 = scalar_select %p47, %s49, %s40
      %p51 = scmp.ge.s32.totalorder %s50, 2
      %s52 = scalar_select %p51, 0, %s50
      %s53 = ssub.s32 %s40, %s52
      %p54 = scmp.eq.s32.totalorder %s53, 0
      %s56 = sadd.s32 %s55, 1
      %s57 = scalar_select %p54, %s55, %s56
      %p60 = pneg %p54
      %p61 = scmp.eq.s32.totalorder %s33, 3
      %p62 = por %p60, %p61
      %p63 = scmp.ne.s32.totalorder %s55, %s58
      %p64 = scmp.eq.s32.totalorder %s33, 0
      %p65 = por %p63, %p64
      %p66 = scmp.ne.s32.totalorder %s55, %s58
      %p67 = scmp.eq.s32.totalorder %s38, 3
      %p68 = por %p66, %p67
      %p69 = scmp.ne.s32.totalorder %s58, %s59
      %p70 = scmp.eq.s32.totalorder %s38, 0
      %p71 = por %p69, %p70
      %p72 = scmp.ne.s32.totalorder %s58, %s59
      %p73 = scmp.eq.s32.totalorder %s39, 3
      %p74 = por %p72, %p73
      %p76 = scmp.ne.s32.totalorder %s59, %s75
      %p77 = scmp.eq.s32.totalorder %s39, 0
      %p78 = por %p76, %p77
      %s79 = ssub.s32 %s41, %s48
      %p80 = scmp.eq.s32.totalorder %s79, 0
      %s82 = sadd.s32 %s81, 1
      %s83 = scalar_select %p80, %s81, %s82
      %p86 = pneg %p80
      %p87 = scmp.eq.s32.totalorder %s33, 3
      %p88 = por %p86, %p87
      %p89 = scmp.ne.s32.totalorder %s81, %s84
      %p90 = scmp.eq.s32.totalorder %s33, 0
      %p91 = por %p89, %p90
      %p92 = scmp.ne.s32.totalorder %s81, %s84
      %p93 = scmp.eq.s32.totalorder %s38, 3
      %p94 = por %p92, %p93
      %p95 = scmp.ne.s32.totalorder %s84, %s85
      %p96 = scmp.eq.s32.totalorder %s38, 0
      %p97 = por %p95, %p96
      %p98 = scmp.ne.s32.totalorder %s84, %s85
      %p99 = scmp.eq.s32.totalorder %s39, 3
      %p100 = por %p98, %p99
      %p102 = scmp.ne.s32.totalorder %s85, %s101
      %p103 = scmp.eq.s32.totalorder %s39, 0
      %p104 = por %p102, %p103
      %s105 = ssub.s32 %s41, %s48
      %p106 = scmp.eq.s32.totalorder %s105, 0
      %s108 = sadd.s32 %s107, 1
      %s109 = scalar_select %p106, %s107, %s108
      %p112 = pneg %p106
      %p113 = scmp.eq.s32.totalorder %s33, 3
      %p114 = por %p112, %p113
      %p115 = scmp.ne.s32.totalorder %s107, %s110
      %p116 = scmp.eq.s32.totalorder %s33, 0
      %p117 = por %p115, %p116
      %p118 = scmp.ne.s32.totalorder %s107, %s110
      %p119 = scmp.eq.s32.totalorder %s38, 3
      %p120 = por %p118, %p119
      %p121 = scmp.ne.s32.totalorder %s110, %s111
      %p122 = scmp.eq.s32.totalorder %s38, 0
      %p123 = por %p121, %p122
      %p124 = scmp.ne.s32.totalorder %s110, %s111
      %p125 = scmp.eq.s32.totalorder %s39, 3
      %p126 = por %p124, %p125
      %p128 = scmp.ne.s32.totalorder %s111, %s127
      %p129 = scmp.eq.s32.totalorder %s39, 0
      %p130 = por %p128, %p129
      %s131 = ssub.s32 %s40, %s52
      %p132 = scmp.eq.s32.totalorder %s131, 0
      %s134 = sadd.s32 %s133, 1
      %s135 = scalar_select %p132, %s133, %s134
      %p138 = pneg %p132
      %p139 = scmp.eq.s32.totalorder %s33, 3
      %p140 = por %p138, %p139
      %p141 = scmp.ne.s32.totalorder %s133, %s136
      %p142 = scmp.eq.s32.totalorder %s33, 0
      %p143 = por %p141, %p142
      %p144 = scmp.ne.s32.totalorder %s133, %s136
      %p145 = scmp.eq.s32.totalorder %s38, 3
      %p146 = por %p144, %p145
      %p147 = scmp.ne.s32.totalorder %s136, %s137
      %p148 = scmp.eq.s32.totalorder %s38, 0
      %p149 = por %p147, %p148
      %p150 = scmp.ne.s32.totalorder %s136, %s137
      %p151 = scmp.eq.s32.totalorder %s39, 3
      %p152 = por %p150, %p151
      %p154 = scmp.ne.s32.totalorder %s137, %s153
      %p155 = scmp.eq.s32.totalorder %s39, 0
      %p156 = por %p154, %p155
      %s158 = sadd.s32 %s157, 1
      %p161 = scmp.eq.s32.totalorder %s33, 3
      %p162 = scmp.ne.s32.totalorder %s157, %s159
      %p163 = scmp.eq.s32.totalorder %s33, 0
      %p164 = por %p162, %p163
      %p165 = scmp.ne.s32.totalorder %s157, %s159
      %p166 = scmp.eq.s32.totalorder %s38, 3
      %p167 = por %p165, %p166
      %p168 = scmp.ne.s32.totalorder %s159, %s160
      %p169 = scmp.eq.s32.totalorder %s38, 0
      %p170 = por %p168, %p169
      %p171 = scmp.ne.s32.totalorder %s159, %s160
      %p172 = scmp.eq.s32.totalorder %s39, 3
      %p173 = por %p171, %p172
      %p175 = scmp.ne.s32.totalorder %s160, %s174
      %p176 = scmp.eq.s32.totalorder %s39, 0
      %p177 = por %p175, %p176
      %s179 = sadd.s32 %s178, 1
      %p182 = scmp.eq.s32.totalorder %s33, 3
      %p183 = scmp.ne.s32.totalorder %s178, %s180
      %p184 = scmp.eq.s32.totalorder %s33, 0
      %p185 = por %p183, %p184
      %p186 = scmp.ne.s32.totalorder %s178, %s180
      %p187 = scmp.eq.s32.totalorder %s38, 3
      %p188 = por %p186, %p187
      %p189 = scmp.ne.s32.totalorder %s180, %s181
      %p190 = scmp.eq.s32.totalorder %s38, 0
      %p191 = por %p189, %p190
      %p192 = scmp.ne.s32.totalorder %s180, %s181
      %p193 = scmp.eq.s32.totalorder %s39, 3
      %p194 = por %p192, %p193
      %p196 = scmp.ne.s32.totalorder %s181, %s195
      %p197 = scmp.eq.s32.totalorder %s39, 0
      %p198 = por %p196, %p197
      %s200 = sadd.s32 %s199, 1
      %p203 = scmp.eq.s32.totalorder %s33, 3
      %p204 = scmp.ne.s32.totalorder %s199, %s201
      %p205 = scmp.eq.s32.totalorder %s33, 0
      %p206 = por %p204, %p205
      %p207 = scmp.ne.s32.totalorder %s199, %s201
      %p208 = scmp.eq.s32.totalorder %s38, 3
      %p209 = por %p207, %p208
      %p210 = scmp.ne.s32.totalorder %s201, %s202
      %p211 = scmp.eq.s32.totalorder %s38, 0
      %p212 = por %p210, %p211
      %p213 = scmp.ne.s32.totalorder %s201, %s202
      %p214 = scmp.eq.s32.totalorder %s39, 3
      %p215 = por %p213, %p214
      %p217 = scmp.ne.s32.totalorder %s202, %s216
      %p218 = scmp.eq.s32.totalorder %s39, 0
      %p219 = por %p217, %p218
      %s221 = sadd.s32 %s220, 1
      %p224 = scmp.eq.s32.totalorder %s33, 3
      %p225 = scmp.ne.s32.totalorder %s220, %s222
      %p226 = scmp.eq.s32.totalorder %s33, 0
      %p227 = por %p225, %p226
      %p228 = scmp.ne.s32.totalorder %s220, %s222
      %p229 = scmp.eq.s32.totalorder %s38, 3
      %p230 = por %p228, %p229
      %p231 = scmp.ne.s32.totalorder %s222, %s223
      %p232 = scmp.eq.s32.totalorder %s38, 0
      %p233 = por %p231, %p232
      %p234 = scmp.ne.s32.totalorder %s222, %s223
      %p235 = scmp.eq.s32.totalorder %s39, 3
      %p236 = por %p234, %p235
      %p238 = scmp.ne.s32.totalorder %s223, %s237
      %p239 = scmp.eq.s32.totalorder %s39, 0
      %p240 = por %p238, %p239
      %s241 = ssub.s32 %s40, %s52
      %p242 = scmp.eq.s32.totalorder %s241, 0
      %s244 = sadd.s32 %s243, 1
      %s245 = scalar_select %p242, %s243, %s244
      %p248 = pneg %p242
      %p249 = scmp.eq.s32.totalorder %s33, 3
      %p250 = por %p248, %p249
      %p251 = scmp.ne.s32.totalorder %s243, %s246
      %p252 = scmp.eq.s32.totalorder %s33, 0
      %p253 = por %p251, %p252
      %p254 = scmp.ne.s32.totalorder %s243, %s246
      %p255 = scmp.eq.s32.totalorder %s38, 3
      %p256 = por %p254, %p255
      %p257 = scmp.ne.s32.totalorder %s246, %s247
      %p258 = scmp.eq.s32.totalorder %s38, 0
      %p259 = por %p257, %p258
      %p260 = scmp.ne.s32.totalorder %s246, %s247
      %p261 = scmp.eq.s32.totalorder %s39, 3
      %p262 = por %p260, %p261
      %p264 = scmp.ne.s32.totalorder %s247, %s263
      %p265 = scmp.eq.s32.totalorder %s39, 0
      %p266 = por %p264, %p265
      %s267 = ssub.s32 %s40, %s52
      %p268 = scmp.eq.s32.totalorder %s267, 0
      %s270 = sadd.s32 %s269, 1
      %s271 = scalar_select %p268, %s269, %s270
      %p274 = pneg %p268
      %p275 = scmp.eq.s32.totalorder %s33, 3
      %p276 = por %p274, %p275
      %p277 = scmp.ne.s32.totalorder %s269, %s272
      %p278 = scmp.eq.s32.totalorder %s33, 0
      %p279 = por %p277, %p278
      %p280 = scmp.ne.s32.totalorder %s269, %s272
      %p281 = scmp.eq.s32.totalorder %s38, 3
      %p282 = por %p280, %p281
      %p283 = scmp.ne.s32.totalorder %s272, %s273
      %p284 = scmp.eq.s32.totalorder %s38, 0
      %p285 = por %p283, %p284
      %p286 = scmp.ne.s32.totalorder %s272, %s273
      %p287 = scmp.eq.s32.totalorder %s39, 3
      %p288 = por %p286, %p287
      %p290 = scmp.ne.s32.totalorder %s273, %s289
      %p291 = scmp.eq.s32.totalorder %s39, 0
      %p292 = por %p290, %p291
      %p293 = scmp.le.s32.totalorder 1, %s33
      %p294 = scmp.lt.s32.totalorder %s33, 5
      %p295 = pnand %p293, %p294
      %p296 = pneg %p295
      // Predicated region
      $region9: #{flash_phi3_layer.3} parent=5 // pred_check
        _
      $region10: #{flash_phi3_layer.3} parent=5 // pred_check_branch
        %298 = sbr.rel (%p295) target = $region12
      $region11: #{flash_phi3_layer.3} parent=5 // pred_region
        %s299 = ssub.s32 %s33, 1
        // Predicated region
        $region13: #{flash_phi3_layer.3} parent=11 // pred_check
          %p300 = pneg %p170
        $region14: #{flash_phi3_layer.3} parent=11 // pred_check_branch
          %302 = sbr.rel (%p300) target = $region16
        $region15: #{flash_phi3_layer.3} parent=11 // pred_region
          %s304 = ssub.s32 16, 16
          %305 = vsyncadd [#allocation12], %s304
          %s307 = sshll.u32 [#allocation13], 4
          %s308 = int_to_ptr.vmem [resolvable:$true] %s307
          %310 = dma.hbm_to_vmem [thread:$0]  %s4, 16, %s308, [#allocation12]
        $region16: #{flash_phi3_layer.3} parent=11 // pred_fallthru
          _
        // Predicated region
        $region17: #{flash_phi3_layer.3} parent=11 // pred_check
          %p311 = pneg %p191
        $region18: #{flash_phi3_layer.3} parent=11 // pred_check_branch
          %313 = sbr.rel (%p311) target = $region20
        $region19: #{flash_phi3_layer.3} parent=11 // pred_region
          %s315 = ssub.s32 1024, 1024
          %316 = vsyncadd [#allocation15], %s315
          %s317 = sshll.u32 [#allocation14], 4
          %s318 = int_to_ptr.vmem [resolvable:$true] %s317
          %323 = dma.hbm_to_vmem [thread:$0]  %s5, 1024, %s318, [#allocation15], 64, 64, 4
        $region20: #{flash_phi3_layer.3} parent=11 // pred_fallthru
          _
        // Predicated region
        $region21: #{flash_phi3_layer.3} parent=11 // pred_check
          %p324 = pneg %p212
        $region22: #{flash_phi3_layer.3} parent=11 // pred_check_branch
          %326 = sbr.rel (%p324) target = $region24
        $region23: #{flash_phi3_layer.3} parent=11 // pred_region
          %s328 = ssub.s32 4096, 4096
          %329 = vsyncadd [#allocation15], %s328
          %s330 = sshll.u32 [#allocation16], 4
          %s331 = int_to_ptr.vmem [resolvable:$true] %s330
          %336 = dma.hbm_to_vmem [thread:$0]  %s6, 4096, %s331, [#allocation15], 256, 256, 16
        $region24: #{flash_phi3_layer.3} parent=11 // pred_fallthru
          _
        // Predicated region
        $region25: #{flash_phi3_layer.3} parent=11 // pred_check
          %p337 = pneg %p233
        $region26: #{flash_phi3_layer.3} parent=11 // pred_check_branch
          %339 = sbr.rel (%p337) target = $region28
        $region27: #{flash_phi3_layer.3} parent=11 // pred_region
          %s341 = ssub.s32 2048, 2048
          %342 = vsyncadd [#allocation18], %s341
          %s343 = sshll.u32 [#allocation17], 4
          %s344 = int_to_ptr.vmem [resolvable:$true] %s343
          %349 = dma.hbm_to_vmem [thread:$0]  %s7, 2048, %s344, [#allocation18], 64, 64, 4
        $region28: #{flash_phi3_layer.3} parent=11 // pred_fallthru
          _
      $region12: #{flash_phi3_layer.3} parent=5 // pred_fallthru
        _
      %p350 = scmp.lt.s32.totalorder %s33, 4
      // Predicated region
      $region29: #{flash_phi3_layer.3} parent=5 // pred_check
        %p351 = pneg %p350
      $region30: #{flash_phi3_layer.3} parent=5 // pred_check_branch
        %353 = sbr.rel (%p351) target = $region32
      $region31: #{flash_phi3_layer.3} parent=5 // pred_region
        // Predicated region
        $region33: #{flash_phi3_layer.3} parent=31 // pred_check
          %p354 = pneg %p65
        $region34: #{flash_phi3_layer.3} parent=31 // pred_check_branch
          %356 = sbr.rel (%p354) target = $region36
        $region35: #{flash_phi3_layer.3} parent=31 // pred_region
          #allocation23 [shape = 'u32[6]{0}', space=smem, size = 0x18, scoped, tag = 'DMA stride descriptor']
          %s357 = sand.u32 %s55, 1
          %s358 = scalar_lea.sflag [#allocation6], %s357
          %s359 = sand.u32 %s55, 1
          %s360 = smul.addr %s359, 64
          %s361 = scalar_lea.vmem [#allocation5], %s360
          %s362 = smul.u32 2, %s40
          %s364 = ssub.s32 1024, 1024
          %365 = vsyncadd %s358, %s364
          %s366 = smul.addr %s362, 128
          %s367 = scalar_lea.hbm %s0, %s366
          %s369 = sshll.u32 1, 14
          %s370 = sxor.u32 4294967295, %s369
          %s372 = sld [smem:[#allocation0]]
          %s373 = sadd.s32 2, %s372
          %s375 = sshll.u32 7, 26
          %s376 = sxor.u32 4294967295, %s375
          %s377 = sand.u32 0, %s376
          %s378 = sshll.u32 %s373, 26
          %s379 = sor.u32 %s377, %s378
          %s380 = sshll.u32 %s361, 4
          %s381 = int_to_ptr.vmem [resolvable:$true] %s380
          %387 = sst [smem:[#allocation23]] 512
          %s388 = scalar_lea.smem [#allocation23], 1
          %389 = sst [smem:[%s388]] 256
          %s390 = scalar_lea.smem [#allocation23], 2
          %391 = sst [smem:[%s390]] 2
          %s392 = scalar_lea.smem [#allocation23], 3
          %393 = sst [smem:[%s392]] 128
          %s394 = scalar_lea.smem [#allocation23], 4
          %395 = sst [smem:[%s394]] 128
          %s396 = scalar_lea.smem [#allocation23], 5
          %397 = sst [smem:[%s396]] 8
          %399 = dma.general %s367, 1024, %s381, %s358, [#allocation22], [#allocation23], %s379, 0
        $region36: #{flash_phi3_layer.3} parent=31 // pred_fallthru
          _
        // Predicated region
        $region37: #{flash_phi3_layer.3} parent=31 // pred_check
          %p400 = pneg %p91
        $region38: #{flash_phi3_layer.3} parent=31 // pred_check_branch
          %402 = sbr.rel (%p400) target = $region40
        $region39: #{flash_phi3_layer.3} parent=31 // pred_region
          #allocation25 [shape = 'u32[6]{0}', space=smem, size = 0x18, scoped, tag = 'DMA stride descriptor']
          %s403 = sand.u32 %s33, 1
          %s404 = scalar_lea.sflag [#allocation9], %s403
          %s405 = sand.u32 %s81, 1
          %s406 = smul.addr %s405, 32
          %s407 = scalar_lea.vmem [#allocation8], %s406
          %s408 = smul.u32 2, %s41
          %s410 = ssub.s32 512, 512
          %411 = vsyncadd %s404, %s410
          %s412 = smul.addr %s408, 128
          %s413 = scalar_lea.hbm %s1, %s412
          %s415 = sshll.u32 1, 14
          %s416 = sxor.u32 4294967295, %s415
          %s418 = sld [smem:[#allocation0]]
          %s419 = sadd.s32 2, %s418
          %s421 = sshll.u32 7, 26
          %s422 = sxor.u32 4294967295, %s421
          %s423 = sand.u32 0, %s422
          %s424 = sshll.u32 %s419, 26
          %s425 = sor.u32 %s423, %s424
          %s426 = sshll.u32 %s407, 4
          %s427 = int_to_ptr.vmem [resolvable:$true] %s426
          %433 = sst [smem:[#allocation25]] 512
          %s434 = scalar_lea.smem [#allocation25], 1
          %435 = sst [smem:[%s434]] 256
          %s436 = scalar_lea.smem [#allocation25], 2
          %437 = sst [smem:[%s436]] 2
          %s438 = scalar_lea.smem [#allocation25], 3
          %439 = sst [smem:[%s438]] 128
          %s440 = scalar_lea.smem [#allocation25], 4
          %441 = sst [smem:[%s440]] 128
          %s442 = scalar_lea.smem [#allocation25], 5
          %443 = sst [smem:[%s442]] 8
          %445 = dma.general %s413, 512, %s427, %s404, [#allocation24], [#allocation25], %s425, 0
        $region40: #{flash_phi3_layer.3} parent=31 // pred_fallthru
          _
        // Predicated region
        $region41: #{flash_phi3_layer.3} parent=31 // pred_check
          %p446 = pneg %p117
        $region42: #{flash_phi3_layer.3} parent=31 // pred_check_branch
          %448 = sbr.rel (%p446) target = $region44
        $region43: #{flash_phi3_layer.3} parent=31 // pred_region
          #allocation27 [shape = 'u32[6]{0}', space=smem, size = 0x18, scoped, tag = 'DMA stride descriptor']
          %s449 = sand.u32 %s33, 1
          %s450 = scalar_lea.sflag [#allocation9], %s449
          %s451 = sand.u32 %s107, 1
          %s452 = smul.addr %s451, 32
          %s453 = scalar_lea.vmem [#allocation10], %s452
          %s454 = smul.u32 2, %s41
          %s456 = ssub.s32 512, 512
          %457 = vsyncadd %s450, %s456
          %s458 = smul.addr %s454, 128
          %s459 = scalar_lea.hbm %s2, %s458
          %s461 = sshll.u32 1, 14
          %s462 = sxor.u32 4294967295, %s461
          %s464 = sld [smem:[#allocation0]]
          %s465 = sadd.s32 2, %s464
          %s467 = sshll.u32 7, 26
          %s468 = sxor.u32 4294967295, %s467
          %s469 = sand.u32 0, %s468
          %s470 = sshll.u32 %s465, 26
          %s471 = sor.u32 %s469, %s470
          %s472 = sshll.u32 %s453, 4
          %s473 = int_to_ptr.vmem [resolvable:$true] %s472
          %479 = sst [smem:[#allocation27]] 512
          %s480 = scalar_lea.smem [#allocation27], 1
          %481 = sst [smem:[%s480]] 256
          %s482 = scalar_lea.smem [#allocation27], 2
          %483 = sst [smem:[%s482]] 2
          %s484 = scalar_lea.smem [#allocation27], 3
          %485 = sst [smem:[%s484]] 128
          %s486 = scalar_lea.smem [#allocation27], 4
          %487 = sst [smem:[%s486]] 128
          %s488 = scalar_lea.smem [#allocation27], 5
          %489 = sst [smem:[%s488]] 8
          %491 = dma.general %s459, 512, %s473, %s450, [#allocation26], [#allocation27], %s471, 0
        $region44: #{flash_phi3_layer.3} parent=31 // pred_fallthru
          _
        // Predicated region
        $region45: #{flash_phi3_layer.3} parent=31 // pred_check
          %p492 = pneg %p143
        $region46: #{flash_phi3_layer.3} parent=31 // pred_check_branch
          %494 = sbr.rel (%p492) target = $region48
        $region47: #{flash_phi3_layer.3} parent=31 // pred_region
          %s495 = sand.u32 %s33, 1
          %s496 = scalar_lea.sflag [#allocation12], %s495
          %s497 = sand.u32 %s133, 1
          %s498 = smul.addr %s497, 16
          %s499 = scalar_lea.vmem [#allocation11], %s498
          %s500 = smul.u32 2, %s40
          %s502 = ssub.s32 256, 256
          %503 = vsyncadd %s496, %s502
          %s504 = smul.addr %s500, 128
          %s505 = scalar_lea.hbm %s3, %s504
          %s506 = sshll.u32 %s499, 4
          %s507 = int_to_ptr.vmem [resolvable:$true] %s506
          %512 = dma.hbm_to_vmem [thread:$0]  %s505, 256, %s507, %s496, 128, 128, 8
        $region48: #{flash_phi3_layer.3} parent=31 // pred_fallthru
          _
      $region32: #{flash_phi3_layer.3} parent=5 // pred_fallthru
        _
      %p513 = scmp.le.s32.totalorder 1, %s33
      %p514 = scmp.lt.s32.totalorder %s33, 5
      %p515 = pnand %p513, %p514
      %p516 = pneg %p515
      // Predicated region
      $region49: #{flash_phi3_layer.3} parent=5 // pred_check
        _
      $region50: #{flash_phi3_layer.3} parent=5 // pred_check_branch
        %518 = sbr.rel (%p515) target = $region52
      $region51: #{flash_phi3_layer.3} parent=5 // pred_region
        %s519 = ssub.s32 %s33, 1
        %s520 = sand.u32 %s58, 1
        %s521 = scalar_lea.sflag [#allocation6], %s520
        %s522 = sand.u32 %s58, 1
        %s523 = smul.addr %s522, 64
        %s524 = scalar_lea.vmem [#allocation5], %s523
        // Predicated region
        $region53: #{flash_phi3_layer.3} parent=51 // pred_check
          %p525 = pneg %p71
        $region54: #{flash_phi3_layer.3} parent=51 // pred_check_branch
          %527 = sbr.rel (%p525) target = $region56
        $region55: #{flash_phi3_layer.3} parent=51 // pred_region
          %528 = dma.done %s521, 1024
        $region56: #{flash_phi3_layer.3} parent=51 // pred_fallthru
          _
        %s529 = sand.u32 %s38, 1
        %s530 = scalar_lea.sflag [#allocation9], %s529
        %s531 = sand.u32 %s84, 1
        %s532 = smul.addr %s531, 32
        %s533 = scalar_lea.vmem [#allocation8], %s532
        // Predicated region
        $region57: #{flash_phi3_layer.3} parent=51 // pred_check
          %p534 = pneg %p97
        $region58: #{flash_phi3_layer.3} parent=51 // pred_check_branch
          %536 = sbr.rel (%p534) target = $region60
        $region59: #{flash_phi3_layer.3} parent=51 // pred_region
          %537 = dma.done %s530, 512
        $region60: #{flash_phi3_layer.3} parent=51 // pred_fallthru
          _
        %s538 = sand.u32 %s38, 1
        %s539 = scalar_lea.sflag [#allocation9], %s538
        %s540 = sand.u32 %s110, 1
        %s541 = smul.addr %s540, 32
        %s542 = scalar_lea.vmem [#allocation10], %s541
        // Predicated region
        $region61: #{flash_phi3_layer.3} parent=51 // pred_check
          %p543 = pneg %p123
        $region62: #{flash_phi3_layer.3} parent=51 // pred_check_branch
          %545 = sbr.rel (%p543) target = $region64
        $region63: #{flash_phi3_layer.3} parent=51 // pred_region
          %546 = dma.done %s539, 512
        $region64: #{flash_phi3_layer.3} parent=51 // pred_fallthru
          _
        %s547 = sand.u32 %s38, 1
        %s548 = scalar_lea.sflag [#allocation12], %s547
        %s549 = sand.u32 %s136, 1
        %s550 = smul.addr %s549, 16
        %s551 = scalar_lea.vmem [#allocation11], %s550
        // Predicated region
        $region65: #{flash_phi3_layer.3} parent=51 // pred_check
          %p552 = pneg %p149
        $region66: #{flash_phi3_layer.3} parent=51 // pred_check_branch
          %554 = sbr.rel (%p552) target = $region68
        $region67: #{flash_phi3_layer.3} parent=51 // pred_region
          %555 = dma.done %s548, 256
        $region68: #{flash_phi3_layer.3} parent=51 // pred_fallthru
          _
        // Predicated region
        $region69: #{flash_phi3_layer.3} parent=51 // pred_check
          %p556 = pneg %p170
        $region70: #{flash_phi3_layer.3} parent=51 // pred_check_branch
          %558 = sbr.rel (%p556) target = $region72
        $region71: #{flash_phi3_layer.3} parent=51 // pred_region
          %559 = dma.done [#allocation12], 16
        $region72: #{flash_phi3_layer.3} parent=51 // pred_fallthru
          _
        // Predicated region
        $region73: #{flash_phi3_layer.3} parent=51 // pred_check
          %p560 = pneg %p191
        $region74: #{flash_phi3_layer.3} parent=51 // pred_check_branch
          %562 = sbr.rel (%p560) target = $region76
        $region75: #{flash_phi3_layer.3} parent=51 // pred_region
          %563 = dma.done [#allocation15], 1024
        $region76: #{flash_phi3_layer.3} parent=51 // pred_fallthru
          _
        // Predicated region
        $region77: #{flash_phi3_layer.3} parent=51 // pred_check
          %p564 = pneg %p212
        $region78: #{flash_phi3_layer.3} parent=51 // pred_check_branch
          %566 = sbr.rel (%p564) target = $region80
        $region79: #{flash_phi3_layer.3} parent=51 // pred_region
          %567 = dma.done [#allocation15], 4096
        $region80: #{flash_phi3_layer.3} parent=51 // pred_fallthru
          _
        // Predicated region
        $region81: #{flash_phi3_layer.3} parent=51 // pred_check
          %p568 = pneg %p233
        $region82: #{flash_phi3_layer.3} parent=51 // pred_check_branch
          %570 = sbr.rel (%p568) target = $region84
        $region83: #{flash_phi3_layer.3} parent=51 // pred_region
          %571 = dma.done [#allocation18], 2048
        $region84: #{flash_phi3_layer.3} parent=51 // pred_fallthru
          _
        %s572 = sand.u32 %s58, 1
        %s573 = scalar_lea.sflag [#allocation6], %s572
        %s574 = sand.u32 %s58, 1
        %s575 = smul.addr %s574, 64
        %s576 = scalar_lea.vmem [#allocation5], %s575
        %p577 = pneg %p71
        %p578 = pneg %p68
        %s579 = sand.u32 %s38, 1
        %s580 = scalar_lea.sflag [#allocation9], %s579
        %s581 = sand.u32 %s84, 1
        %s582 = smul.addr %s581, 32
        %s583 = scalar_lea.vmem [#allocation8], %s582
        %p584 = pneg %p97
        %p585 = pneg %p94
        %s586 = sand.u32 %s38, 1
        %s587 = scalar_lea.sflag [#allocation9], %s586
        %s588 = sand.u32 %s110, 1
        %s589 = smul.addr %s588, 32
        %s590 = scalar_lea.vmem [#allocation10], %s589
        %p591 = pneg %p123
        %p592 = pneg %p120
        %s593 = sand.u32 %s38, 1
        %s594 = scalar_lea.sflag [#allocation12], %s593
        %s595 = sand.u32 %s136, 1
        %s596 = smul.addr %s595, 16
        %s597 = scalar_lea.vmem [#allocation11], %s596
        %p598 = pneg %p149
        %p599 = pneg %p146
        %p600 = pneg %p170
        %p601 = pneg %p167
        %p602 = pneg %p191
        %p603 = pneg %p188
        %p604 = pneg %p212
        %p605 = pneg %p209
        %p606 = pneg %p233
        %p607 = pneg %p230
        %p608 = pneg %p259
        %p609 = pneg %p256
        %s610 = sand.u32 %s246, 1
        %s611 = scalar_lea.sflag [#allocation7], %s610
        %s612 = sand.u32 %s246, 1
        %s613 = smul.addr %s612, 16
        %s614 = scalar_lea.vmem [#allocation19], %s613
        %p615 = pneg %p285
        %p616 = pneg %p282
        %s617 = sand.u32 %s272, 1
        %s618 = scalar_lea.sflag [#allocation21], %s617
        %s619 = sand.u32 %s272, 1
        %s620 = smul.addr %s619, 16
        %s621 = scalar_lea.vmem [#allocation20], %s620
        %s622 = smul.u32 2, %s42
        %s623 = smul.u32 2, %s43
        %s624 = smul.u32 2, %s43
        %s625 = smul.u32 2, %s42
        %s626 = smul.u32 2, %s42
        %s627 = smul.u32 2, %s42
        %p629 = scmp.eq.s32.totalorder %s43, 0
        // Predicated region
        $region85: #{flash_phi3_layer.3} parent=51 // pred_check
          %p630 = pneg %p629
        $region86: #{flash_phi3_layer.3} parent=51 // pred_check_branch
          %632 = sbr.rel (%p630) target = $region88
        $region87: #{flash_phi3_layer.3} parent=51 // pred_region
          %vm633 = vcmask 7168
          %634 = vst.msk [vmem:[#allocation2] sm:$0xff] %vm633, -1e+30
          %635 = vst.msk [vmem:[#allocation2 + $0x8] sm:$0xff] %vm633, -1e+30
          %636 = vst.msk [vmem:[#allocation2 + $0x10] sm:$0xff] %vm633, -1e+30
          %637 = vst.msk [vmem:[#allocation2 + $0x18] sm:$0xff] %vm633, -1e+30
          %638 = vst.msk [vmem:[#allocation2 + $0x20] sm:$0xff] %vm633, -1e+30
          %639 = vst.msk [vmem:[#allocation2 + $0x28] sm:$0xff] %vm633, -1e+30
          %640 = vst.msk [vmem:[#allocation2 + $0x30] sm:$0xff] %vm633, -1e+30
          %641 = vst.msk [vmem:[#allocation2 + $0x38] sm:$0xff] %vm633, -1e+30
          %642 = vst.msk [vmem:[#allocation3] sm:$0xff] %vm633, 0.0
          %643 = vst.msk [vmem:[#allocation3 + $0x8] sm:$0xff] %vm633, 0.0
          %644 = vst.msk [vmem:[#allocation3 + $0x10] sm:$0xff] %vm633, 0.0
          %645 = vst.msk [vmem:[#allocation3 + $0x18] sm:$0xff] %vm633, 0.0
          %646 = vst.msk [vmem:[#allocation3 + $0x20] sm:$0xff] %vm633, 0.0
          %647 = vst.msk [vmem:[#allocation3 + $0x28] sm:$0xff] %vm633, 0.0
          %648 = vst.msk [vmem:[#allocation3 + $0x30] sm:$0xff] %vm633, 0.0
          %649 = vst.msk [vmem:[#allocation3 + $0x38] sm:$0xff] %vm633, 0.0
          %vm650 = vcmask 261120
          %651 = vst.msk [vmem:[#allocation4] sm:$0xff] %vm650, 0.0
          %652 = vst.msk [vmem:[#allocation4 + $0x8] sm:$0xff] %vm650, 0.0
          %653 = vst.msk [vmem:[#allocation4 + $0x10] sm:$0xff] %vm650, 0.0
          %654 = vst.msk [vmem:[#allocation4 + $0x18] sm:$0xff] %vm650, 0.0
          %655 = vst.msk [vmem:[#allocation4 + $0x20] sm:$0xff] %vm650, 0.0
          %656 = vst.msk [vmem:[#allocation4 + $0x28] sm:$0xff] %vm650, 0.0
          %657 = vst.msk [vmem:[#allocation4 + $0x30] sm:$0xff] %vm650, 0.0
          %658 = vst.msk [vmem:[#allocation4 + $0x38] sm:$0xff] %vm650, 0.0
        $region88: #{flash_phi3_layer.3} parent=51 // pred_fallthru
          _
        %s659 = smul.u32 %s43, 16
        %s660 = smul.u32 %s42, 16
        %s661 = sadd.s32 %s660, 15
        %p662 = scmp.le.s32.totalorder %s659, %s661
        // Predicated region
        $region89: #{flash_phi3_layer.3} parent=51 // pred_check
          %p663 = pneg %p662
        $region90: #{flash_phi3_layer.3} parent=51 // pred_check_branch
          %665 = sbr.rel (%p663) target = $region92
        $region91: #{flash_phi3_layer.3} parent=51 // pred_region
          %v666 = vld [vmem:[%s524] sm:$0xff]
          %v667 = vld [vmem:[%s524 + $0x8] sm:$0xff]
          %v668 = vld [vmem:[%s524 + $0x10] sm:$0xff]
          %v669 = vld [vmem:[%s524 + $0x18] sm:$0xff]
          %v670 = vld [vmem:[%s524 + $0x20] sm:$0xff]
          %v671 = vld [vmem:[%s524 + $0x28] sm:$0xff]
          %v672 = vld [vmem:[%s524 + $0x30] sm:$0xff]
          %v673 = vld [vmem:[%s524 + $0x38] sm:$0xff]
          %v674 = vpack.c.bf16 %v667, %v666
          %v675 = vpack.c.bf16 %v669, %v668
          %v676 = vpack.c.bf16 %v671, %v670
          %v677 = vpack.c.bf16 %v673, %v672
          %v678 = vld [vmem:[%s533] sm:$0xff]
          %v679 = vld [vmem:[%s533 + $0x8] sm:$0xff]
          %v680 = vld [vmem:[%s533 + $0x10] sm:$0xff]
          %v681 = vld [vmem:[%s533 + $0x18] sm:$0xff]
          %v682 = vpack.c.bf16 %v679, %v678
          %v683 = vpack.c.bf16 %v681, %v680
          %v684 = vld [vmem:[%s542] sm:$0xff]
          %v685 = vld [vmem:[%s542 + $0x8] sm:$0xff]
          %v686 = vld [vmem:[%s542 + $0x10] sm:$0xff]
          %v687 = vld [vmem:[%s542 + $0x18] sm:$0xff]
          %v688 = vpack.c.bf16 %v685, %v684
          %v689 = vpack.c.bf16 %v687, %v686
          %vm690 = vcmask 261120
          %v692 = vsel %vm690, %v674, 0
          %v695 = vsel %vm690, %v682, 0
          %697 = vmatprep.subr.bf16.mxu0 0
          %698 = vmatpush1.bf16.xpose.msra.mxu0 %v695
          %699 = vmatprep.subr.bf16.mxu0 0
          %700 = vmatpush1.bf16.xpose.msra.mxu0 0
          %701 = vmatprep.subr.bf16.mxu0 0
          %702 = vmatpush1.bf16.xpose.msra.mxu0 0
          %703 = vmatprep.subr.bf16.mxu0 0
          %704 = vmatpush1.bf16.xpose.msra.mxu0 0
          %705 = vmatprep.subr.bf16.mxu0 0
          %706 = vmatpush1.bf16.xpose.msra.mxu0 0
          %707 = vmatprep.subr.bf16.mxu0 0
          %708 = vmatpush1.bf16.xpose.msra.mxu0 0
          %709 = vmatprep.subr.bf16.mxu0 0
          %710 = vmatpush1.bf16.xpose.msra.mxu0 0
          %711 = vmatprep.subr.bf16.mxu0 0
          %712 = vmatpush1.bf16.xpose.msra.mxu0 0
          %713 = vmatprep.subr.bf16.mxu0 0
          %714 = vmatpush1.bf16.xpose.msra.mxu0 0
          %715 = vmatprep.subr.bf16.mxu0 0
          %716 = vmatpush1.bf16.xpose.msra.mxu0 0
          %717 = vmatprep.subr.bf16.mxu0 0
          %718 = vmatpush1.bf16.xpose.msra.mxu0 0
          %719 = vmatprep.subr.bf16.mxu0 0
          %720 = vmatpush1.bf16.xpose.msra.mxu0 0
          %721 = vmatprep.subr.bf16.mxu0 0
          %722 = vmatpush1.bf16.xpose.msra.mxu0 0
          %723 = vmatprep.subr.bf16.mxu0 0
          %724 = vmatpush1.bf16.xpose.msra.mxu0 0
          %725 = vmatprep.subr.bf16.mxu0 0
          %726 = vmatpush1.bf16.xpose.msra.mxu0 0
          %727 = vmatprep.subr.bf16.mxu0 0
          %728 = vmatpush1.bf16.xpose.msra.mxu0 0
          %729 = vmatprep.mubr.bf16.mxu0 0
          %730 = vmatmul.mubr.bf16.gmra.mrb[0].mxu0 %v692
          %v731 = vpop.f32.mrb[0].mxu0
          %v732 = vadd.f32 0.0, %v731
          %v733 = vpop.f32.mrb[0].mxu0
          %v734 = vpop.f32.mrb[0].mxu0
          %v735 = vadd.f32 0.0, %v734
          %v736 = vpop.f32.mrb[0].mxu0
          %737 = vdwg.mxu0
          %v739 = vsel %vm690, %v675, 0
          %741 = vmatprep.subr.bf16.mxu0 0
          %742 = vmatpush1.bf16.xpose.msra.mxu0 %v695
          %743 = vmatprep.subr.bf16.mxu0 0
          %744 = vmatpush1.bf16.xpose.msra.mxu0 0
          %745 = vmatprep.subr.bf16.mxu0 0
          %746 = vmatpush1.bf16.xpose.msra.mxu0 0
          %747 = vmatprep.subr.bf16.mxu0 0
          %748 = vmatpush1.bf16.xpose.msra.mxu0 0
          %749 = vmatprep.subr.bf16.mxu0 0
          %750 = vmatpush1.bf16.xpose.msra.mxu0 0
          %751 = vmatprep.subr.bf16.mxu0 0
          %752 = vmatpush1.bf16.xpose.msra.mxu0 0
          %753 = vmatprep.subr.bf16.mxu0 0
          %754 = vmatpush1.bf16.xpose.msra.mxu0 0
          %755 = vmatprep.subr.bf16.mxu0 0
          %756 = vmatpush1.bf16.xpose.msra.mxu0 0
          %757 = vmatprep.subr.bf16.mxu0 0
          %758 = vmatpush1.bf16.xpose.msra.mxu0 0
          %759 = vmatprep.subr.bf16.mxu0 0
          %760 = vmatpush1.bf16.xpose.msra.mxu0 0
          %761 = vmatprep.subr.bf16.mxu0 0
          %762 = vmatpush1.bf16.xpose.msra.mxu0 0
          %763 = vmatprep.subr.bf16.mxu0 0
          %764 = vmatpush1.bf16.xpose.msra.mxu0 0
          %765 = vmatprep.subr.bf16.mxu0 0
          %766 = vmatpush1.bf16.xpose.msra.mxu0 0
          %767 = vmatprep.subr.bf16.mxu0 0
          %768 = vmatpush1.bf16.xpose.msra.mxu0 0
          %769 = vmatprep.subr.bf16.mxu0 0
          %770 = vmatpush1.bf16.xpose.msra.mxu0 0
          %771 = vmatprep.subr.bf16.mxu0 0
          %772 = vmatpush1.bf16.xpose.msra.mxu0 0
          %773 = vmatprep.mubr.bf16.mxu0 0
          %774 = vmatmul.mubr.bf16.gmra.mrb[0].mxu0 %v739
          %v775 = vpop.f32.mrb[0].mxu0
          %v776 = vadd.f32 0.0, %v775
          %v777 = vpop.f32.mrb[0].mxu0
          %v778 = vpop.f32.mrb[0].mxu0
          %v779 = vadd.f32 0.0, %v778
          %v780 = vpop.f32.mrb[0].mxu0
          %781 = vdwg.mxu0
          %v783 = vsel %vm690, %v676, 0
          %v786 = vsel %vm690, %v683, 0
          %788 = vmatprep.subr.bf16.mxu0 0
          %789 = vmatpush1.bf16.xpose.msra.mxu0 %v786
          %790 = vmatprep.subr.bf16.mxu0 0
          %791 = vmatpush1.bf16.xpose.msra.mxu0 0
          %792 = vmatprep.subr.bf16.mxu0 0
          %793 = vmatpush1.bf16.xpose.msra.mxu0 0
          %794 = vmatprep.subr.bf16.mxu0 0
          %795 = vmatpush1.bf16.xpose.msra.mxu0 0
          %796 = vmatprep.subr.bf16.mxu0 0
          %797 = vmatpush1.bf16.xpose.msra.mxu0 0
          %798 = vmatprep.subr.bf16.mxu0 0
          %799 = vmatpush1.bf16.xpose.msra.mxu0 0
          %800 = vmatprep.subr.bf16.mxu0 0
          %801 = vmatpush1.bf16.xpose.msra.mxu0 0
          %802 = vmatprep.subr.bf16.mxu0 0
          %803 = vmatpush1.bf16.xpose.msra.mxu0 0
          %804 = vmatprep.subr.bf16.mxu0 0
          %805 = vmatpush1.bf16.xpose.msra.mxu0 0
          %806 = vmatprep.subr.bf16.mxu0 0
          %807 = vmatpush1.bf16.xpose.msra.mxu0 0
          %808 = vmatprep.subr.bf16.mxu0 0
          %809 = vmatpush1.bf16.xpose.msra.mxu0 0
          %810 = vmatprep.subr.bf16.mxu0 0
          %811 = vmatpush1.bf16.xpose.msra.mxu0 0
          %812 = vmatprep.subr.bf16.mxu0 0
          %813 = vmatpush1.bf16.xpose.msra.mxu0 0
          %814 = vmatprep.subr.bf16.mxu0 0
          %815 = vmatpush1.bf16.xpose.msra.mxu0 0
          %816 = vmatprep.subr.bf16.mxu0 0
          %817 = vmatpush1.bf16.xpose.msra.mxu0 0
          %818 = vmatprep.subr.bf16.mxu0 0
          %819 = vmatpush1.bf16.xpose.msra.mxu0 0
          %820 = vmatprep.mubr.bf16.mxu0 0
          %821 = vmatmul.mubr.bf16.gmra.mrb[0].mxu0 %v783
          %v822 = vpop.f32.mrb[0].mxu0
          %v823 = vadd.f32 0.0, %v822
          %v824 = vpop.f32.mrb[0].mxu0
          %v825 = vpop.f32.mrb[0].mxu0
          %v826 = vadd.f32 0.0, %v825
          %v827 = vpop.f32.mrb[0].mxu0
          %828 = vdwg.mxu0
          %v830 = vsel %vm690, %v677, 0
          %832 = vmatprep.subr.bf16.mxu0 0
          %833 = vmatpush1.bf16.xpose.msra.mxu0 %v786
          %834 = vmatprep.subr.bf16.mxu0 0
          %835 = vmatpush1.bf16.xpose.msra.mxu0 0
          %836 = vmatprep.subr.bf16.mxu0 0
          %837 = vmatpush1.bf16.xpose.msra.mxu0 0
          %838 = vmatprep.subr.bf16.mxu0 0
          %839 = vmatpush1.bf16.xpose.msra.mxu0 0
          %840 = vmatprep.subr.bf16.mxu0 0
          %841 = vmatpush1.bf16.xpose.msra.mxu0 0
          %842 = vmatprep.subr.bf16.mxu0 0
          %843 = vmatpush1.bf16.xpose.msra.mxu0 0
          %844 = vmatprep.subr.bf16.mxu0 0
          %845 = vmatpush1.bf16.xpose.msra.mxu0 0
          %846 = vmatprep.subr.bf16.mxu0 0
          %847 = vmatpush1.bf16.xpose.msra.mxu0 0
          %848 = vmatprep.subr.bf16.mxu0 0
          %849 = vmatpush1.bf16.xpose.msra.mxu0 0
          %850 = vmatprep.subr.bf16.mxu0 0
          %851 = vmatpush1.bf16.xpose.msra.mxu0 0
          %852 = vmatprep.subr.bf16.mxu0 0
          %853 = vmatpush1.bf16.xpose.msra.mxu0 0
          %854 = vmatprep.subr.bf16.mxu0 0
          %855 = vmatpush1.bf16.xpose.msra.mxu0 0
          %856 = vmatprep.subr.bf16.mxu0 0
          %857 = vmatpush1.bf16.xpose.msra.mxu0 0
          %858 = vmatprep.subr.bf16.mxu0 0
          %859 = vmatpush1.bf16.xpose.msra.mxu0 0
          %860 = vmatprep.subr.bf16.mxu0 0
          %861 = vmatpush1.bf16.xpose.msra.mxu0 0
          %862 = vmatprep.subr.bf16.mxu0 0
          %863 = vmatpush1.bf16.xpose.msra.mxu0 0
          %864 = vmatprep.mubr.bf16.mxu0 0
          %865 = vmatmul.mubr.bf16.gmra.mrb[0].mxu0 %v830
          %v866 = vpop.f32.mrb[0].mxu0
          %v867 = vadd.f32 0.0, %v866
          %v868 = vpop.f32.mrb[0].mxu0
          %v869 = vpop.f32.mrb[0].mxu0
          %v870 = vadd.f32 0.0, %v869
          %v871 = vpop.f32.mrb[0].mxu0
          %872 = vdwg.mxu0
          %v873 = vmul.f32 %v732, 0.17677669
          %v874 = vmul.f32 %v735, 0.17677669
          %v875 = vmul.f32 %v776, 0.17677669
          %v876 = vmul.f32 %v779, 0.17677669
          %v877 = vmul.f32 %v823, 0.17677669
          %v878 = vmul.f32 %v826, 0.17677669
          %v879 = vmul.f32 %v867, 0.17677669
          %v880 = vmul.f32 %v870, 0.17677669
          %v881 = vlaneseq
          %v882 = vshrl.u32 %v881, 7
          %v883 = vadd.s32 %v882, 8
          %v884 = vstv %s660
          %v885 = vadd.s32 %v884, %v882
          %v886 = vadd.s32 %v884, %v883
          %v887 = vlaneseq
          %v888 = vand.u32 %v887, 127
          %v889 = vstv %s659
          %v890 = vadd.s32 %v889, %v888
          %vm891 = vcmp.le.s32.totalorder %v890, %v885
          %vm892 = vcmp.le.s32.totalorder %v890, %v886
          %v893 = vsel %vm891, 1, 0
          %v894 = vsel %vm892, 1, 0
          %vm895 = vcmp.eq.s32.totalorder %v893, 1
          %vm896 = vcmp.eq.s32.totalorder %v894, 1
          %v897 = vsel %vm895, %v873, -1e+30
          %v898 = vsel %vm896, %v874, -1e+30
          %v899 = vsel %vm895, %v875, -1e+30
          %v900 = vsel %vm896, %v876, -1e+30
          %v901 = vsel %vm895, %v877, -1e+30
          %v902 = vsel %vm896, %v878, -1e+30
          %v903 = vsel %vm895, %v879, -1e+30
          %v904 = vsel %vm896, %v880, -1e+30
          %v905 = vld [vmem:[#allocation2] sm:$0xff]
          %v906 = vld [vmem:[#allocation2 + $0x8] sm:$0xff]
          %v907 = vld [vmem:[#allocation2 + $0x10] sm:$0xff]
          %v908 = vld [vmem:[#allocation2 + $0x18] sm:$0xff]
          %v909 = vld [vmem:[#allocation2 + $0x20] sm:$0xff]
          %v910 = vld [vmem:[#allocation2 + $0x28] sm:$0xff]
          %v911 = vld [vmem:[#allocation2 + $0x30] sm:$0xff]
          %v912 = vld [vmem:[#allocation2 + $0x38] sm:$0xff]
          %vm913 = vcmask 130048
          %v914 = vsel %vm913, %v897, -inf
          %915 = vmax.xlane.f32.xlu0 %v914
          %v916 = vpop.xlane.xlu0 %915
          %v917 = vsel %vm913, %v898, -inf
          %918 = vmax.xlane.f32.xlu0 %v917
          %v919 = vpop.xlane.xlu0 %918
          %v920 = vsel %vm913, %v899, -inf
          %921 = vmax.xlane.f32.xlu0 %v920
          %v922 = vpop.xlane.xlu0 %921
          %v923 = vsel %vm913, %v900, -inf
          %924 = vmax.xlane.f32.xlu0 %v923
          %v925 = vpop.xlane.xlu0 %924
          %v926 = vsel %vm913, %v901, -inf
          %927 = vmax.xlane.f32.xlu0 %v926
          %v928 = vpop.xlane.xlu0 %927
          %v929 = vsel %vm913, %v902, -inf
          %930 = vmax.xlane.f32.xlu0 %v929
          %v931 = vpop.xlane.xlu0 %930
          %v932 = vsel %vm913, %v903, -inf
          %933 = vmax.xlane.f32.xlu0 %v932
          %v934 = vpop.xlane.xlu0 %933
          %v935 = vsel %vm913, %v904, -inf
          %936 = vmax.xlane.f32.xlu0 %v935
          %v937 = vpop.xlane.xlu0 %936
          %v938 = vmax.f32 %v905, %v916
          %v939 = vmax.f32 %v906, %v919
          %v940 = vmax.f32 %v907, %v922
          %v941 = vmax.f32 %v908, %v925
          %v942 = vmax.f32 %v909, %v928
          %v943 = vmax.f32 %v910, %v931
          %v944 = vmax.f32 %v911, %v934
          %v945 = vmax.f32 %v912, %v937
          %v946 = vsub.f32 %v905, %v938
          %v947 = vsub.f32 %v906, %v939
          %v948 = vsub.f32 %v907, %v940
          %v949 = vsub.f32 %v908, %v941
          %v950 = vsub.f32 %v909, %v942
          %v951 = vsub.f32 %v910, %v943
          %v952 = vsub.f32 %v911, %v944
          %v953 = vsub.f32 %v912, %v945
          %v954 = vmul.f32 %v946, 1.442695
          %v955 = vpow.pop %v954
          %v956 = vmul.f32 %v947, 1.442695
          %v957 = vpow.pop %v956
          %v958 = vmul.f32 %v948, 1.442695
          %v959 = vpow.pop %v958
          %v960 = vmul.f32 %v949, 1.442695
          %v961 = vpow.pop %v960
          %v962 = vmul.f32 %v950, 1.442695
          %v963 = vpow.pop %v962
          %v964 = vmul.f32 %v951, 1.442695
          %v965 = vpow.pop %v964
          %v966 = vmul.f32 %v952, 1.442695
          %v967 = vpow.pop %v966
          %v968 = vmul.f32 %v953, 1.442695
          %v969 = vpow.pop %v968
          %971 = vset.pattern.permute.xlu0 0
          %972 = vperm.xlu0 %971, %v938
          %v973 = vpop.permute.xlu0 %972
          %976 = vset.pattern.permute.xlu0 0
          %977 = vperm.xlu0 %976, %v939
          %v978 = vpop.permute.xlu0 %977
          %981 = vset.pattern.permute.xlu0 0
          %982 = vperm.xlu0 %981, %v940
          %v983 = vpop.permute.xlu0 %982
          %986 = vset.pattern.permute.xlu0 0
          %987 = vperm.xlu0 %986, %v941
          %v988 = vpop.permute.xlu0 %987
          %991 = vset.pattern.permute.xlu0 0
          %992 = vperm.xlu0 %991, %v942
          %v993 = vpop.permute.xlu0 %992
          %996 = vset.pattern.permute.xlu0 0
          %997 = vperm.xlu0 %996, %v943
          %v998 = vpop.permute.xlu0 %997
          %1001 = vset.pattern.permute.xlu0 0
          %1002 = vperm.xlu0 %1001, %v944
          %v1003 = vpop.permute.xlu0 %1002
          %1006 = vset.pattern.permute.xlu0 0
          %1007 = vperm.xlu0 %1006, %v945
          %v1008 = vpop.permute.xlu0 %1007
          %v1010 = vsub.f32 %v897, %v973
          %v1011 = vsub.f32 %v898, %v978
          %v1012 = vsub.f32 %v899, %v983
          %v1013 = vsub.f32 %v900, %v988
          %v1014 = vsub.f32 %v901, %v993
          %v1015 = vsub.f32 %v902, %v998
          %v1016 = vsub.f32 %v903, %v1003
          %v1017 = vsub.f32 %v904, %v1008
          %v1018 = vmul.f32 %v1010, 1.442695
          %v1019 = vpow.pop %v1018
          %v1020 = vmul.f32 %v1011, 1.442695
          %v1021 = vpow.pop %v1020
          %v1022 = vmul.f32 %v1012, 1.442695
          %v1023 = vpow.pop %v1022
          %v1024 = vmul.f32 %v1013, 1.442695
          %v1025 = vpow.pop %v1024
          %v1026 = vmul.f32 %v1014, 1.442695
          %v1027 = vpow.pop %v1026
          %v1028 = vmul.f32 %v1015, 1.442695
          %v1029 = vpow.pop %v1028
          %v1030 = vmul.f32 %v1016, 1.442695
          %v1031 = vpow.pop %v1030
          %v1032 = vmul.f32 %v1017, 1.442695
          %v1033 = vpow.pop %v1032
          %v1034 = vld [vmem:[#allocation3] sm:$0xff]
          %v1035 = vld [vmem:[#allocation3 + $0x8] sm:$0xff]
          %v1036 = vld [vmem:[#allocation3 + $0x10] sm:$0xff]
          %v1037 = vld [vmem:[#allocation3 + $0x18] sm:$0xff]
          %v1038 = vld [vmem:[#allocation3 + $0x20] sm:$0xff]
          %v1039 = vld [vmem:[#allocation3 + $0x28] sm:$0xff]
          %v1040 = vld [vmem:[#allocation3 + $0x30] sm:$0xff]
          %v1041 = vld [vmem:[#allocation3 + $0x38] sm:$0xff]
          %v1042 = vmul.f32 %v955, %v1034
          %v1043 = vmul.f32 %v957, %v1035
          %v1044 = vmul.f32 %v959, %v1036
          %v1045 = vmul.f32 %v961, %v1037
          %v1046 = vmul.f32 %v963, %v1038
          %v1047 = vmul.f32 %v965, %v1039
          %v1048 = vmul.f32 %v967, %v1040
          %v1049 = vmul.f32 %v969, %v1041
          %v1050 = vsel %vm913, %v1019, 0.0
          %1051 = vadd.xlane.f32.xlu0 %v1050
          %v1052 = vpop.xlane.xlu0 %1051
          %v1053 = vsel %vm913, %v1021, 0.0
          %1054 = vadd.xlane.f32.xlu0 %v1053
          %v1055 = vpop.xlane.xlu0 %1054
          %v1056 = vsel %vm913, %v1023, 0.0
          %1057 = vadd.xlane.f32.xlu0 %v1056
          %v1058 = vpop.xlane.xlu0 %1057
          %v1059 = vsel %vm913, %v1025, 0.0
          %1060 = vadd.xlane.f32.xlu0 %v1059
          %v1061 = vpop.xlane.xlu0 %1060
          %v1062 = vsel %vm913, %v1027, 0.0
          %1063 = vadd.xlane.f32.xlu0 %v1062
          %v1064 = vpop.xlane.xlu0 %1063
          %v1065 = vsel %vm913, %v1029, 0.0
          %1066 = vadd.xlane.f32.xlu0 %v1065
          %v1067 = vpop.xlane.xlu0 %1066
          %v1068 = vsel %vm913, %v1031, 0.0
          %1069 = vadd.xlane.f32.xlu0 %v1068
          %v1070 = vpop.xlane.xlu0 %1069
          %v1071 = vsel %vm913, %v1033, 0.0
          %1072 = vadd.xlane.f32.xlu0 %v1071
          %v1073 = vpop.xlane.xlu0 %1072
          %v1074 = vadd.f32 %v1042, %v1052
          %v1075 = vadd.f32 %v1043, %v1055
          %v1076 = vadd.f32 %v1044, %v1058
          %v1077 = vadd.f32 %v1045, %v1061
          %v1078 = vadd.f32 %v1046, %v1064
          %v1079 = vadd.f32 %v1047, %v1067
          %v1080 = vadd.f32 %v1048, %v1070
          %v1081 = vadd.f32 %v1049, %v1073
          %vm1082 = vcmask 7168
          %1083 = vst.msk [vmem:[#allocation3] sm:$0xff] %vm1082, %v1074
          %1084 = vst.msk [vmem:[#allocation3 + $0x8] sm:$0xff] %vm1082, %v1075
          %1085 = vst.msk [vmem:[#allocation3 + $0x10] sm:$0xff] %vm1082, %v1076
          %1086 = vst.msk [vmem:[#allocation3 + $0x18] sm:$0xff] %vm1082, %v1077
          %1087 = vst.msk [vmem:[#allocation3 + $0x20] sm:$0xff] %vm1082, %v1078
          %1088 = vst.msk [vmem:[#allocation3 + $0x28] sm:$0xff] %vm1082, %v1079
          %1089 = vst.msk [vmem:[#allocation3 + $0x30] sm:$0xff] %vm1082, %v1080
          %1090 = vst.msk [vmem:[#allocation3 + $0x38] sm:$0xff] %vm1082, %v1081
          %v1091 = vpack.c.bf16 %v1021, %v1019
          %v1092 = vpack.c.bf16 %v1025, %v1023
          %v1093 = vpack.c.bf16 %v1029, %v1027
          %v1094 = vpack.c.bf16 %v1033, %v1031
          %v1096 = vsel %vm913, %v1091, 0
          %1098 = vmatprep.subr.bf16.mxu0 0
          %1099 = vmatpush1.bf16.msra.mxu0 %v688
          %1100 = vmatprep.subr.bf16.mxu0 0
          %1101 = vmatpush1.bf16.msra.mxu0 0
          %1102 = vmatprep.subr.bf16.mxu0 0
          %1103 = vmatpush1.bf16.msra.mxu0 0
          %1104 = vmatprep.subr.bf16.mxu0 0
          %1105 = vmatpush1.bf16.msra.mxu0 0
          %1106 = vmatprep.subr.bf16.mxu0 0
          %1107 = vmatpush1.bf16.msra.mxu0 0
          %1108 = vmatprep.subr.bf16.mxu0 0
          %1109 = vmatpush1.bf16.msra.mxu0 0
          %1110 = vmatprep.subr.bf16.mxu0 0
          %1111 = vmatpush1.bf16.msra.mxu0 0
          %1112 = vmatprep.subr.bf16.mxu0 0
          %1113 = vmatpush1.bf16.msra.mxu0 0
          %1114 = vmatprep.subr.bf16.mxu0 0
          %1115 = vmatpush1.bf16.msra.mxu0 0
          %1116 = vmatprep.subr.bf16.mxu0 0
          %1117 = vmatpush1.bf16.msra.mxu0 0
          %1118 = vmatprep.subr.bf16.mxu0 0
          %1119 = vmatpush1.bf16.msra.mxu0 0
          %1120 = vmatprep.subr.bf16.mxu0 0
          %1121 = vmatpush1.bf16.msra.mxu0 0
          %1122 = vmatprep.subr.bf16.mxu0 0
          %1123 = vmatpush1.bf16.msra.mxu0 0
          %1124 = vmatprep.subr.bf16.mxu0 0
          %1125 = vmatpush1.bf16.msra.mxu0 0
          %1126 = vmatprep.subr.bf16.mxu0 0
          %1127 = vmatpush1.bf16.msra.mxu0 0
          %1128 = vmatprep.subr.bf16.mxu0 0
          %1129 = vmatpush1.bf16.msra.mxu0 0
          %1130 = vmatprep.mubr.bf16.mxu0 0
          %1131 = vmatmul.mubr.bf16.gmra.mrb[0].mxu0 %v1096
          %v1132 = vpop.f32.mrb[0].mxu0
          %v1133 = vadd.f32 0.0, %v1132
          %v1134 = vpop.f32.mrb[0].mxu0
          %v1135 = vpop.f32.mrb[0].mxu0
          %v1136 = vadd.f32 0.0, %v1135
          %v1137 = vpop.f32.mrb[0].mxu0
          %1138 = vdwg.mxu0
          %v1140 = vsel %vm913, %v1092, 0
          %1142 = vmatprep.subr.bf16.mxu0 0
          %1143 = vmatpush1.bf16.msra.mxu0 %v688
          %1144 = vmatprep.subr.bf16.mxu0 0
          %1145 = vmatpush1.bf16.msra.mxu0 0
          %1146 = vmatprep.subr.bf16.mxu0 0
          %1147 = vmatpush1.bf16.msra.mxu0 0
          %1148 = vmatprep.subr.bf16.mxu0 0
          %1149 = vmatpush1.bf16.msra.mxu0 0
          %1150 = vmatprep.subr.bf16.mxu0 0
          %1151 = vmatpush1.bf16.msra.mxu0 0
          %1152 = vmatprep.subr.bf16.mxu0 0
          %1153 = vmatpush1.bf16.msra.mxu0 0
          %1154 = vmatprep.subr.bf16.mxu0 0
          %1155 = vmatpush1.bf16.msra.mxu0 0
          %1156 = vmatprep.subr.bf16.mxu0 0
          %1157 = vmatpush1.bf16.msra.mxu0 0
          %1158 = vmatprep.subr.bf16.mxu0 0
          %1159 = vmatpush1.bf16.msra.mxu0 0
          %1160 = vmatprep.subr.bf16.mxu0 0
          %1161 = vmatpush1.bf16.msra.mxu0 0
          %1162 = vmatprep.subr.bf16.mxu0 0
          %1163 = vmatpush1.bf16.msra.mxu0 0
          %1164 = vmatprep.subr.bf16.mxu0 0
          %1165 = vmatpush1.bf16.msra.mxu0 0
          %1166 = vmatprep.subr.bf16.mxu0 0
          %1167 = vmatpush1.bf16.msra.mxu0 0
          %1168 = vmatprep.subr.bf16.mxu0 0
          %1169 = vmatpush1.bf16.msra.mxu0 0
          %1170 = vmatprep.subr.bf16.mxu0 0
          %1171 = vmatpush1.bf16.msra.mxu0 0
          %1172 = vmatprep.subr.bf16.mxu0 0
          %1173 = vmatpush1.bf16.msra.mxu0 0
          %1174 = vmatprep.mubr.bf16.mxu0 0
          %1175 = vmatmul.mubr.bf16.gmra.mrb[0].mxu0 %v1140
          %v1176 = vpop.f32.mrb[0].mxu0
          %v1177 = vadd.f32 0.0, %v1176
          %v1178 = vpop.f32.mrb[0].mxu0
          %v1179 = vpop.f32.mrb[0].mxu0
          %v1180 = vadd.f32 0.0, %v1179
          %v1181 = vpop.f32.mrb[0].mxu0
          %1182 = vdwg.mxu0
          %v1184 = vsel %vm913, %v1093, 0
          %1186 = vmatprep.subr.bf16.mxu0 0
          %1187 = vmatpush1.bf16.msra.mxu0 %v689
          %1188 = vmatprep.subr.bf16.mxu0 0
          %1189 = vmatpush1.bf16.msra.mxu0 0
          %1190 = vmatprep.subr.bf16.mxu0 0
          %1191 = vmatpush1.bf16.msra.mxu0 0
          %1192 = vmatprep.subr.bf16.mxu0 0
          %1193 = vmatpush1.bf16.msra.mxu0 0
          %1194 = vmatprep.subr.bf16.mxu0 0
          %1195 = vmatpush1.bf16.msra.mxu0 0
          %1196 = vmatprep.subr.bf16.mxu0 0
          %1197 = vmatpush1.bf16.msra.mxu0 0
          %1198 = vmatprep.subr.bf16.mxu0 0
          %1199 = vmatpush1.bf16.msra.mxu0 0
          %1200 = vmatprep.subr.bf16.mxu0 0
          %1201 = vmatpush1.bf16.msra.mxu0 0
          %1202 = vmatprep.subr.bf16.mxu0 0
          %1203 = vmatpush1.bf16.msra.mxu0 0
          %1204 = vmatprep.subr.bf16.mxu0 0
          %1205 = vmatpush1.bf16.msra.mxu0 0
          %1206 = vmatprep.subr.bf16.mxu0 0
          %1207 = vmatpush1.bf16.msra.mxu0 0
          %1208 = vmatprep.subr.bf16.mxu0 0
          %1209 = vmatpush1.bf16.msra.mxu0 0
          %1210 = vmatprep.subr.bf16.mxu0 0
          %1211 = vmatpush1.bf16.msra.mxu0 0
          %1212 = vmatprep.subr.bf16.mxu0 0
          %1213 = vmatpush1.bf16.msra.mxu0 0
          %1214 = vmatprep.subr.bf16.mxu0 0
          %1215 = vmatpush1.bf16.msra.mxu0 0
          %1216 = vmatprep.subr.bf16.mxu0 0
          %1217 = vmatpush1.bf16.msra.mxu0 0
          %1218 = vmatprep.mubr.bf16.mxu0 0
          %1219 = vmatmul.mubr.bf16.gmra.mrb[0].mxu0 %v1184
          %v1220 = vpop.f32.mrb[0].mxu0
          %v1221 = vadd.f32 0.0, %v1220
          %v1222 = vpop.f32.mrb[0].mxu0
          %v1223 = vpop.f32.mrb[0].mxu0
          %v1224 = vadd.f32 0.0, %v1223
          %v1225 = vpop.f32.mrb[0].mxu0
          %1226 = vdwg.mxu0
          %v1228 = vsel %vm913, %v1094, 0
          %1230 = vmatprep.subr.bf16.mxu0 0
          %1231 = vmatpush1.bf16.msra.mxu0 %v689
          %1232 = vmatprep.subr.bf16.mxu0 0
          %1233 = vmatpush1.bf16.msra.mxu0 0
          %1234 = vmatprep.subr.bf16.mxu0 0
          %1235 = vmatpush1.bf16.msra.mxu0 0
          %1236 = vmatprep.subr.bf16.mxu0 0
          %1237 = vmatpush1.bf16.msra.mxu0 0
          %1238 = vmatprep.subr.bf16.mxu0 0
          %1239 = vmatpush1.bf16.msra.mxu0 0
          %1240 = vmatprep.subr.bf16.mxu0 0
          %1241 = vmatpush1.bf16.msra.mxu0 0
          %1242 = vmatprep.subr.bf16.mxu0 0
          %1243 = vmatpush1.bf16.msra.mxu0 0
          %1244 = vmatprep.subr.bf16.mxu0 0
          %1245 = vmatpush1.bf16.msra.mxu0 0
          %1246 = vmatprep.subr.bf16.mxu0 0
          %1247 = vmatpush1.bf16.msra.mxu0 0
          %1248 = vmatprep.subr.bf16.mxu0 0
          %1249 = vmatpush1.bf16.msra.mxu0 0
          %1250 = vmatprep.subr.bf16.mxu0 0
          %1251 = vmatpush1.bf16.msra.mxu0 0
          %1252 = vmatprep.subr.bf16.mxu0 0
          %1253 = vmatpush1.bf16.msra.mxu0 0
          %1254 = vmatprep.subr.bf16.mxu0 0
          %1255 = vmatpush1.bf16.msra.mxu0 0
          %1256 = vmatprep.subr.bf16.mxu0 0
          %1257 = vmatpush1.bf16.msra.mxu0 0
          %1258 = vmatprep.subr.bf16.mxu0 0
          %1259 = vmatpush1.bf16.msra.mxu0 0
          %1260 = vmatprep.subr.bf16.mxu0 0
          %1261 = vmatpush1.bf16.msra.mxu0 0
          %1262 = vmatprep.mubr.bf16.mxu0 0
          %1263 = vmatmul.mubr.bf16.gmra.mrb[0].mxu0 %v1228
          %v1264 = vpop.f32.mrb[0].mxu0
          %v1265 = vadd.f32 0.0, %v1264
          %v1266 = vpop.f32.mrb[0].mxu0
          %v1267 = vpop.f32.mrb[0].mxu0
          %v1268 = vadd.f32 0.0, %v1267
          %v1269 = vpop.f32.mrb[0].mxu0
          %1270 = vdwg.mxu0
          %v1271 = vld [vmem:[#allocation4] sm:$0xff]
          %v1272 = vld [vmem:[#allocation4 + $0x8] sm:$0xff]
          %v1273 = vld [vmem:[#allocation4 + $0x10] sm:$0xff]
          %v1274 = vld [vmem:[#allocation4 + $0x18] sm:$0xff]
          %v1275 = vld [vmem:[#allocation4 + $0x20] sm:$0xff]
          %v1276 = vld [vmem:[#allocation4 + $0x28] sm:$0xff]
          %v1277 = vld [vmem:[#allocation4 + $0x30] sm:$0xff]
          %v1278 = vld [vmem:[#allocation4 + $0x38] sm:$0xff]
          %1280 = vset.pattern.permute.xlu0 0
          %1281 = vperm.xlu0 %1280, %v955
          %v1282 = vpop.permute.xlu0 %1281
          %1285 = vset.pattern.permute.xlu0 0
          %1286 = vperm.xlu0 %1285, %v957
          %v1287 = vpop.permute.xlu0 %1286
          %1290 = vset.pattern.permute.xlu0 0
          %1291 = vperm.xlu0 %1290, %v959
          %v1292 = vpop.permute.xlu0 %1291
          %1295 = vset.pattern.permute.xlu0 0
          %1296 = vperm.xlu0 %1295, %v961
          %v1297 = vpop.permute.xlu0 %1296
          %1300 = vset.pattern.permute.xlu0 0
          %1301 = vperm.xlu0 %1300, %v963
          %v1302 = vpop.permute.xlu0 %1301
          %1305 = vset.pattern.permute.xlu0 0
          %1306 = vperm.xlu0 %1305, %v965
          %v1307 = vpop.permute.xlu0 %1306
          %1310 = vset.pattern.permute.xlu0 0
          %1311 = vperm.xlu0 %1310, %v967
          %v1312 = vpop.permute.xlu0 %1311
          %1315 = vset.pattern.permute.xlu0 0
          %1316 = vperm.xlu0 %1315, %v969
          %v1317 = vpop.permute.xlu0 %1316
          %v1319 = vmul.f32 %v1282, %v1271
          %v1320 = vmul.f32 %v1287, %v1272
          %v1321 = vmul.f32 %v1292, %v1273
          %v1322 = vmul.f32 %v1297, %v1274
          %v1323 = vmul.f32 %v1302, %v1275
          %v1324 = vmul.f32 %v1307, %v1276
          %v1325 = vmul.f32 %v1312, %v1277
          %v1326 = vmul.f32 %v1317, %v1278
          %v1327 = vadd.f32 %v1319, %v1133
          %v1328 = vadd.f32 %v1320, %v1136
          %v1329 = vadd.f32 %v1321, %v1177
          %v1330 = vadd.f32 %v1322, %v1180
          %v1331 = vadd.f32 %v1323, %v1221
          %v1332 = vadd.f32 %v1324, %v1224
          %v1333 = vadd.f32 %v1325, %v1265
          %v1334 = vadd.f32 %v1326, %v1268
          %1335 = vst.msk [vmem:[#allocation4] sm:$0xff] %vm690, %v1327
          %1336 = vst.msk [vmem:[#allocation4 + $0x8] sm:$0xff] %vm690, %v1328
          %1337 = vst.msk [vmem:[#allocation4 + $0x10] sm:$0xff] %vm690, %v1329
          %1338 = vst.msk [vmem:[#allocation4 + $0x18] sm:$0xff] %vm690, %v1330
          %1339 = vst.msk [vmem:[#allocation4 + $0x20] sm:$0xff] %vm690, %v1331
          %1340 = vst.msk [vmem:[#allocation4 + $0x28] sm:$0xff] %vm690, %v1332
          %1341 = vst.msk [vmem:[#allocation4 + $0x30] sm:$0xff] %vm690, %v1333
          %1342 = vst.msk [vmem:[#allocation4 + $0x38] sm:$0xff] %vm690, %v1334
          %1343 = vst.msk [vmem:[#allocation2] sm:$0xff] %vm1082, %v938
          %1344 = vst.msk [vmem:[#allocation2 + $0x8] sm:$0xff] %vm1082, %v939
          %1345 = vst.msk [vmem:[#allocation2 + $0x10] sm:$0xff] %vm1082, %v940
          %1346 = vst.msk [vmem:[#allocation2 + $0x18] sm:$0xff] %vm1082, %v941
          %1347 = vst.msk [vmem:[#allocation2 + $0x20] sm:$0xff] %vm1082, %v942
          %1348 = vst.msk [vmem:[#allocation2 + $0x28] sm:$0xff] %vm1082, %v943
          %1349 = vst.msk [vmem:[#allocation2 + $0x30] sm:$0xff] %vm1082, %v944
          %1350 = vst.msk [vmem:[#allocation2 + $0x38] sm:$0xff] %vm1082, %v945
        $region92: #{flash_phi3_layer.3} parent=51 // pred_fallthru
          _
        %p1351 = scmp.eq.s32.totalorder %s43, 1
        // Predicated region
        $region93: #{flash_phi3_layer.3} parent=51 // pred_check
          %p1352 = pneg %p1351
        $region94: #{flash_phi3_layer.3} parent=51 // pred_check_branch
          %1354 = sbr.rel (%p1352) target = $region96
        $region95: #{flash_phi3_layer.3} parent=51 // pred_region
          %v1355 = vld [vmem:[#allocation4] sm:$0xff]
          %v1356 = vld [vmem:[#allocation4 + $0x8] sm:$0xff]
          %v1357 = vld [vmem:[#allocation4 + $0x10] sm:$0xff]
          %v1358 = vld [vmem:[#allocation4 + $0x18] sm:$0xff]
          %v1359 = vld [vmem:[#allocation4 + $0x20] sm:$0xff]
          %v1360 = vld [vmem:[#allocation4 + $0x28] sm:$0xff]
          %v1361 = vld [vmem:[#allocation4 + $0x30] sm:$0xff]
          %v1362 = vld [vmem:[#allocation4 + $0x38] sm:$0xff]
          %v1363 = vld [vmem:[#allocation3] sm:$0xff]
          %v1364 = vld [vmem:[#allocation3 + $0x8] sm:$0xff]
          %v1365 = vld [vmem:[#allocation3 + $0x10] sm:$0xff]
          %v1366 = vld [vmem:[#allocation3 + $0x18] sm:$0xff]
          %v1367 = vld [vmem:[#allocation3 + $0x20] sm:$0xff]
          %v1368 = vld [vmem:[#allocation3 + $0x28] sm:$0xff]
          %v1369 = vld [vmem:[#allocation3 + $0x30] sm:$0xff]
          %v1370 = vld [vmem:[#allocation3 + $0x38] sm:$0xff]
          %1372 = vset.pattern.permute.xlu0 0
          %1373 = vperm.xlu0 %1372, %v1363
          %v1374 = vpop.permute.xlu0 %1373
          %1377 = vset.pattern.permute.xlu0 0
          %1378 = vperm.xlu0 %1377, %v1364
          %v1379 = vpop.permute.xlu0 %1378
          %1382 = vset.pattern.permute.xlu0 0
          %1383 = vperm.xlu0 %1382, %v1365
          %v1384 = vpop.permute.xlu0 %1383
          %1387 = vset.pattern.permute.xlu0 0
          %1388 = vperm.xlu0 %1387, %v1366
          %v1389 = vpop.permute.xlu0 %1388
          %1392 = vset.pattern.permute.xlu0 0
          %1393 = vperm.xlu0 %1392, %v1367
          %v1394 = vpop.permute.xlu0 %1393
          %1397 = vset.pattern.permute.xlu0 0
          %1398 = vperm.xlu0 %1397, %v1368
          %v1399 = vpop.permute.xlu0 %1398
          %1402 = vset.pattern.permute.xlu0 0
          %1403 = vperm.xlu0 %1402, %v1369
          %v1404 = vpop.permute.xlu0 %1403
          %1407 = vset.pattern.permute.xlu0 0
          %1408 = vperm.xlu0 %1407, %v1370
          %v1409 = vpop.permute.xlu0 %1408
          %v1411 = vrcp.pop %v1374
          %v1412 = vmul.f32 %v1355, %v1411
          %v1413 = vrcp.pop %v1379
          %v1414 = vmul.f32 %v1356, %v1413
          %v1415 = vrcp.pop %v1384
          %v1416 = vmul.f32 %v1357, %v1415
          %v1417 = vrcp.pop %v1389
          %v1418 = vmul.f32 %v1358, %v1417
          %v1419 = vrcp.pop %v1394
          %v1420 = vmul.f32 %v1359, %v1419
          %v1421 = vrcp.pop %v1399
          %v1422 = vmul.f32 %v1360, %v1421
          %v1423 = vrcp.pop %v1404
          %v1424 = vmul.f32 %v1361, %v1423
          %v1425 = vrcp.pop %v1409
          %v1426 = vmul.f32 %v1362, %v1425
          %v1427 = vpack.c.bf16 %v1414, %v1412
          %v1428 = vpack.c.bf16 %v1418, %v1416
          %v1429 = vpack.c.bf16 %v1422, %v1420
          %v1430 = vpack.c.bf16 %v1426, %v1424
          %v1431 = vld [vmem:[#allocation14] sm:$0xf]
          %v1432 = vld [vmem:[#allocation14 + $0x4] sm:$0xf]
          %v1433 = vld [vmem:[#allocation14 + $0x8] sm:$0xf]
          %v1434 = vld [vmem:[#allocation14 + $0xc] sm:$0xf]
          %v1435 = vld [vmem:[#allocation14 + $0x10] sm:$0xf]
          %v1436 = vld [vmem:[#allocation14 + $0x14] sm:$0xf]
          %v1437 = vld [vmem:[#allocation14 + $0x18] sm:$0xf]
          %v1438 = vld [vmem:[#allocation14 + $0x1c] sm:$0xf]
          %v1439 = vld [vmem:[#allocation14 + $0x20] sm:$0xf]
          %v1440 = vld [vmem:[#allocation14 + $0x24] sm:$0xf]
          %v1441 = vld [vmem:[#allocation14 + $0x28] sm:$0xf]
          %v1442 = vld [vmem:[#allocation14 + $0x2c] sm:$0xf]
          %v1443 = vld [vmem:[#allocation14 + $0x30] sm:$0xf]
          %v1444 = vld [vmem:[#allocation14 + $0x34] sm:$0xf]
          %v1445 = vld [vmem:[#allocation14 + $0x38] sm:$0xf]
          %v1446 = vld [vmem:[#allocation14 + $0x3c] sm:$0xf]
          %v1451 = vunpack.c.l.b16 %v1431
          %v1452 = vunpack.c.l.b16 %v1432
          %v1453 = vunpack.c.l.b16 %v1433
          %v1454 = vunpack.c.l.b16 %v1434
          %v1455 = vpack.c.b16 %v1452, %v1451
          %v1456 = vpack.c.b16 %v1454, %v1453
          %vm1459 = vcmask 261120
          %v1461 = vsel %vm1459, %v1427, 0
          %1463 = vmatprep.subr.bf16.mxu0 0
          %1464 = vmatpush1.bf16.msra.mxu0 %v1455
          %1465 = vmatprep.subr.bf16.mxu0 0
          %1466 = vmatpush1.bf16.msra.mxu0 %v1456
          %1467 = vmatprep.subr.bf16.mxu0 0
          %1468 = vmatpush1.bf16.msra.mxu0 0
          %1469 = vmatprep.subr.bf16.mxu0 0
          %1470 = vmatpush1.bf16.msra.mxu0 0
          %1471 = vmatprep.subr.bf16.mxu0 0
          %1472 = vmatpush1.bf16.msra.mxu0 0
          %1473 = vmatprep.subr.bf16.mxu0 0
          %1474 = vmatpush1.bf16.msra.mxu0 0
          %1475 = vmatprep.subr.bf16.mxu0 0
          %1476 = vmatpush1.bf16.msra.mxu0 0
          %1477 = vmatprep.subr.bf16.mxu0 0
          %1478 = vmatpush1.bf16.msra.mxu0 0
          %1479 = vmatprep.subr.bf16.mxu0 0
          %1480 = vmatpush1.bf16.msra.mxu0 0
          %1481 = vmatprep.subr.bf16.mxu0 0
          %1482 = vmatpush1.bf16.msra.mxu0 0
          %1483 = vmatprep.subr.bf16.mxu0 0
          %1484 = vmatpush1.bf16.msra.mxu0 0
          %1485 = vmatprep.subr.bf16.mxu0 0
          %1486 = vmatpush1.bf16.msra.mxu0 0
          %1487 = vmatprep.subr.bf16.mxu0 0
          %1488 = vmatpush1.bf16.msra.mxu0 0
          %1489 = vmatprep.subr.bf16.mxu0 0
          %1490 = vmatpush1.bf16.msra.mxu0 0
          %1491 = vmatprep.subr.bf16.mxu0 0
          %1492 = vmatpush1.bf16.msra.mxu0 0
          %1493 = vmatprep.subr.bf16.mxu0 0
          %1494 = vmatpush1.bf16.msra.mxu0 0
          %1495 = vmatprep.mubr.bf16.mxu0 0
          %1496 = vmatmul.mubr.bf16.gmra.mrb[0].mxu0 %v1461
          %v1497 = vpop.f32.mrb[0].mxu0
          %v1498 = vadd.f32 0.0, %v1497
          %v1499 = vpop.f32.mrb[0].mxu0
          %v1500 = vpop.f32.mrb[0].mxu0
          %v1501 = vadd.f32 0.0, %v1500
          %v1502 = vpop.f32.mrb[0].mxu0
          %1503 = vdwg.mxu0
          %v1508 = vunpack.c.l.b16 %v1435
          %v1509 = vunpack.c.l.b16 %v1436
          %v1510 = vunpack.c.l.b16 %v1437
          %v1511 = vunpack.c.l.b16 %v1438
          %v1512 = vpack.c.b16 %v1509, %v1508
          %v1513 = vpack.c.b16 %v1511, %v1510
          %v1517 = vsel %vm1459, %v1428, 0
          %1519 = vmatprep.subr.bf16.mxu0 0
          %1520 = vmatpush1.bf16.msra.mxu0 %v1512
          %1521 = vmatprep.subr.bf16.mxu0 0
          %1522 = vmatpush1.bf16.msra.mxu0 %v1513
          %1523 = vmatprep.subr.bf16.mxu0 0
          %1524 = vmatpush1.bf16.msra.mxu0 0
          %1525 = vmatprep.subr.bf16.mxu0 0
          %1526 = vmatpush1.bf16.msra.mxu0 0
          %1527 = vmatprep.subr.bf16.mxu0 0
          %1528 = vmatpush1.bf16.msra.mxu0 0
          %1529 = vmatprep.subr.bf16.mxu0 0
          %1530 = vmatpush1.bf16.msra.mxu0 0
          %1531 = vmatprep.subr.bf16.mxu0 0
          %1532 = vmatpush1.bf16.msra.mxu0 0
          %1533 = vmatprep.subr.bf16.mxu0 0
          %1534 = vmatpush1.bf16.msra.mxu0 0
          %1535 = vmatprep.subr.bf16.mxu0 0
          %1536 = vmatpush1.bf16.msra.mxu0 0
          %1537 = vmatprep.subr.bf16.mxu0 0
          %1538 = vmatpush1.bf16.msra.mxu0 0
          %1539 = vmatprep.subr.bf16.mxu0 0
          %1540 = vmatpush1.bf16.msra.mxu0 0
          %1541 = vmatprep.subr.bf16.mxu0 0
          %1542 = vmatpush1.bf16.msra.mxu0 0
          %1543 = vmatprep.subr.bf16.mxu0 0
          %1544 = vmatpush1.bf16.msra.mxu0 0
          %1545 = vmatprep.subr.bf16.mxu0 0
          %1546 = vmatpush1.bf16.msra.mxu0 0
          %1547 = vmatprep.subr.bf16.mxu0 0
          %1548 = vmatpush1.bf16.msra.mxu0 0
          %1549 = vmatprep.subr.bf16.mxu0 0
          %1550 = vmatpush1.bf16.msra.mxu0 0
          %1551 = vmatprep.mubr.bf16.mxu0 0
          %1552 = vmatmul.mubr.bf16.gmra.mrb[0].mxu0 %v1517
          %v1553 = vpop.f32.mrb[0].mxu0
          %v1554 = vadd.f32 0.0, %v1553
          %v1555 = vpop.f32.mrb[0].mxu0
          %v1556 = vpop.f32.mrb[0].mxu0
          %v1557 = vadd.f32 0.0, %v1556
          %v1558 = vpop.f32.mrb[0].mxu0
          %1559 = vdwg.mxu0
          %v1564 = vunpack.c.l.b16 %v1439
          %v1565 = vunpack.c.l.b16 %v1440
          %v1566 = vunpack.c.l.b16 %v1441
          %v1567 = vunpack.c.l.b16 %v1442
          %v1568 = vpack.c.b16 %v1565, %v1564
          %v1569 = vpack.c.b16 %v1567, %v1566
          %v1573 = vsel %vm1459, %v1429, 0
          %1575 = vmatprep.subr.bf16.mxu0 0
          %1576 = vmatpush1.bf16.msra.mxu0 %v1568
          %1577 = vmatprep.subr.bf16.mxu0 0
          %1578 = vmatpush1.bf16.msra.mxu0 %v1569
          %1579 = vmatprep.subr.bf16.mxu0 0
          %1580 = vmatpush1.bf16.msra.mxu0 0
          %1581 = vmatprep.subr.bf16.mxu0 0
          %1582 = vmatpush1.bf16.msra.mxu0 0
          %1583 = vmatprep.subr.bf16.mxu0 0
          %1584 = vmatpush1.bf16.msra.mxu0 0
          %1585 = vmatprep.subr.bf16.mxu0 0
          %1586 = vmatpush1.bf16.msra.mxu0 0
          %1587 = vmatprep.subr.bf16.mxu0 0
          %1588 = vmatpush1.bf16.msra.mxu0 0
          %1589 = vmatprep.subr.bf16.mxu0 0
          %1590 = vmatpush1.bf16.msra.mxu0 0
          %1591 = vmatprep.subr.bf16.mxu0 0
          %1592 = vmatpush1.bf16.msra.mxu0 0
          %1593 = vmatprep.subr.bf16.mxu0 0
          %1594 = vmatpush1.bf16.msra.mxu0 0
          %1595 = vmatprep.subr.bf16.mxu0 0
          %1596 = vmatpush1.bf16.msra.mxu0 0
          %1597 = vmatprep.subr.bf16.mxu0 0
          %1598 = vmatpush1.bf16.msra.mxu0 0
          %1599 = vmatprep.subr.bf16.mxu0 0
          %1600 = vmatpush1.bf16.msra.mxu0 0
          %1601 = vmatprep.subr.bf16.mxu0 0
          %1602 = vmatpush1.bf16.msra.mxu0 0
          %1603 = vmatprep.subr.bf16.mxu0 0
          %1604 = vmatpush1.bf16.msra.mxu0 0
          %1605 = vmatprep.subr.bf16.mxu0 0
          %1606 = vmatpush1.bf16.msra.mxu0 0
          %1607 = vmatprep.mubr.bf16.mxu0 0
          %1608 = vmatmul.mubr.bf16.gmra.mrb[0].mxu0 %v1573
          %v1609 = vpop.f32.mrb[0].mxu0
          %v1610 = vadd.f32 0.0, %v1609
          %v1611 = vpop.f32.mrb[0].mxu0
          %v1612 = vpop.f32.mrb[0].mxu0
          %v1613 = vadd.f32 0.0, %v1612
          %v1614 = vpop.f32.mrb[0].mxu0
          %1615 = vdwg.mxu0
          %v1620 = vunpack.c.l.b16 %v1443
          %v1621 = vunpack.c.l.b16 %v1444
          %v1622 = vunpack.c.l.b16 %v1445
          %v1623 = vunpack.c.l.b16 %v1446
          %v1624 = vpack.c.b16 %v1621, %v1620
          %v1625 = vpack.c.b16 %v1623, %v1622
          %v1629 = vsel %vm1459, %v1430, 0
          %1631 = vmatprep.subr.bf16.mxu0 0
          %1632 = vmatpush1.bf16.msra.mxu0 %v1624
          %1633 = vmatprep.subr.bf16.mxu0 0
          %1634 = vmatpush1.bf16.msra.mxu0 %v1625
          %1635 = vmatprep.subr.bf16.mxu0 0
          %1636 = vmatpush1.bf16.msra.mxu0 0
          %1637 = vmatprep.subr.bf16.mxu0 0
          %1638 = vmatpush1.bf16.msra.mxu0 0
          %1639 = vmatprep.subr.bf16.mxu0 0
          %1640 = vmatpush1.bf16.msra.mxu0 0
          %1641 = vmatprep.subr.bf16.mxu0 0
          %1642 = vmatpush1.bf16.msra.mxu0 0
          %1643 = vmatprep.subr.bf16.mxu0 0
          %1644 = vmatpush1.bf16.msra.mxu0 0
          %1645 = vmatprep.subr.bf16.mxu0 0
          %1646 = vmatpush1.bf16.msra.mxu0 0
          %1647 = vmatprep.subr.bf16.mxu0 0
          %1648 = vmatpush1.bf16.msra.mxu0 0
          %1649 = vmatprep.subr.bf16.mxu0 0
          %1650 = vmatpush1.bf16.msra.mxu0 0
          %1651 = vmatprep.subr.bf16.mxu0 0
          %1652 = vmatpush1.bf16.msra.mxu0 0
          %1653 = vmatprep.subr.bf16.mxu0 0
          %1654 = vmatpush1.bf16.msra.mxu0 0
          %1655 = vmatprep.subr.bf16.mxu0 0
          %1656 = vmatpush1.bf16.msra.mxu0 0
          %1657 = vmatprep.subr.bf16.mxu0 0
          %1658 = vmatpush1.bf16.msra.mxu0 0
          %1659 = vmatprep.subr.bf16.mxu0 0
          %1660 = vmatpush1.bf16.msra.mxu0 0
          %1661 = vmatprep.subr.bf16.mxu0 0
          %1662 = vmatpush1.bf16.msra.mxu0 0
          %1663 = vmatprep.mubr.bf16.mxu0 0
          %1664 = vmatmul.mubr.bf16.gmra.mrb[0].mxu0 %v1629
          %v1665 = vpop.f32.mrb[0].mxu0
          %v1666 = vadd.f32 0.0, %v1665
          %v1667 = vpop.f32.mrb[0].mxu0
          %v1668 = vpop.f32.mrb[0].mxu0
          %v1669 = vadd.f32 0.0, %v1668
          %v1670 = vpop.f32.mrb[0].mxu0
          %1671 = vdwg.mxu0
          %v1672 = vadd.f32 %v1498, %v1554
          %v1673 = vadd.f32 %v1672, %v1610
          %v1674 = vadd.f32 %v1673, %v1666
          %v1675 = vadd.f32 %v1501, %v1557
          %v1676 = vadd.f32 %v1675, %v1613
          %v1677 = vadd.f32 %v1676, %v1669
          %v1678 = vld [vmem:[%s551] sm:$0xff]
          %v1679 = vld [vmem:[%s551 + $0x8] sm:$0xff]
          %v1680 = vadd.f32 %v1674, %v1678
          %v1681 = vadd.f32 %v1677, %v1679
          %1682 = vst [vmem:[%s621] sm:$0xff] %v1680
          %1683 = vst [vmem:[%s621 + $0x8] sm:$0xff] %v1681
          %v1684 = vmul.f32 %v1680, %v1680
          %v1685 = vmul.f32 %v1681, %v1681
          %1686 = vadd.xlane.f32.xlu0 %v1684
          %v1687 = vpop.xlane.xlu0 %1686
          %1688 = vadd.xlane.f32.xlu0 %v1685
          %v1689 = vpop.xlane.xlu0 %1688
          %v1690 = vrcp.pop 128.0
          %v1691 = vmul.f32 %v1687, %v1690
          %v1692 = vmul.f32 %v1689, %v1690
          %v1693 = vadd.f32 %v1691, 1e-05
          %v1694 = vadd.f32 %v1692, 1e-05
          %v1695 = vrsqrt.pop %v1693
          %v1696 = vrsqrt.pop %v1694
          %v1697 = vmul.f32 %v1680, %v1695
          %v1698 = vmul.f32 %v1681, %v1696
          %v1699 = vld [vmem:[#allocation13] sm:$0x1]
          %v1701 = vlaneseq
          %v1702 = vshrl.u32 %v1701, 7
          %v1703 = vsub.s32 0, %v1702
          %v1704 = vrot.slane %v1699, %v1703
          %v1706 = vmul.f32 %v1697, %v1704
          %v1707 = vmul.f32 %v1698, %v1704
          %v1708 = vpack.c.bf16 %v1707, %v1706
          %v1709 = vld [vmem:[#allocation16] sm:$0xff]
          %v1710 = vld [vmem:[#allocation16 + $0x8] sm:$0xff]
          %v1711 = vld [vmem:[#allocation16 + $0x10] sm:$0xff]
          %v1712 = vld [vmem:[#allocation16 + $0x18] sm:$0xff]
          %v1713 = vld [vmem:[#allocation16 + $0x20] sm:$0xff]
          %v1714 = vld [vmem:[#allocation16 + $0x28] sm:$0xff]
          %v1715 = vld [vmem:[#allocation16 + $0x30] sm:$0xff]
          %v1716 = vld [vmem:[#allocation16 + $0x38] sm:$0xff]
          %v1717 = vld [vmem:[#allocation16 + $0x40] sm:$0xff]
          %v1718 = vld [vmem:[#allocation16 + $0x48] sm:$0xff]
          %v1719 = vld [vmem:[#allocation16 + $0x50] sm:$0xff]
          %v1720 = vld [vmem:[#allocation16 + $0x58] sm:$0xff]
          %v1721 = vld [vmem:[#allocation16 + $0x60] sm:$0xff]
          %v1722 = vld [vmem:[#allocation16 + $0x68] sm:$0xff]
          %v1723 = vld [vmem:[#allocation16 + $0x70] sm:$0xff]
          %v1724 = vld [vmem:[#allocation16 + $0x78] sm:$0xff]
          %v1725 = vld [vmem:[#allocation16 + $0x80] sm:$0xff]
          %v1726 = vld [vmem:[#allocation16 + $0x88] sm:$0xff]
          %v1727 = vld [vmem:[#allocation16 + $0x90] sm:$0xff]
          %v1728 = vld [vmem:[#allocation16 + $0x98] sm:$0xff]
          %v1729 = vld [vmem:[#allocation16 + $0xa0] sm:$0xff]
          %v1730 = vld [vmem:[#allocation16 + $0xa8] sm:$0xff]
          %v1731 = vld [vmem:[#allocation16 + $0xb0] sm:$0xff]
          %v1732 = vld [vmem:[#allocation16 + $0xb8] sm:$0xff]
          %v1733 = vld [vmem:[#allocation16 + $0xc0] sm:$0xff]
          %v1734 = vld [vmem:[#allocation16 + $0xc8] sm:$0xff]
          %v1735 = vld [vmem:[#allocation16 + $0xd0] sm:$0xff]
          %v1736 = vld [vmem:[#allocation16 + $0xd8] sm:$0xff]
          %v1737 = vld [vmem:[#allocation16 + $0xe0] sm:$0xff]
          %v1738 = vld [vmem:[#allocation16 + $0xe8] sm:$0xff]
          %v1739 = vld [vmem:[#allocation16 + $0xf0] sm:$0xff]
          %v1740 = vld [vmem:[#allocation16 + $0xf8] sm:$0xff]
          %v1773 = vunpack.c.l.b16 %v1709
          %v1774 = vunpack.c.h.b16 %v1709
          %v1775 = vunpack.c.l.b16 %v1710
          %v1776 = vunpack.c.h.b16 %v1710
          %v1777 = vunpack.c.l.b16 %v1711
          %v1778 = vunpack.c.h.b16 %v1711
          %v1779 = vunpack.c.l.b16 %v1712
          %v1780 = vunpack.c.h.b16 %v1712
          %v1781 = vunpack.c.l.b16 %v1713
          %v1782 = vunpack.c.h.b16 %v1713
          %v1783 = vunpack.c.l.b16 %v1714
          %v1784 = vunpack.c.h.b16 %v1714
          %v1785 = vunpack.c.l.b16 %v1715
          %v1786 = vunpack.c.h.b16 %v1715
          %v1787 = vunpack.c.l.b16 %v1716
          %v1788 = vunpack.c.h.b16 %v1716
          %v1789 = vunpack.c.l.b16 %v1717
          %v1790 = vunpack.c.h.b16 %v1717
          %v1791 = vunpack.c.l.b16 %v1718
          %v1792 = vunpack.c.h.b16 %v1718
          %v1793 = vunpack.c.l.b16 %v1719
          %v1794 = vunpack.c.h.b16 %v1719
          %v1795 = vunpack.c.l.b16 %v1720
          %v1796 = vunpack.c.h.b16 %v1720
          %v1797 = vunpack.c.l.b16 %v1721
          %v1798 = vunpack.c.h.b16 %v1721
          %v1799 = vunpack.c.l.b16 %v1722
          %v1800 = vunpack.c.h.b16 %v1722
          %v1801 = vunpack.c.l.b16 %v1723
          %v1802 = vunpack.c.h.b16 %v1723
          %v1803 = vunpack.c.l.b16 %v1724
          %v1804 = vunpack.c.h.b16 %v1724
          %v1805 = vunpack.c.l.b16 %v1725
          %v1806 = vunpack.c.h.b16 %v1725
          %v1807 = vunpack.c.l.b16 %v1726
          %v1808 = vunpack.c.h.b16 %v1726
          %v1809 = vunpack.c.l.b16 %v1727
          %v1810 = vunpack.c.h.b16 %v1727
          %v1811 = vunpack.c.l.b16 %v1728
          %v1812 = vunpack.c.h.b16 %v1728
          %v1813 = vunpack.c.l.b16 %v1729
          %v1814 = vunpack.c.h.b16 %v1729
          %v1815 = vunpack.c.l.b16 %v1730
          %v1816 = vunpack.c.h.b16 %v1730
          %v1817 = vunpack.c.l.b16 %v1731
          %v1818 = vunpack.c.h.b16 %v1731
          %v1819 = vunpack.c.l.b16 %v1732
          %v1820 = vunpack.c.h.b16 %v1732
          %v1821 = vunpack.c.l.b16 %v1733
          %v1822 = vunpack.c.h.b16 %v1733
          %v1823 = vunpack.c.l.b16 %v1734
          %v1824 = vunpack.c.h.b16 %v1734
          %v1825 = vunpack.c.l.b16 %v1735
          %v1826 = vunpack.c.h.b16 %v1735
          %v1827 = vunpack.c.l.b16 %v1736
          %v1828 = vunpack.c.h.b16 %v1736
          %v1829 = vunpack.c.l.b16 %v1737
          %v1830 = vunpack.c.h.b16 %v1737
          %v1831 = vunpack.c.l.b16 %v1738
          %v1832 = vunpack.c.h.b16 %v1738
          %v1833 = vunpack.c.l.b16 %v1739
          %v1834 = vunpack.c.h.b16 %v1739
          %v1835 = vunpack.c.l.b16 %v1740
          %v1836 = vunpack.c.h.b16 %v1740
          %v1837 = vpack.c.b16 %v1777, %v1773
          %v1838 = vpack.c.b16 %v1778, %v1774
          %v1839 = vpack.c.b16 %v1779, %v1775
          %v1840 = vpack.c.b16 %v1780, %v1776
          %v1841 = vpack.c.b16 %v1785, %v1781
          %v1842 = vpack.c.b16 %v1786, %v1782
          %v1843 = vpack.c.b16 %v1787, %v1783
          %v1844 = vpack.c.b16 %v1788, %v1784
          %v1845 = vpack.c.b16 %v1793, %v1789
          %v1846 = vpack.c.b16 %v1794, %v1790
          %v1847 = vpack.c.b16 %v1795, %v1791
          %v1848 = vpack.c.b16 %v1796, %v1792
          %v1849 = vpack.c.b16 %v1801, %v1797
          %v1850 = vpack.c.b16 %v1802, %v1798
          %v1851 = vpack.c.b16 %v1803, %v1799
          %v1852 = vpack.c.b16 %v1804, %v1800
          %v1853 = vpack.c.b16 %v1809, %v1805
          %v1854 = vpack.c.b16 %v1810, %v1806
          %v1855 = vpack.c.b16 %v1811, %v1807
          %v1856 = vpack.c.b16 %v1812, %v1808
          %v1857 = vpack.c.b16 %v1817, %v1813
          %v1858 = vpack.c.b16 %v1818, %v1814
          %v1859 = vpack.c.b16 %v1819, %v1815
          %v1860 = vpack.c.b16 %v1820, %v1816
          %v1861 = vpack.c.b16 %v1825, %v1821
          %v1862 = vpack.c.b16 %v1826, %v1822
          %v1863 = vpack.c.b16 %v1827, %v1823
          %v1864 = vpack.c.b16 %v1828, %v1824
          %v1865 = vpack.c.b16 %v1833, %v1829
          %v1866 = vpack.c.b16 %v1834, %v1830
          %v1867 = vpack.c.b16 %v1835, %v1831
          %v1868 = vpack.c.b16 %v1836, %v1832
          %1901 = vmatprep.subr.bf16.mxu0 %v1838
          %1902 = vmatpush1.bf16.msra.mxu0 %v1837
          %1903 = vmatprep.subr.bf16.mxu0 %v1842
          %1904 = vmatpush1.bf16.msra.mxu0 %v1841
          %1905 = vmatprep.subr.bf16.mxu0 %v1846
          %1906 = vmatpush1.bf16.msra.mxu0 %v1845
          %1907 = vmatprep.subr.bf16.mxu0 %v1850
          %1908 = vmatpush1.bf16.msra.mxu0 %v1849
          %1909 = vmatprep.subr.bf16.mxu0 %v1854
          %1910 = vmatpush1.bf16.msra.mxu0 %v1853
          %1911 = vmatprep.subr.bf16.mxu0 %v1858
          %1912 = vmatpush1.bf16.msra.mxu0 %v1857
          %1913 = vmatprep.subr.bf16.mxu0 %v1862
          %1914 = vmatpush1.bf16.msra.mxu0 %v1861
          %1915 = vmatprep.subr.bf16.mxu0 %v1866
          %1916 = vmatpush1.bf16.msra.mxu0 %v1865
          %1917 = vmatprep.subr.bf16.mxu0 0
          %1918 = vmatpush1.bf16.msra.mxu0 0
          %1919 = vmatprep.subr.bf16.mxu0 0
          %1920 = vmatpush1.bf16.msra.mxu0 0
          %1921 = vmatprep.subr.bf16.mxu0 0
          %1922 = vmatpush1.bf16.msra.mxu0 0
          %1923 = vmatprep.subr.bf16.mxu0 0
          %1924 = vmatpush1.bf16.msra.mxu0 0
          %1925 = vmatprep.subr.bf16.mxu0 0
          %1926 = vmatpush1.bf16.msra.mxu0 0
          %1927 = vmatprep.subr.bf16.mxu0 0
          %1928 = vmatpush1.bf16.msra.mxu0 0
          %1929 = vmatprep.subr.bf16.mxu0 0
          %1930 = vmatpush1.bf16.msra.mxu0 0
          %1931 = vmatprep.subr.bf16.mxu0 0
          %1932 = vmatpush1.bf16.msra.mxu0 0
          %1933 = vmatprep.mubr.bf16.mxu0 0
          %1934 = vmatmul.mubr.bf16.gmra.mrb[0].mxu0 %v1708
          %v1935 = vpop.f32.mrb[0].mxu0
          %v1936 = vadd.f32 0.0, %v1935
          %v1937 = vpop.f32.mrb[0].mxu0
          %v1938 = vadd.f32 0.0, %v1937
          %v1939 = vpop.f32.mrb[0].mxu0
          %v1940 = vadd.f32 0.0, %v1939
          %v1941 = vpop.f32.mrb[0].mxu0
          %v1942 = vadd.f32 0.0, %v1941
          %1943 = vdwg.mxu0
          %1944 = vmatprep.subr.bf16.mxu0 %v1840
          %1945 = vmatpush1.bf16.msra.mxu0 %v1839
          %1946 = vmatprep.subr.bf16.mxu0 %v1844
          %1947 = vmatpush1.bf16.msra.mxu0 %v1843
          %1948 = vmatprep.subr.bf16.mxu0 %v1848
          %1949 = vmatpush1.bf16.msra.mxu0 %v1847
          %1950 = vmatprep.subr.bf16.mxu0 %v1852
          %1951 = vmatpush1.bf16.msra.mxu0 %v1851
          %1952 = vmatprep.subr.bf16.mxu0 %v1856
          %1953 = vmatpush1.bf16.msra.mxu0 %v1855
          %1954 = vmatprep.subr.bf16.mxu0 %v1860
          %1955 = vmatpush1.bf16.msra.mxu0 %v1859
          %1956 = vmatprep.subr.bf16.mxu0 %v1864
          %1957 = vmatpush1.bf16.msra.mxu0 %v1863
          %1958 = vmatprep.subr.bf16.mxu0 %v1868
          %1959 = vmatpush1.bf16.msra.mxu0 %v1867
          %1960 = vmatprep.subr.bf16.mxu0 0
          %1961 = vmatpush1.bf16.msra.mxu0 0
          %1962 = vmatprep.subr.bf16.mxu0 0
          %1963 = vmatpush1.bf16.msra.mxu0 0
          %1964 = vmatprep.subr.bf16.mxu0 0
          %1965 = vmatpush1.bf16.msra.mxu0 0
          %1966 = vmatprep.subr.bf16.mxu0 0
          %1967 = vmatpush1.bf16.msra.mxu0 0
          %1968 = vmatprep.subr.bf16.mxu0 0
          %1969 = vmatpush1.bf16.msra.mxu0 0
          %1970 = vmatprep.subr.bf16.mxu0 0
          %1971 = vmatpush1.bf16.msra.mxu0 0
          %1972 = vmatprep.subr.bf16.mxu0 0
          %1973 = vmatpush1.bf16.msra.mxu0 0
          %1974 = vmatprep.subr.bf16.mxu0 0
          %1975 = vmatpush1.bf16.msra.mxu0 0
          %1976 = vmatprep.mubr.bf16.mxu0 0
          %1977 = vmatmul.mubr.bf16.gmra.mrb[0].mxu0 %v1708
          %v1978 = vpop.f32.mrb[0].mxu0
          %v1979 = vadd.f32 0.0, %v1978
          %v1980 = vpop.f32.mrb[0].mxu0
          %v1981 = vadd.f32 0.0, %v1980
          %v1982 = vpop.f32.mrb[0].mxu0
          %v1983 = vadd.f32 0.0, %v1982
          %v1984 = vpop.f32.mrb[0].mxu0
          %v1985 = vadd.f32 0.0, %v1984
          %1986 = vdwg.mxu0
          %v1987 = vxor.u32 %v1936, 2147483648
          %v1988 = vxor.u32 %v1938, 2147483648
          %v1989 = vxor.u32 %v1940, 2147483648
          %v1990 = vxor.u32 %v1942, 2147483648
          %v1991 = vmul.f32 %v1987, 1.442695
          %v1992 = vpow.pop %v1991
          %v1993 = vmul.f32 %v1988, 1.442695
          %v1994 = vpow.pop %v1993
          %v1995 = vmul.f32 %v1989, 1.442695
          %v1996 = vpow.pop %v1995
          %v1997 = vmul.f32 %v1990, 1.442695
          %v1998 = vpow.pop %v1997
          %v1999 = vadd.f32 %v1992, 1.0
          %v2000 = vadd.f32 %v1994, 1.0
          %v2001 = vadd.f32 %v1996, 1.0
          %v2002 = vadd.f32 %v1998, 1.0
          %v2003 = vrcp.pop %v1999
          %v2004 = vmul.f32 1.0, %v2003
          %v2005 = vrcp.pop %v2000
          %v2006 = vmul.f32 1.0, %v2005
          %v2007 = vrcp.pop %v2001
          %v2008 = vmul.f32 1.0, %v2007
          %v2009 = vrcp.pop %v2002
          %v2010 = vmul.f32 1.0, %v2009
          %v2011 = vmul.f32 %v1936, %v2004
          %v2012 = vmul.f32 %v1938, %v2006
          %v2013 = vmul.f32 %v1940, %v2008
          %v2014 = vmul.f32 %v1942, %v2010
          %v2015 = vmul.f32 %v2011, %v1979
          %v2016 = vmul.f32 %v2012, %v1981
          %v2017 = vmul.f32 %v2013, %v1983
          %v2018 = vmul.f32 %v2014, %v1985
          %v2019 = vpack.c.bf16 %v2017, %v2015
          %v2020 = vpack.c.bf16 %v2018, %v2016
          %v2021 = vld [vmem:[#allocation17] sm:$0xf]
          %v2022 = vld [vmem:[#allocation17 + $0x4] sm:$0xf]
          %v2023 = vld [vmem:[#allocation17 + $0x8] sm:$0xf]
          %v2024 = vld [vmem:[#allocation17 + $0xc] sm:$0xf]
          %v2025 = vld [vmem:[#allocation17 + $0x10] sm:$0xf]
          %v2026 = vld [vmem:[#allocation17 + $0x14] sm:$0xf]
          %v2027 = vld [vmem:[#allocation17 + $0x18] sm:$0xf]
          %v2028 = vld [vmem:[#allocation17 + $0x1c] sm:$0xf]
          %v2029 = vld [vmem:[#allocation17 + $0x20] sm:$0xf]
          %v2030 = vld [vmem:[#allocation17 + $0x24] sm:$0xf]
          %v2031 = vld [vmem:[#allocation17 + $0x28] sm:$0xf]
          %v2032 = vld [vmem:[#allocation17 + $0x2c] sm:$0xf]
          %v2033 = vld [vmem:[#allocation17 + $0x30] sm:$0xf]
          %v2034 = vld [vmem:[#allocation17 + $0x34] sm:$0xf]
          %v2035 = vld [vmem:[#allocation17 + $0x38] sm:$0xf]
          %v2036 = vld [vmem:[#allocation17 + $0x3c] sm:$0xf]
          %v2037 = vld [vmem:[#allocation17 + $0x40] sm:$0xf]
          %v2038 = vld [vmem:[#allocation17 + $0x44] sm:$0xf]
          %v2039 = vld [vmem:[#allocation17 + $0x48] sm:$0xf]
          %v2040 = vld [vmem:[#allocation17 + $0x4c] sm:$0xf]
          %v2041 = vld [vmem:[#allocation17 + $0x50] sm:$0xf]
          %v2042 = vld [vmem:[#allocation17 + $0x54] sm:$0xf]
          %v2043 = vld [vmem:[#allocation17 + $0x58] sm:$0xf]
          %v2044 = vld [vmem:[#allocation17 + $0x5c] sm:$0xf]
          %v2045 = vld [vmem:[#allocation17 + $0x60] sm:$0xf]
          %v2046 = vld [vmem:[#allocation17 + $0x64] sm:$0xf]
          %v2047 = vld [vmem:[#allocation17 + $0x68] sm:$0xf]
          %v2048 = vld [vmem:[#allocation17 + $0x6c] sm:$0xf]
          %v2049 = vld [vmem:[#allocation17 + $0x70] sm:$0xf]
          %v2050 = vld [vmem:[#allocation17 + $0x74] sm:$0xf]
          %v2051 = vld [vmem:[#allocation17 + $0x78] sm:$0xf]
          %v2052 = vld [vmem:[#allocation17 + $0x7c] sm:$0xf]
          %v2085 = vunpack.c.l.b16 %v2021
          %v2086 = vunpack.c.l.b16 %v2022
          %v2087 = vunpack.c.l.b16 %v2023
          %v2088 = vunpack.c.l.b16 %v2024
          %v2089 = vunpack.c.l.b16 %v2025
          %v2090 = vunpack.c.l.b16 %v2026
          %v2091 = vunpack.c.l.b16 %v2027
          %v2092 = vunpack.c.l.b16 %v2028
          %v2093 = vunpack.c.l.b16 %v2029
          %v2094 = vunpack.c.l.b16 %v2030
          %v2095 = vunpack.c.l.b16 %v2031
          %v2096 = vunpack.c.l.b16 %v2032
          %v2097 = vunpack.c.l.b16 %v2033
          %v2098 = vunpack.c.l.b16 %v2034
          %v2099 = vunpack.c.l.b16 %v2035
          %v2100 = vunpack.c.l.b16 %v2036
          %v2101 = vunpack.c.l.b16 %v2037
          %v2102 = vunpack.c.l.b16 %v2038
          %v2103 = vunpack.c.l.b16 %v2039
          %v2104 = vunpack.c.l.b16 %v2040
          %v2105 = vunpack.c.l.b16 %v2041
          %v2106 = vunpack.c.l.b16 %v2042
          %v2107 = vunpack.c.l.b16 %v2043
          %v2108 = vunpack.c.l.b16 %v2044
          %v2109 = vunpack.c.l.b16 %v2045
          %v2110 = vunpack.c.l.b16 %v2046
          %v2111 = vunpack.c.l.b16 %v2047
          %v2112 = vunpack.c.l.b16 %v2048
          %v2113 = vunpack.c.l.b16 %v2049
          %v2114 = vunpack.c.l.b16 %v2050
          %v2115 = vunpack.c.l.b16 %v2051
          %v2116 = vunpack.c.l.b16 %v2052
          %v2117 = vpack.c.b16 %v2086, %v2085
          %v2118 = vpack.c.b16 %v2088, %v2087
          %v2119 = vpack.c.b16 %v2090, %v2089
          %v2120 = vpack.c.b16 %v2092, %v2091
          %v2121 = vpack.c.b16 %v2094, %v2093
          %v2122 = vpack.c.b16 %v2096, %v2095
          %v2123 = vpack.c.b16 %v2098, %v2097
          %v2124 = vpack.c.b16 %v2100, %v2099
          %v2125 = vpack.c.b16 %v2102, %v2101
          %v2126 = vpack.c.b16 %v2104, %v2103
          %v2127 = vpack.c.b16 %v2106, %v2105
          %v2128 = vpack.c.b16 %v2108, %v2107
          %v2129 = vpack.c.b16 %v2110, %v2109
          %v2130 = vpack.c.b16 %v2112, %v2111
          %v2131 = vpack.c.b16 %v2114, %v2113
          %v2132 = vpack.c.b16 %v2116, %v2115
          %2149 = vmatprep.subr.bf16.mxu0 0
          %2150 = vmatpush1.bf16.msra.mxu0 %v2117
          %2151 = vmatprep.subr.bf16.mxu0 0
          %2152 = vmatpush1.bf16.msra.mxu0 %v2118
          %2153 = vmatprep.subr.bf16.mxu0 0
          %2154 = vmatpush1.bf16.msra.mxu0 %v2119
          %2155 = vmatprep.subr.bf16.mxu0 0
          %2156 = vmatpush1.bf16.msra.mxu0 %v2120
          %2157 = vmatprep.subr.bf16.mxu0 0
          %2158 = vmatpush1.bf16.msra.mxu0 %v2121
          %2159 = vmatprep.subr.bf16.mxu0 0
          %2160 = vmatpush1.bf16.msra.mxu0 %v2122
          %2161 = vmatprep.subr.bf16.mxu0 0
          %2162 = vmatpush1.bf16.msra.mxu0 %v2123
          %2163 = vmatprep.subr.bf16.mxu0 0
          %2164 = vmatpush1.bf16.msra.mxu0 %v2124
          %2165 = vmatprep.subr.bf16.mxu0 0
          %2166 = vmatpush1.bf16.msra.mxu0 %v2125
          %2167 = vmatprep.subr.bf16.mxu0 0
          %2168 = vmatpush1.bf16.msra.mxu0 %v2126
          %2169 = vmatprep.subr.bf16.mxu0 0
          %2170 = vmatpush1.bf16.msra.mxu0 %v2127
          %2171 = vmatprep.subr.bf16.mxu0 0
          %2172 = vmatpush1.bf16.msra.mxu0 %v2128
          %2173 = vmatprep.subr.bf16.mxu0 0
          %2174 = vmatpush1.bf16.msra.mxu0 %v2129
          %2175 = vmatprep.subr.bf16.mxu0 0
          %2176 = vmatpush1.bf16.msra.mxu0 %v2130
          %2177 = vmatprep.subr.bf16.mxu0 0
          %2178 = vmatpush1.bf16.msra.mxu0 %v2131
          %2179 = vmatprep.subr.bf16.mxu0 0
          %2180 = vmatpush1.bf16.msra.mxu0 %v2132
          %2181 = vmatprep.mubr.bf16.mxu0 %v2020
          %2182 = vmatmul.mubr.bf16.gmra.mrb[0].mxu0 %v2019
          %v2183 = vpop.f32.mrb[0].mxu0
          %v2184 = vadd.f32 0.0, %v2183
          %v2185 = vpop.f32.mrb[0].mxu0
          %v2186 = vpop.f32.mrb[0].mxu0
          %v2187 = vadd.f32 0.0, %v2186
          %v2188 = vpop.f32.mrb[0].mxu0
          %2189 = vdwg.mxu0
          %2190 = vst [vmem:[%s614] sm:$0xff] %v2184
          %2191 = vst [vmem:[%s614 + $0x8] sm:$0xff] %v2187
        $region96: #{flash_phi3_layer.3} parent=51 // pred_fallthru
          _
        %s2192 = sand.u32 %s246, 1
        %s2193 = scalar_lea.sflag [#allocation7], %s2192
        %s2194 = sand.u32 %s246, 1
        %s2195 = smul.addr %s2194, 16
        %s2196 = scalar_lea.vmem [#allocation19], %s2195
        %s2197 = sand.u32 %s272, 1
        %s2198 = scalar_lea.sflag [#allocation21], %s2197
        %s2199 = sand.u32 %s272, 1
        %s2200 = smul.addr %s2199, 16
        %s2201 = scalar_lea.vmem [#allocation20], %s2200
        // Predicated region
        $region97: #{flash_phi3_layer.3} parent=51 // pred_check
          %p2202 = pneg %p256
        $region98: #{flash_phi3_layer.3} parent=51 // pred_check_branch
          %2204 = sbr.rel (%p2202) target = $region100
        $region99: #{flash_phi3_layer.3} parent=51 // pred_region
          %s2205 = smul.u32 2, %s42
          %s2207 = ssub.s32 256, 256
          %2208 = vsyncadd %s2193, %s2207
          %s2209 = smul.addr %s2205, 128
          %s2210 = scalar_lea.hbm %s8, %s2209
          %s2211 = sshll.u32 %s2196, 4
          %s2212 = int_to_ptr.vmem [resolvable:$true] %s2211
          %2217 = dma.vmem_to_hbm [thread:$0]  %s2212, 256, %s2210, %s2193, 128, 128, 8
        $region100: #{flash_phi3_layer.3} parent=51 // pred_fallthru
          _
        // Predicated region
        $region101: #{flash_phi3_layer.3} parent=51 // pred_check
          %p2218 = pneg %p282
        $region102: #{flash_phi3_layer.3} parent=51 // pred_check_branch
          %2220 = sbr.rel (%p2218) target = $region104
        $region103: #{flash_phi3_layer.3} parent=51 // pred_region
          %s2221 = smul.u32 2, %s42
          %s2223 = ssub.s32 256, 256
          %2224 = vsyncadd %s2198, %s2223
          %s2225 = smul.addr %s2221, 128
          %s2226 = scalar_lea.hbm %s9, %s2225
          %s2227 = sshll.u32 %s2201, 4
          %s2228 = int_to_ptr.vmem [resolvable:$true] %s2227
          %2233 = dma.vmem_to_hbm [thread:$0]  %s2228, 256, %s2226, %s2198, 128, 128, 8
        $region104: #{flash_phi3_layer.3} parent=51 // pred_fallthru
          _
      $region52: #{flash_phi3_layer.3} parent=5 // pred_fallthru
        _
      %p2234 = scmp.le.s32.totalorder 2, %s33
      // Predicated region
      $region105: #{flash_phi3_layer.3} parent=5 // pred_check
        %p2235 = pneg %p2234
      $region106: #{flash_phi3_layer.3} parent=5 // pred_check_branch
        %2237 = sbr.rel (%p2235) target = $region108
      $region107: #{flash_phi3_layer.3} parent=5 // pred_region
        %s2238 = ssub.s32 %s33, 2
        // Predicated region
        $region109: #{flash_phi3_layer.3} parent=107 // pred_check
          %p2239 = pneg %p262
        $region110: #{flash_phi3_layer.3} parent=107 // pred_check_branch
          %2241 = sbr.rel (%p2239) target = $region112
        $region111: #{flash_phi3_layer.3} parent=107 // pred_region
          %s2242 = sand.u32 %s247, 1
          %s2243 = scalar_lea.sflag [#allocation7], %s2242
          %s2244 = sand.u32 %s247, 1
          %s2245 = smul.addr %s2244, 16
          %s2246 = scalar_lea.vmem [#allocation19], %s2245
          %2247 = dma.done %s2243, 256
        $region112: #{flash_phi3_layer.3} parent=107 // pred_fallthru
          _
        // Predicated region
        $region113: #{flash_phi3_layer.3} parent=107 // pred_check
          %p2248 = pneg %p288
        $region114: #{flash_phi3_layer.3} parent=107 // pred_check_branch
          %2250 = sbr.rel (%p2248) target = $region116
        $region115: #{flash_phi3_layer.3} parent=107 // pred_region
          %s2251 = sand.u32 %s273, 1
          %s2252 = scalar_lea.sflag [#allocation21], %s2251
          %s2253 = sand.u32 %s273, 1
          %s2254 = smul.addr %s2253, 16
          %s2255 = scalar_lea.vmem [#allocation20], %s2254
          %2256 = dma.done %s2252, 256
        $region116: #{flash_phi3_layer.3} parent=107 // pred_fallthru
          _
      $region108: #{flash_phi3_layer.3} parent=5 // pred_fallthru
        _
    $region6: #{flash_phi3_layer.3} parent=1 // loop_footer
      %s37 = sadd.s32 1, %s33
    $region7: #{flash_phi3_layer.3} parent=1 // loop_footer_branch
      %32 = sbr.rel target = $region3
    $region8: #{flash_phi3_layer.3} parent=1 // loop_exit
      _
    %2257 = vsyncpa [#allocation6], 1
    %s2258 = scalar_lea.sflag [#allocation6], 1
    %2259 = vsyncpa %s2258, 1
    %2260 = vsyncpa [#allocation9], 1
    %s2261 = scalar_lea.sflag [#allocation9], 1
    %2262 = vsyncpa %s2261, 1
    %2263 = vsyncpa [#allocation12], 1
    %s2264 = scalar_lea.sflag [#allocation12], 1
    %2265 = vsyncpa %s2264, 1
    %2266 = vsyncpa [#allocation15], 1
    %2267 = vsyncpa [#allocation18], 1
    %2268 = vsyncpa [#allocation7], 1
    %s2269 = scalar_lea.sflag [#allocation7], 1
    %2270 = vsyncpa %s2269, 1
    %2271 = vsyncpa [#allocation21], 1
    %s2272 = scalar_lea.sflag [#allocation21], 1
    %2273 = vsyncpa %s2272, 1

</llo_original>
